<compile_context>
chip_gen: v5e
topology: v5e:2x2
jax: 0.10.0
libtpu: 0.0.40
codegen_flags: <defaults>
</compile_context>

<pallas_src>
import numpy as np
import jax
import jax.numpy as jnp
from jax import lax
from jax.experimental import pallas as pl
from jax.experimental.pallas import tpu as pltpu

MAX_LABELS = 8        # static upper bound on instance label ids (labels 1..MAX_LABELS)
SIGMA_AGG = 0.5
SIGMA_DIS = 3.0
DICE_EPS = 1e-5       # PANLoss passes epsilon=1e-05 to both dice losses
ALPHA = 0.5
BETA = 0.25

LANES = 128
STRIP = 32            # rows per inner strip (int8 native sublane tile; 4 f32 vregs/stream)
MAX_TILE_ROWS = 1024  # per-tile row budget (working set ~4-5 MiB double-buffered at C=4)
MIN_TILE_ROWS = 256

_N_DICE = 6                                   # inter_r, psum_r, gsum_r, inter_k, psum_k, gsum_k
_PER_LABEL = 5                                # kc, tc, s2*T, s2*K, s2*T*K
_N_STATS = _N_DICE + _PER_LABEL * MAX_LABELS  # 46
NROWS = _N_STATS * 8                          # 8 sublane rows kept per statistic (collapse in epilogue)

NEG_LOGIT = -1e4      # sigmoid(NEG_LOGIT) == 0 exactly; only used when padding is unavoidable

# TODO(synk): ohem_batch (masked_select + sort with data-dependent sizes) is computed in the
# PyTorch forward but its result is never consumed by TextDiceLoss, so it cannot affect any
# output; it is omitted here.


def _pan_stats_kernel(nk_ref, pr_ref, rg_ref, pk_ref, kg_ref, tl_ref, kl_ref, ps_ref,
                      out_ref, s2_ref):
    f32 = jnp.float32
    bs = pl.program_id(0)
    t = pl.program_id(1)
    tile_rows = pr_ref.shape[0]
    C = ps_ref.shape[0]
    n_strips = tile_rows // STRIP
    unroll = 2 if (n_strips % 2 == 0) else 1

    @pl.when(t == 0)
    def _init():
        out_ref[...] = jnp.zeros_like(out_ref)

    def strip_slice(i):
        off = pl.multiple_of(i * STRIP, STRIP)
        return pl.ds(off, STRIP)

    def fold8(a):  # (STRIP, 128) -> (8, 128) sublane-aligned partial fold
        r = a[0:8, :]
        for s in range(8, STRIP, 8):
            r = r + a[s:s + 8, :]
        return r

    zero = jnp.zeros((STRIP, LANES), f32)

    # ---- pass 1: dice statistics + per-pixel similarity squared-norm (s2) ----
    def dice_body(i, accs):
        a_ir, a_pr, a_gr, a_ik, a_pk, a_gk = accs
        sl = strip_slice(i)
        pr = pr_ref[sl, :].astype(f32)
        rg = rg_ref[sl, :].astype(f32)
        sig_r = jax.nn.sigmoid(pr)              # EUP; padded logits are -1e4 -> sigmoid == 0
        a_ir = a_ir + sig_r * rg
        a_pr = a_pr + sig_r * sig_r
        a_gr = a_gr + rg                         # GT masks are binary, so rg*rg == rg
        pk = pk_ref[sl, :].astype(f32)
        kg = kg_ref[sl, :].astype(f32)
        sig_k = jax.nn.sigmoid(pk)
        a_ik = a_ik + sig_k * kg
        a_pk = a_pk + sig_k * sig_k
        a_gk = a_gk + kg
        s2 = jnp.zeros((STRIP, LANES), f32)
        for c in range(C):                       # leading-axis reduce: pure elementwise vreg adds
            pc = ps_ref[c, sl, :].astype(f32)
            s2 = s2 + pc * pc
        s2_ref[sl, :] = s2                       # single materialized temporary, reused by all labels
        return (a_ir, a_pr, a_gr, a_ik, a_pk, a_gk)

    accs = lax.fori_loop(0, n_strips, dice_body, (zero,) * 6, unroll=unroll)
    dice8 = jnp.concatenate([fold8(a) for a in accs], axis=0)      # (48, 128)
    out_ref[pl.ds(0, _N_DICE * 8), :] += dice8

    # ---- pass 2: per-label statistics, skipped for labels beyond the scene's kernel max ----
    nk_b = nk_ref[bs]

    for li in range(MAX_LABELS):
        @pl.when(li + 1 <= nk_b)
        def _label(li=li):
            lab = float(li + 1)

            def body(i, laccs):
                a_kc, a_tc, a_s2t, a_s2k, a_s2tk = laccs
                sl = strip_slice(i)
                tm = (tl_ref[sl, :].astype(f32) == lab).astype(f32)
                km = (kl_ref[sl, :].astype(f32) == lab).astype(f32)
                s2 = s2_ref[sl, :]
                s2t = s2 * tm
                a_kc = a_kc + km
                a_tc = a_tc + tm
                a_s2t = a_s2t + s2t
                a_s2k = a_s2k + s2 * km
                a_s2tk = a_s2tk + s2t * km
                return (a_kc, a_tc, a_s2t, a_s2k, a_s2tk)

            laccs = lax.fori_loop(0, n_strips, body, (zero,) * 5, unroll=unroll)
            lab8 = jnp.concatenate([fold8(a) for a in laccs], axis=0)  # (40, 128)
            out_ref[pl.ds((_N_DICE + li * _PER_LABEL) * 8, _PER_LABEL * 8), :] += lab8


def _choose_layout(n_rows, split):
    """Pick (tile_rows, n_tiles) per batch-chunk; prefer exact tiling (no host-side pad)."""
    rows_ps_min = -(-n_rows // split)
    if rows_ps_min <= MAX_TILE_ROWS:
        tile_rows = -(-rows_ps_min // STRIP) * STRIP
        return max(tile_rows, STRIP), 1
    d = MAX_TILE_ROWS
    while d >= MIN_TILE_ROWS:
        if rows_ps_min % d == 0:                 # exact divisor, multiple of STRIP -> no pad
            return d, rows_ps_min // d
        d -= STRIP
    tile_rows = MAX_TILE_ROWS                    # fallback: pad the ragged tail
    return tile_rows, -(-rows_ps_min // tile_rows)


def pan_loss(pred_regions, regions_gt, pred_kernels, kernels_gt,
             pred_similarities, text_mask_ndi_labels, kernel_mask_ndi_labels):
    f32 = jnp.float32
    B = pred_regions.shape[0]
    C = pred_similarities.shape[1]
    N = int(np.prod(pred_regions.shape[1:]))

    # megacore balance (v7x): fold a 2-way row split into the parallel axis when B is odd.
    split = 2 if (B % 2 == 1) else 1
    n_rows = -(-N // LANES)
    tile_rows, n_tiles = _choose_layout(n_rows, split)
    rows_total = split * n_tiles * tile_rows
    total = rows_total * LANES
    pad = total - N

    # dtype shrink (HBM traffic): predictions -> bf16 (compute widened to f32 in-kernel),
    # binary GT masks and integer instance-label maps -> int8.
    pr2 = pred_regions.reshape(B, -1).astype(jnp.bfloat16)
    pk2 = pred_kernels.reshape(B, -1).astype(jnp.bfloat16)
    ps2 = pred_similarities.reshape(B, C, -1).astype(jnp.bfloat16)
    rg2 = regions_gt.reshape(B, -1).astype(jnp.int8)
    kg2 = kernels_gt.reshape(B, -1).astype(jnp.int8)
    tl2 = text_mask_ndi_labels.reshape(B, -1).astype(jnp.int8)
    kl2 = kernel_mask_ndi_labels.reshape(B, -1).astype(jnp.int8)

    if pad:
        # Only taken when exact tiling is impossible; prediction pads use a large negative
        # logit (sigmoid == 0), every other stream pads with 0, so padding is inert.
        pr2 = jnp.pad(pr2, ((0, 0), (0, pad)), constant_values=NEG_LOGIT)
        pk2 = jnp.pad(pk2, ((0, 0), (0, pad)), constant_values=NEG_LOGIT)
        ps2 = jnp.pad(ps2, ((0, 0), (0, 0), (0, pad)))
        rg2 = jnp.pad(rg2, ((0, 0), (0, pad)))
        kg2 = jnp.pad(kg2, ((0, 0), (0, pad)))
        tl2 = jnp.pad(tl2, ((0, 0), (0, pad)))
        kl2 = jnp.pad(kl2, ((0, 0), (0, pad)))

    pr2 = pr2.reshape(B, rows_total, LANES)
    pk2 = pk2.reshape(B, rows_total, LANES)
    rg2 = rg2.reshape(B, rows_total, LANES)
    kg2 = kg2.reshape(B, rows_total, LANES)
    tl2 = tl2.reshape(B, rows_total, LANES)
    kl2 = kl2.reshape(B, rows_total, LANES)
    ps2 = ps2.reshape(B, C, rows_total, LANES)

    # num_kernels per batch element == K_labels.max() (matches the reference exactly),
    # clipped to the static MAX_LABELS bound; also prefetched into SMEM to skip dead labels.
    nk_f = jnp.clip(jnp.max(kernel_mask_ndi_labels.reshape(B, -1).astype(f32), axis=1),
                    0.0, float(MAX_LABELS))
    nk_i = nk_f.astype(jnp.int32)
    nk_smem = jnp.repeat(nk_i, split) if split > 1 else nk_i

    if split == 1:
        map_idx = lambda b, t, nk: (b, t, 0)
        sim_idx = lambda b, t, nk: (b, 0, t, 0)
    else:
        map_idx = lambda b, t, nk: (b // split, (b % split) * n_tiles + t, 0)
        sim_idx = lambda b, t, nk: (b // split, 0, (b % split) * n_tiles + t, 0)
    out_idx = lambda b, t, nk: (b, 0, 0)

    map_spec = pl.BlockSpec((None, tile_rows, LANES), map_idx)
    sim_spec = pl.BlockSpec((None, C, tile_rows, LANES), sim_idx)
    out_spec = pl.BlockSpec((None, NROWS, LANES), out_idx)

    stats = pl.pallas_call(
        _pan_stats_kernel,
        out_shape=jax.ShapeDtypeStruct((B * split, NROWS, LANES), f32),
        grid_spec=pltpu.PrefetchScalarGridSpec(
            num_scalar_prefetch=1,
            grid=(B * split, n_tiles),
            in_specs=[map_spec, map_spec, map_spec, map_spec, map_spec, map_spec, sim_spec],
            out_specs=out_spec,
            scratch_shapes=[pltpu.VMEM((tile_rows, LANES), f32)],
        ),
        compiler_params=pltpu.CompilerParams(
            dimension_semantics=("parallel", "arbitrary"),
            vmem_limit_bytes=48 * 1024 * 1024),   # safe on v7x (64 MiB physical) and below
    )(nk_smem, pr2, rg2, pk2, kg2, tl2, kl2, ps2)

    # ---- plain-JAX epilogue on the tiny (B, 46) statistics ----
    S = stats.reshape(B, split, NROWS, LANES).sum(axis=(1, 3))   # collapse split + lanes
    S = S.reshape(B, _N_STATS, 8).sum(axis=-1)                   # collapse 8-row partials

    inter_r, psum_r, gsum_r = S[:, 0], S[:, 1], S[:, 2]
    inter_k, psum_k, gsum_k = S[:, 3], S[:, 4], S[:, 5]
    lab_stats = S[:, _N_DICE:].reshape(B, MAX_LABELS, _PER_LABEL)
    kc, tc, s2t, s2k, s2tk = (lab_stats[:, :, i] for i in range(_PER_LABEL))

    dice_r = (2.0 * inter_r + DICE_EPS) / ((psum_r + DICE_EPS) + (gsum_r + DICE_EPS))
    loss_regions = jnp.sum(1.0 - dice_r)
    dice_k = (2.0 * inter_k + DICE_EPS) / ((psum_k + DICE_EPS) + (gsum_k + DICE_EPS))
    loss_kernel = jnp.sum(1.0 - dice_k)

    label_ids = jnp.arange(1, MAX_LABELS + 1, dtype=f32)
    valid = label_ids[None, :] <= nk_f[:, None]                  # labels 1..num_kernels

    # Aggregation: ||F*T_i - F*K_i/(|K_i|+1)||_F^2 = s2t - 2*s2tk/(kc+1) + s2k/(kc+1)^2.
    # NOTE: torch.max(norm, 0)[0] on a 0-d tensor in the reference is a no-op (not a relu).
    inv_k1 = 1.0 / (kc + 1.0)
    agg2 = jnp.maximum(s2t - 2.0 * inv_k1 * s2tk + inv_k1 * inv_k1 * s2k, 0.0)
    fro_agg = jnp.sqrt(jnp.where(valid, agg2, 1.0))              # mask before sqrt (no NaN grads)
    agg_terms = jnp.log((fro_agg - SIGMA_AGG) ** 2 + 1.0) / (tc + 1.0)
    loss_aggregation = jnp.sum(jnp.where(valid, agg_terms, 0.0))

    # Discrimination over pairs i < j <= num_kernels; kernel masks of distinct labels are
    # disjoint, so ||F*K_i/c_i - F*K_j/c_j||_F^2 == E_i + E_j exactly.
    dis_e = s2k / ((kc + 0.001) ** 2)
    ii = label_ids[:, None]
    jj = label_ids[None, :]
    pair_mask = (ii < jj)[None, :, :] & valid[:, None, :]
    pair2 = dis_e[:, :, None] + dis_e[:, None, :]
    fro_pair = jnp.sqrt(jnp.where(pair_mask, pair2, 1.0))        # mask before sqrt
    pair_terms = jnp.log((SIGMA_DIS - fro_pair) ** 2 + 1.0)
    pair_sum = jnp.sum(jnp.where(pair_mask, pair_terms, 0.0), axis=(1, 2))
    denom = jnp.maximum(nk_f * (nk_f - 1.0), 1.0)
    loss_discrimination = jnp.sum(jnp.where(nk_f > 1.0, pair_sum / denom, 0.0))

    loss = (loss_regions + ALPHA * loss_kernel
            + BETA * (loss_aggregation + loss_discrimination))
    return dict(loss=loss, loss_regions=loss_regions, loss_kernel=loss_kernel,
                loss_aggregation=loss_aggregation,
                loss_discrimination=loss_discrimination)


if __name__ == "__main__":
    B, C, H, W = 2, 4, 16, 16
    key = jax.random.PRNGKey(0)
    k1, k2, k3 = jax.random.split(key, 3)
    pred_regions = jax.random.normal(k1, (B, H, W), dtype=jnp.float32)
    pred_kernels = jax.random.normal(k2, (B, H, W), dtype=jnp.float32)
    pred_similarities = jax.random.normal(k3, (B, C, H, W), dtype=jnp.float32)

    # Deterministic synthetic instance-label maps (3 text instances, each with a shrunken
    # kernel region), integer-valued labels stored as float32 like the reference.
    text_labels_np = np.zeros((B, H, W), np.float32)
    kernel_labels_np = np.zeros((B, H, W), np.float32)
    for b in range(B):
        text_labels_np[b, 1:6, 1:6] = 1.0;    kernel_labels_np[b, 2:5, 2:5] = 1.0
        text_labels_np[b, 1:6, 9:14] = 2.0;   kernel_labels_np[b, 2:5, 10:13] = 2.0
        text_labels_np[b, 9:14, 2:12] = 3.0;  kernel_labels_np[b, 10:13, 4:10] = 3.0
    text_labels = jnp.asarray(text_labels_np)
    kernel_labels = jnp.asarray(kernel_labels_np)
    regions_gt = (text_labels > 0).astype(jnp.float32)
    kernels_gt = (kernel_labels > 0).astype(jnp.float32)

    fn = jax.jit(pan_loss)
    out = jax.block_until_ready(fn(pred_regions, regions_gt, pred_kernels, kernels_gt,
                                   pred_similarities, text_labels, kernel_labels))
    assert all(bool(jnp.isfinite(v)) for v in out.values())

    # Also exercise the odd-batch megacore-split path (B=1 -> split=2 row split).
    out1 = jax.block_until_ready(fn(pred_regions[:1], regions_gt[:1], pred_kernels[:1],
                                    kernels_gt[:1], pred_similarities[:1],
                                    text_labels[:1], kernel_labels[:1]))
    assert all(bool(jnp.isfinite(v)) for v in out1.values())

    print("KERNEL_OK")
</pallas_src>

<mosaic_0001>
module attributes {stable_mosaic.version = 11 : i64} {
  func.func @_pan_stats_kernel(%arg0: i32, %arg1: i32, %arg2: memref<2xi32, #tpu.memory_space<smem>>, %arg3: memref<1x32x128xbf16, #tpu.memory_space<vmem>>, %arg4: memref<1x32x128xi8, #tpu.memory_space<vmem>>, %arg5: memref<1x32x128xbf16, #tpu.memory_space<vmem>>, %arg6: memref<1x32x128xi8, #tpu.memory_space<vmem>>, %arg7: memref<1x32x128xi8, #tpu.memory_space<vmem>>, %arg8: memref<1x32x128xi8, #tpu.memory_space<vmem>>, %arg9: memref<1x4x32x128xbf16, #tpu.memory_space<vmem>>, %arg10: memref<1x368x128xf32, #tpu.memory_space<vmem>>, %arg11: memref<32x128xf32, #tpu.memory_space<vmem>>) attributes {dimension_semantics = [#tpu.dimension_semantics<parallel>, #tpu.dimension_semantics<arbitrary>], iteration_bounds = array<i64: 2, 1>, scalar_prefetch = 1 : i64, scratch_operands = 1 : i64, tpu.core_type = #tpu.core_type<tc>, window_params = [{transform_indices = @transform_0, window_bounds = array<i64: 1, 32, 128>}, {transform_indices = @transform_1, window_bounds = array<i64: 1, 32, 128>}, {transform_indices = @transform_2, window_bounds = array<i64: 1, 32, 128>}, {transform_indices = @transform_3, window_bounds = array<i64: 1, 32, 128>}, {transform_indices = @transform_4, window_bounds = array<i64: 1, 32, 128>}, {transform_indices = @transform_5, window_bounds = array<i64: 1, 32, 128>}, {transform_indices = @transform_6, window_bounds = array<i64: 1, 4, 32, 128>}, {transform_indices = @transform_7, window_bounds = array<i64: 1, 368, 128>}]} {
    %c0_i32 = arith.constant 0 : i32
    %0 = arith.cmpi eq, %arg1, %c0_i32 : i32
    %1 = arith.extui %0 : i1 to i32
    %c0_i32_0 = arith.constant 0 : i32
    %2 = arith.cmpi ne, %1, %c0_i32_0 : i32
    scf.if %2 {
      %cst_37 = arith.constant 0.000000e+00 : f32
      %144 = vector.broadcast %cst_37 : f32 to vector<368x128xf32>
      %c0_38 = arith.constant 0 : index
      %c0_39 = arith.constant 0 : index
      %c0_40 = arith.constant 0 : index
      %145 = vector.load %arg10[%c0_38, %c0_39, %c0_40] : memref<1x368x128xf32, #tpu.memory_space<vmem>>, vector<1x368x128xf32>
      %146 = vector.shape_cast %145 : vector<1x368x128xf32> to vector<368x128xf32>
      %147 = vector.shape_cast %144 : vector<368x128xf32> to vector<1x368x128xf32>
      tpu.vector_store %arg10[%c0_38, %c0_39, %c0_40], %147 {strides = array<i32>} : memref<1x368x128xf32, #tpu.memory_space<vmem>>, vector<1x368x128xf32>,
    } else {
    }
    %cst = arith.constant 0.000000e+00 : f32
    %3 = vector.broadcast %cst : f32 to vector<32x128xf32>
    %c0_i32_1 = arith.constant 0 : i32
    %c32_i32 = arith.constant 32 : i32
    %4 = arith.muli %c0_i32_1, %c32_i32 : i32
    %5 = tpu.assume_multiple %4, 32 : i32
    %c0 = arith.constant 0 : index
    %6 = arith.index_cast %5 : i32 to index
    %c0_2 = arith.constant 0 : index
    %7 = vector.load %arg3[%c0, %6, %c0_2] : memref<1x32x128xbf16, #tpu.memory_space<vmem>>, vector<1x32x128xbf16>
    %8 = vector.shape_cast %7 : vector<1x32x128xbf16> to vector<32x128xbf16>
    %9 = arith.extf %8 : vector<32x128xbf16> to vector<32x128xf32>
    %c0_3 = arith.constant 0 : index
    %10 = arith.index_cast %5 : i32 to index
    %c0_4 = arith.constant 0 : index
    %11 = vector.load %arg4[%c0_3, %10, %c0_4] : memref<1x32x128xi8, #tpu.memory_space<vmem>>, vector<1x32x128xi8>
    %12 = vector.shape_cast %11 : vector<1x32x128xi8> to vector<32x128xi8>
    %13 = arith.sitofp %12 : vector<32x128xi8> to vector<32x128xf32>
    %14 = arith.negf %9 : vector<32x128xf32>
    %15 = math.exp %14 : vector<32x128xf32>
    %cst_5 = arith.constant 1.000000e+00 : f32
    %16 = vector.broadcast %cst_5 : f32 to vector<32x128xf32>
    %17 = arith.addf %16, %15 : vector<32x128xf32>
    %18 = arith.divf %16, %17 : vector<32x128xf32>
    %19 = arith.mulf %18, %13 : vector<32x128xf32>
    %20 = arith.addf %3, %19 : vector<32x128xf32>
    %21 = arith.mulf %18, %18 : vector<32x128xf32>
    %22 = arith.addf %3, %21 : vector<32x128xf32>
    %23 = arith.addf %3, %13 : vector<32x128xf32>
    %c0_6 = arith.constant 0 : index
    %24 = arith.index_cast %5 : i32 to index
    %c0_7 = arith.constant 0 : index
    %25 = vector.load %arg5[%c0_6, %24, %c0_7] : memref<1x32x128xbf16, #tpu.memory_space<vmem>>, vector<1x32x128xbf16>
    %26 = vector.shape_cast %25 : vector<1x32x128xbf16> to vector<32x128xbf16>
    %27 = arith.extf %26 : vector<32x128xbf16> to vector<32x128xf32>
    %c0_8 = arith.constant 0 : index
    %28 = arith.index_cast %5 : i32 to index
    %c0_9 = arith.constant 0 : index
    %29 = vector.load %arg6[%c0_8, %28, %c0_9] : memref<1x32x128xi8, #tpu.memory_space<vmem>>, vector<1x32x128xi8>
    %30 = vector.shape_cast %29 : vector<1x32x128xi8> to vector<32x128xi8>
    %31 = arith.sitofp %30 : vector<32x128xi8> to vector<32x128xf32>
    %32 = arith.negf %27 : vector<32x128xf32>
    %33 = math.exp %32 : vector<32x128xf32>
    %cst_10 = arith.constant 1.000000e+00 : f32
    %34 = vector.broadcast %cst_10 : f32 to vector<32x128xf32>
    %35 = arith.addf %34, %33 : vector<32x128xf32>
    %36 = arith.divf %34, %35 : vector<32x128xf32>
    %37 = arith.mulf %36, %31 : vector<32x128xf32>
    %38 = arith.addf %3, %37 : vector<32x128xf32>
    %39 = arith.mulf %36, %36 : vector<32x128xf32>
    %40 = arith.addf %3, %39 : vector<32x128xf32>
    %41 = arith.addf %3, %31 : vector<32x128xf32>
    %cst_11 = arith.constant 0.000000e+00 : f32
    %42 = vector.broadcast %cst_11 : f32 to vector<32x128xf32>
    %c0_12 = arith.constant 0 : index
    %c0_13 = arith.constant 0 : index
    %43 = arith.index_cast %5 : i32 to index
    %c0_14 = arith.constant 0 : index
    %44 = vector.load %arg9[%c0_12, %c0_13, %43, %c0_14] : memref<1x4x32x128xbf16, #tpu.memory_space<vmem>>, vector<1x1x32x128xbf16>
    %45 = vector.shape_cast %44 : vector<1x1x32x128xbf16> to vector<32x128xbf16>
    %46 = arith.extf %45 : vector<32x128xbf16> to vector<32x128xf32>
    %47 = arith.mulf %46, %46 : vector<32x128xf32>
    %48 = arith.addf %42, %47 : vector<32x128xf32>
    %c0_15 = arith.constant 0 : index
    %c1 = arith.constant 1 : index
    %49 = arith.index_cast %5 : i32 to index
    %c0_16 = arith.constant 0 : index
    %50 = vector.load %arg9[%c0_15, %c1, %49, %c0_16] : memref<1x4x32x128xbf16, #tpu.memory_space<vmem>>, vector<1x1x32x128xbf16>
    %51 = vector.shape_cast %50 : vector<1x1x32x128xbf16> to vector<32x128xbf16>
    %52 = arith.extf %51 : vector<32x128xbf16> to vector<32x128xf32>
    %53 = arith.mulf %52, %52 : vector<32x128xf32>
    %54 = arith.addf %48, %53 : vector<32x128xf32>
    %c0_17 = arith.constant 0 : index
    %c2 = arith.constant 2 : index
    %55 = arith.index_cast %5 : i32 to index
    %c0_18 = arith.constant 0 : index
    %56 = vector.load %arg9[%c0_17, %c2, %55, %c0_18] : memref<1x4x32x128xbf16, #tpu.memory_space<vmem>>, vector<1x1x32x128xbf16>
    %57 = vector.shape_cast %56 : vector<1x1x32x128xbf16> to vector<32x128xbf16>
    %58 = arith.extf %57 : vector<32x128xbf16> to vector<32x128xf32>
    %59 = arith.mulf %58, %58 : vector<32x128xf32>
    %60 = arith.addf %54, %59 : vector<32x128xf32>
    %c0_19 = arith.constant 0 : index
    %c3 = arith.constant 3 : index
    %61 = arith.index_cast %5 : i32 to index
    %c0_20 = arith.constant 0 : index
    %62 = vector.load %arg9[%c0_19, %c3, %61, %c0_20] : memref<1x4x32x128xbf16, #tpu.memory_space<vmem>>, vector<1x1x32x128xbf16>
    %63 = vector.shape_cast %62 : vector<1x1x32x128xbf16> to vector<32x128xbf16>
    %64 = arith.extf %63 : vector<32x128xbf16> to vector<32x128xf32>
    %65 = arith.mulf %64, %64 : vector<32x128xf32>
    %66 = arith.addf %60, %65 : vector<32x128xf32>
    %67 = arith.index_cast %5 : i32 to index
    %c0_21 = arith.constant 0 : index
    %68 = vector.load %arg11[%67, %c0_21] : memref<32x128xf32, #tpu.memory_space<vmem>>, vector<32x128xf32>
    tpu.vector_store %arg11[%67, %c0_21], %66 {strides = array<i32>} : memref<32x128xf32, #tpu.memory_space<vmem>>, vector<32x128xf32>,
    %c1_i32 = arith.constant 1 : i32
    %69 = vector.extract_strided_slice %20 {offsets = [0, 0], sizes = [8, 128], strides = [1, 1]} : vector<32x128xf32> to vector<8x128xf32>
    %70 = vector.extract_strided_slice %20 {offsets = [8, 0], sizes = [8, 128], strides = [1, 1]} : vector<32x128xf32> to vector<8x128xf32>
    %71 = arith.addf %69, %70 : vector<8x128xf32>
    %72 = vector.extract_strided_slice %20 {offsets = [16, 0], sizes = [8, 128], strides = [1, 1]} : vector<32x128xf32> to vector<8x128xf32>
    %73 = arith.addf %71, %72 : vector<8x128xf32>
    %74 = vector.extract_strided_slice %20 {offsets = [24, 0], sizes = [8, 128], strides = [1, 1]} : vector<32x128xf32> to vector<8x128xf32>
    %75 = arith.addf %73, %74 : vector<8x128xf32>
    %76 = vector.extract_strided_slice %22 {offsets = [0, 0], sizes = [8, 128], strides = [1, 1]} : vector<32x128xf32> to vector<8x128xf32>
    %77 = vector.extract_strided_slice %22 {offsets = [8, 0], sizes = [8, 128], strides = [1, 1]} : vector<32x128xf32> to vector<8x128xf32>
    %78 = arith.addf %76, %77 : vector<8x128xf32>
    %79 = vector.extract_strided_slice %22 {offsets = [16, 0], sizes = [8, 128], strides = [1, 1]} : vector<32x128xf32> to vector<8x128xf32>
    %80 = arith.addf %78, %79 : vector<8x128xf32>
    %81 = vector.extract_strided_slice %22 {offsets = [24, 0], sizes = [8, 128], strides = [1, 1]} : vector<32x128xf32> to vector<8x128xf32>
    %82 = arith.addf %80, %81 : vector<8x128xf32>
    %83 = vector.extract_strided_slice %23 {offsets = [0, 0], sizes = [8, 128], strides = [1, 1]} : vector<32x128xf32> to vector<8x128xf32>
    %84 = vector.extract_strided_slice %23 {offsets = [8, 0], sizes = [8, 128], strides = [1, 1]} : vector<32x128xf32> to vector<8x128xf32>
    %85 = arith.addf %83, %84 : vector<8x128xf32>
    %86 = vector.extract_strided_slice %23 {offsets = [16, 0], sizes = [8, 128], strides = [1, 1]} : vector<32x128xf32> to vector<8x128xf32>
    %87 = arith.addf %85, %86 : vector<8x128xf32>
    %88 = vector.extract_strided_slice %23 {offsets = [24, 0], sizes = [8, 128], strides = [1, 1]} : vector<32x128xf32> to vector<8x128xf32>
    %89 = arith.addf %87, %88 : vector<8x128xf32>
    %90 = vector.extract_strided_slice %38 {offsets = [0, 0], sizes = [8, 128], strides = [1, 1]} : vector<32x128xf32> to vector<8x128xf32>
    %91 = vector.extract_strided_slice %38 {offsets = [8, 0], sizes = [8, 128], strides = [1, 1]} : vector<32x128xf32> to vector<8x128xf32>
    %92 = arith.addf %90, %91 : vector<8x128xf32>
    %93 = vector.extract_strided_slice %38 {offsets = [16, 0], sizes = [8, 128], strides = [1, 1]} : vector<32x128xf32> to vector<8x128xf32>
    %94 = arith.addf %92, %93 : vector<8x128xf32>
    %95 = vector.extract_strided_slice %38 {offsets = [24, 0], sizes = [8, 128], strides = [1, 1]} : vector<32x128xf32> to vector<8x128xf32>
    %96 = arith.addf %94, %95 : vector<8x128xf32>
    %97 = vector.extract_strided_slice %40 {offsets = [0, 0], sizes = [8, 128], strides = [1, 1]} : vector<32x128xf32> to vector<8x128xf32>
    %98 = vector.extract_strided_slice %40 {offsets = [8, 0], sizes = [8, 128], strides = [1, 1]} : vector<32x128xf32> to vector<8x128xf32>
    %99 = arith.addf %97, %98 : vector<8x128xf32>
    %100 = vector.extract_strided_slice %40 {offsets = [16, 0], sizes = [8, 128], strides = [1, 1]} : vector<32x128xf32> to vector<8x128xf32>
    %101 = arith.addf %99, %100 : vector<8x128xf32>
    %102 = vector.extract_strided_slice %40 {offsets = [24, 0], sizes = [8, 128], strides = [1, 1]} : vector<32x128xf32> to vector<8x128xf32>
    %103 = arith.addf %101, %102 : vector<8x128xf32>
    %104 = vector.extract_strided_slice %41 {offsets = [0, 0], sizes = [8, 128], strides = [1, 1]} : vector<32x128xf32> to vector<8x128xf32>
    %105 = vector.extract_strided_slice %41 {offsets = [8, 0], sizes = [8, 128], strides = [1, 1]} : vector<32x128xf32> to vector<8x128xf32>
    %106 = arith.addf %104, %105 : vector<8x128xf32>
    %107 = vector.extract_strided_slice %41 {offsets = [16, 0], sizes = [8, 128], strides = [1, 1]} : vector<32x128xf32> to vector<8x128xf32>
    %108 = arith.addf %106, %107 : vector<8x128xf32>
    %109 = vector.extract_strided_slice %41 {offsets = [24, 0], sizes = [8, 128], strides = [1, 1]} : vector<32x128xf32> to vector<8x128xf32>
    %110 = arith.addf %108, %109 : vector<8x128xf32>
    %111 = tpu.concatenate %75, %82, %89, %96, %103, %110 in 0 : vector<8x128xf32>, vector<8x128xf32>, vector<8x128xf32>, vector<8x128xf32>, vector<8x128xf32>, vector<8x128xf32> -> vector<48x128xf32>
    %c0_22 = arith.constant 0 : index
    %c0_23 = arith.constant 0 : index
    %c0_24 = arith.constant 0 : index
    %112 = vector.load %arg10[%c0_22, %c0_23, %c0_24] : memref<1x368x128xf32, #tpu.memory_space<vmem>>, vector<1x48x128xf32>
    %113 = vector.shape_cast %112 : vector<1x48x128xf32> to vector<48x128xf32>
    %114 = arith.addf %113, %111 : vector<48x128xf32>
    %c0_25 = arith.constant 0 : index
    %c0_26 = arith.constant 0 : index
    %c0_27 = arith.constant 0 : index
    %115 = vector.load %arg10[%c0_25, %c0_26, %c0_27] : memref<1x368x128xf32, #tpu.memory_space<vmem>>, vector<1x48x128xf32>
    %116 = vector.shape_cast %115 : vector<1x48x128xf32> to vector<48x128xf32>
    %117 = vector.shape_cast %114 : vector<48x128xf32> to vector<1x48x128xf32>
    tpu.vector_store %arg10[%c0_25, %c0_26, %c0_27], %117 {strides = array<i32>} : memref<1x368x128xf32, #tpu.memory_space<vmem>>, vector<1x48x128xf32>,
    %118 = arith.index_cast %arg0 : i32 to index
    %119 = memref.load %arg2[%118] : memref<2xi32, #tpu.memory_space<smem>>
    %c1_i32_28 = arith.constant 1 : i32
    %120 = arith.cmpi sge, %119, %c1_i32_28 : i32
    %121 = arith.extui %120 : i1 to i32
    %c0_i32_29 = arith.constant 0 : i32
    %122 = arith.cmpi ne, %121, %c0_i32_29 : i32
    scf.if %122 {
      %c0_i32_37 = arith.constant 0 : i32
      %c32_i32_38 = arith.constant 32 : i32
      %144 = arith.muli %c0_i32_37, %c32_i32_38 : i32
      %145 = tpu.assume_multiple %144, 32 : i32
      %c0_39 = arith.constant 0 : index
      %146 = arith.index_cast %145 : i32 to index
      %c0_40 = arith.constant 0 : index
      %147 = vector.load %arg7[%c0_39, %146, %c0_40] : memref<1x32x128xi8, #tpu.memory_space<vmem>>, vector<1x32x128xi8>
      %148 = vector.shape_cast %147 : vector<1x32x128xi8> to vector<32x128xi8>
      %149 = arith.sitofp %148 : vector<32x128xi8> to vector<32x128xf32>
      %cst_41 = arith.constant 1.000000e+00 : f32
      %150 = vector.broadcast %cst_41 : f32 to vector<32x128xf32>
      %151 = arith.cmpf oeq, %149, %150 : vector<32x128xf32>
      %152 = arith.extui %151 : vector<32x128xi1> to vector<32x128xi32>
      %153 = arith.sitofp %152 : vector<32x128xi32> to vector<32x128xf32>
      %c0_42 = arith.constant 0 : index
      %154 = arith.index_cast %145 : i32 to index
      %c0_43 = arith.constant 0 : index
      %155 = vector.load %arg8[%c0_42, %154, %c0_43] : memref<1x32x128xi8, #tpu.memory_space<vmem>>, vector<1x32x128xi8>
      %156 = vector.shape_cast %155 : vector<1x32x128xi8> to vector<32x128xi8>
      %157 = arith.sitofp %156 : vector<32x128xi8> to vector<32x128xf32>
      %cst_44 = arith.constant 1.000000e+00 : f32
      %158 = vector.broadcast %cst_44 : f32 to vector<32x128xf32>
      %159 = arith.cmpf oeq, %157, %158 : vector<32x128xf32>
      %160 = arith.extui %159 : vector<32x128xi1> to vector<32x128xi32>
      %161 = arith.sitofp %160 : vector<32x128xi32> to vector<32x128xf32>
      %162 = arith.index_cast %145 : i32 to index
      %c0_45 = arith.constant 0 : index
      %163 = vector.load %arg11[%162, %c0_45] : memref<32x128xf32, #tpu.memory_space<vmem>>, vector<32x128xf32>
      %164 = arith.mulf %163, %153 : vector<32x128xf32>
      %165 = arith.addf %3, %161 : vector<32x128xf32>
      %166 = arith.addf %3, %153 : vector<32x128xf32>
      %167 = arith.addf %3, %164 : vector<32x128xf32>
      %168 = arith.mulf %163, %161 : vector<32x128xf32>
      %169 = arith.addf %3, %168 : vector<32x128xf32>
      %170 = arith.mulf %164, %161 : vector<32x128xf32>
      %171 = arith.addf %3, %170 : vector<32x128xf32>
      %c1_i32_46 = arith.constant 1 : i32
      %172 = vector.extract_strided_slice %165 {offsets = [0, 0], sizes = [8, 128], strides = [1, 1]} : vector<32x128xf32> to vector<8x128xf32>
      %173 = vector.extract_strided_slice %165 {offsets = [8, 0], sizes = [8, 128], strides = [1, 1]} : vector<32x128xf32> to vector<8x128xf32>
      %174 = arith.addf %172, %173 : vector<8x128xf32>
      %175 = vector.extract_strided_slice %165 {offsets = [16, 0], sizes = [8, 128], strides = [1, 1]} : vector<32x128xf32> to vector<8x128xf32>
      %176 = arith.addf %174, %175 : vector<8x128xf32>
      %177 = vector.extract_strided_slice %165 {offsets = [24, 0], sizes = [8, 128], strides = [1, 1]} : vector<32x128xf32> to vector<8x128xf32>
      %178 = arith.addf %176, %177 : vector<8x128xf32>
      %179 = vector.extract_strided_slice %166 {offsets = [0, 0], sizes = [8, 128], strides = [1, 1]} : vector<32x128xf32> to vector<8x128xf32>
      %180 = vector.extract_strided_slice %166 {offsets = [8, 0], sizes = [8, 128], strides = [1, 1]} : vector<32x128xf32> to vector<8x128xf32>
      %181 = arith.addf %179, %180 : vector<8x128xf32>
      %182 = vector.extract_strided_slice %166 {offsets = [16, 0], sizes = [8, 128], strides = [1, 1]} : vector<32x128xf32> to vector<8x128xf32>
      %183 = arith.addf %181, %182 : vector<8x128xf32>
      %184 = vector.extract_strided_slice %166 {offsets = [24, 0], sizes = [8, 128], strides = [1, 1]} : vector<32x128xf32> to vector<8x128xf32>
      %185 = arith.addf %183, %184 : vector<8x128xf32>
      %186 = vector.extract_strided_slice %167 {offsets = [0, 0], sizes = [8, 128], strides = [1, 1]} : vector<32x128xf32> to vector<8x128xf32>
      %187 = vector.extract_strided_slice %167 {offsets = [8, 0], sizes = [8, 128], strides = [1, 1]} : vector<32x128xf32> to vector<8x128xf32>
      %188 = arith.addf %186, %187 : vector<8x128xf32>
      %189 = vector.extract_strided_slice %167 {offsets = [16, 0], sizes = [8, 128], strides = [1, 1]} : vector<32x128xf32> to vector<8x128xf32>
      %190 = arith.addf %188, %189 : vector<8x128xf32>
      %191 = vector.extract_strided_slice %167 {offsets = [24, 0], sizes = [8, 128], strides = [1, 1]} : vector<32x128xf32> to vector<8x128xf32>
      %192 = arith.addf %190, %191 : vector<8x128xf32>
      %193 = vector.extract_strided_slice %169 {offsets = [0, 0], sizes = [8, 128], strides = [1, 1]} : vector<32x128xf32> to vector<8x128xf32>
      %194 = vector.extract_strided_slice %169 {offsets = [8, 0], sizes = [8, 128], strides = [1, 1]} : vector<32x128xf32> to vector<8x128xf32>
      %195 = arith.addf %193, %194 : vector<8x128xf32>
      %196 = vector.extract_strided_slice %169 {offsets = [16, 0], sizes = [8, 128], strides = [1, 1]} : vector<32x128xf32> to vector<8x128xf32>
      %197 = arith.addf %195, %196 : vector<8x128xf32>
      %198 = vector.extract_strided_slice %169 {offsets = [24, 0], sizes = [8, 128], strides = [1, 1]} : vector<32x128xf32> to vector<8x128xf32>
      %199 = arith.addf %197, %198 : vector<8x128xf32>
      %200 = vector.extract_strided_slice %171 {offsets = [0, 0], sizes = [8, 128], strides = [1, 1]} : vector<32x128xf32> to vector<8x128xf32>
      %201 = vector.extract_strided_slice %171 {offsets = [8, 0], sizes = [8, 128], strides = [1, 1]} : vector<32x128xf32> to vector<8x128xf32>
      %202 = arith.addf %200, %201 : vector<8x128xf32>
      %203 = vector.extract_strided_slice %171 {offsets = [16, 0], sizes = [8, 128], strides = [1, 1]} : vector<32x128xf32> to vector<8x128xf32>
      %204 = arith.addf %202, %203 : vector<8x128xf32>
      %205 = vector.extract_strided_slice %171 {offsets = [24, 0], sizes = [8, 128], strides = [1, 1]} : vector<32x128xf32> to vector<8x128xf32>
      %206 = arith.addf %204, %205 : vector<8x128xf32>
      %207 = tpu.concatenate %178, %185, %192, %199, %206 in 0 : vector<8x128xf32>, vector<8x128xf32>, vector<8x128xf32>, vector<8x128xf32>, vector<8x128xf32> -> vector<40x128xf32>
      %c0_47 = arith.constant 0 : index
      %c48 = arith.constant 48 : index
      %c0_48 = arith.constant 0 : index
      %208 = vector.load %arg10[%c0_47, %c48, %c0_48] : memref<1x368x128xf32, #tpu.memory_space<vmem>>, vector<1x40x128xf32>
      %209 = vector.shape_cast %208 : vector<1x40x128xf32> to vector<40x128xf32>
      %210 = arith.addf %209, %207 : vector<40x128xf32>
      %c0_49 = arith.constant 0 : index
      %c48_50 = arith.constant 48 : index
      %c0_51 = arith.constant 0 : index
      %211 = vector.load %arg10[%c0_49, %c48_50, %c0_51] : memref<1x368x128xf32, #tpu.memory_space<vmem>>, vector<1x40x128xf32>
      %212 = vector.shape_cast %211 : vector<1x40x128xf32> to vector<40x128xf32>
      %213 = vector.shape_cast %210 : vector<40x128xf32> to vector<1x40x128xf32>
      tpu.vector_store %arg10[%c0_49, %c48_50, %c0_51], %213 {strides = array<i32>} : memref<1x368x128xf32, #tpu.memory_space<vmem>>, vector<1x40x128xf32>,
    } else {
    }
    %c2_i32 = arith.constant 2 : i32
    %123 = arith.cmpi sge, %119, %c2_i32 : i32
    %124 = arith.extui %123 : i1 to i32
    %c0_i32_30 = arith.constant 0 : i32
    %125 = arith.cmpi ne, %124, %c0_i32_30 : i32
    scf.if %125 {
      %c0_i32_37 = arith.constant 0 : i32
      %c32_i32_38 = arith.constant 32 : i32
      %144 = arith.muli %c0_i32_37, %c32_i32_38 : i32
      %145 = tpu.assume_multiple %144, 32 : i32
      %c0_39 = arith.constant 0 : index
      %146 = arith.index_cast %145 : i32 to index
      %c0_40 = arith.constant 0 : index
      %147 = vector.load %arg7[%c0_39, %146, %c0_40] : memref<1x32x128xi8, #tpu.memory_space<vmem>>, vector<1x32x128xi8>
      %148 = vector.shape_cast %147 : vector<1x32x128xi8> to vector<32x128xi8>
      %149 = arith.sitofp %148 : vector<32x128xi8> to vector<32x128xf32>
      %cst_41 = arith.constant 2.000000e+00 : f32
      %150 = vector.broadcast %cst_41 : f32 to vector<32x128xf32>
      %151 = arith.cmpf oeq, %149, %150 : vector<32x128xf32>
      %152 = arith.extui %151 : vector<32x128xi1> to vector<32x128xi32>
      %153 = arith.sitofp %152 : vector<32x128xi32> to vector<32x128xf32>
      %c0_42 = arith.constant 0 : index
      %154 = arith.index_cast %145 : i32 to index
      %c0_43 = arith.constant 0 : index
      %155 = vector.load %arg8[%c0_42, %154, %c0_43] : memref<1x32x128xi8, #tpu.memory_space<vmem>>, vector<1x32x128xi8>
      %156 = vector.shape_cast %155 : vector<1x32x128xi8> to vector<32x128xi8>
      %157 = arith.sitofp %156 : vector<32x128xi8> to vector<32x128xf32>
      %cst_44 = arith.constant 2.000000e+00 : f32
      %158 = vector.broadcast %cst_44 : f32 to vector<32x128xf32>
      %159 = arith.cmpf oeq, %157, %158 : vector<32x128xf32>
      %160 = arith.extui %159 : vector<32x128xi1> to vector<32x128xi32>
      %161 = arith.sitofp %160 : vector<32x128xi32> to vector<32x128xf32>
      %162 = arith.index_cast %145 : i32 to index
      %c0_45 = arith.constant 0 : index
      %163 = vector.load %arg11[%162, %c0_45] : memref<32x128xf32, #tpu.memory_space<vmem>>, vector<32x128xf32>
      %164 = arith.mulf %163, %153 : vector<32x128xf32>
      %165 = arith.addf %3, %161 : vector<32x128xf32>
      %166 = arith.addf %3, %153 : vector<32x128xf32>
      %167 = arith.addf %3, %164 : vector<32x128xf32>
      %168 = arith.mulf %163, %161 : vector<32x128xf32>
      %169 = arith.addf %3, %168 : vector<32x128xf32>
      %170 = arith.mulf %164, %161 : vector<32x128xf32>
      %171 = arith.addf %3, %170 : vector<32x128xf32>
      %c1_i32_46 = arith.constant 1 : i32
      %172 = vector.extract_strided_slice %165 {offsets = [0, 0], sizes = [8, 128], strides = [1, 1]} : vector<32x128xf32> to vector<8x128xf32>
      %173 = vector.extract_strided_slice %165 {offsets = [8, 0], sizes = [8, 128], strides = [1, 1]} : vector<32x128xf32> to vector<8x128xf32>
      %174 = arith.addf %172, %173 : vector<8x128xf32>
      %175 = vector.extract_strided_slice %165 {offsets = [16, 0], sizes = [8, 128], strides = [1, 1]} : vector<32x128xf32> to vector<8x128xf32>
      %176 = arith.addf %174, %175 : vector<8x128xf32>
      %177 = vector.extract_strided_slice %165 {offsets = [24, 0], sizes = [8, 128], strides = [1, 1]} : vector<32x128xf32> to vector<8x128xf32>
      %178 = arith.addf %176, %177 : vector<8x128xf32>
      %179 = vector.extract_strided_slice %166 {offsets = [0, 0], sizes = [8, 128], strides = [1, 1]} : vector<32x128xf32> to vector<8x128xf32>
      %180 = vector.extract_strided_slice %166 {offsets = [8, 0], sizes = [8, 128], strides = [1, 1]} : vector<32x128xf32> to vector<8x128xf32>
      %181 = arith.addf %179, %180 : vector<8x128xf32>
      %182 = vector.extract_strided_slice %166 {offsets = [16, 0], sizes = [8, 128], strides = [1, 1]} : vector<32x128xf32> to vector<8x128xf32>
      %183 = arith.addf %181, %182 : vector<8x128xf32>
      %184 = vector.extract_strided_slice %166 {offsets = [24, 0], sizes = [8, 128], strides = [1, 1]} : vector<32x128xf32> to vector<8x128xf32>
      %185 = arith.addf %183, %184 : vector<8x128xf32>
      %186 = vector.extract_strided_slice %167 {offsets = [0, 0], sizes = [8, 128], strides = [1, 1]} : vector<32x128xf32> to vector<8x128xf32>
      %187 = vector.extract_strided_slice %167 {offsets = [8, 0], sizes = [8, 128], strides = [1, 1]} : vector<32x128xf32> to vector<8x128xf32>
      %188 = arith.addf %186, %187 : vector<8x128xf32>
      %189 = vector.extract_strided_slice %167 {offsets = [16, 0], sizes = [8, 128], strides = [1, 1]} : vector<32x128xf32> to vector<8x128xf32>
      %190 = arith.addf %188, %189 : vector<8x128xf32>
      %191 = vector.extract_strided_slice %167 {offsets = [24, 0], sizes = [8, 128], strides = [1, 1]} : vector<32x128xf32> to vector<8x128xf32>
      %192 = arith.addf %190, %191 : vector<8x128xf32>
      %193 = vector.extract_strided_slice %169 {offsets = [0, 0], sizes = [8, 128], strides = [1, 1]} : vector<32x128xf32> to vector<8x128xf32>
      %194 = vector.extract_strided_slice %169 {offsets = [8, 0], sizes = [8, 128], strides = [1, 1]} : vector<32x128xf32> to vector<8x128xf32>
      %195 = arith.addf %193, %194 : vector<8x128xf32>
      %196 = vector.extract_strided_slice %169 {offsets = [16, 0], sizes = [8, 128], strides = [1, 1]} : vector<32x128xf32> to vector<8x128xf32>
      %197 = arith.addf %195, %196 : vector<8x128xf32>
      %198 = vector.extract_strided_slice %169 {offsets = [24, 0], sizes = [8, 128], strides = [1, 1]} : vector<32x128xf32> to vector<8x128xf32>
      %199 = arith.addf %197, %198 : vector<8x128xf32>
      %200 = vector.extract_strided_slice %171 {offsets = [0, 0], sizes = [8, 128], strides = [1, 1]} : vector<32x128xf32> to vector<8x128xf32>
      %201 = vector.extract_strided_slice %171 {offsets = [8, 0], sizes = [8, 128], strides = [1, 1]} : vector<32x128xf32> to vector<8x128xf32>
      %202 = arith.addf %200, %201 : vector<8x128xf32>
      %203 = vector.extract_strided_slice %171 {offsets = [16, 0], sizes = [8, 128], strides = [1, 1]} : vector<32x128xf32> to vector<8x128xf32>
      %204 = arith.addf %202, %203 : vector<8x128xf32>
      %205 = vector.extract_strided_slice %171 {offsets = [24, 0], sizes = [8, 128], strides = [1, 1]} : vector<32x128xf32> to vector<8x128xf32>
      %206 = arith.addf %204, %205 : vector<8x128xf32>
      %207 = tpu.concatenate %178, %185, %192, %199, %206 in 0 : vector<8x128xf32>, vector<8x128xf32>, vector<8x128xf32>, vector<8x128xf32>, vector<8x128xf32> -> vector<40x128xf32>
      %c0_47 = arith.constant 0 : index
      %c88 = arith.constant 88 : index
      %c0_48 = arith.constant 0 : index
      %208 = vector.load %arg10[%c0_47, %c88, %c0_48] : memref<1x368x128xf32, #tpu.memory_space<vmem>>, vector<1x40x128xf32>
      %209 = vector.shape_cast %208 : vector<1x40x128xf32> to vector<40x128xf32>
      %210 = arith.addf %209, %207 : vector<40x128xf32>
      %c0_49 = arith.constant 0 : index
      %c88_50 = arith.constant 88 : index
      %c0_51 = arith.constant 0 : index
      %211 = vector.load %arg10[%c0_49, %c88_50, %c0_51] : memref<1x368x128xf32, #tpu.memory_space<vmem>>, vector<1x40x128xf32>
      %212 = vector.shape_cast %211 : vector<1x40x128xf32> to vector<40x128xf32>
      %213 = vector.shape_cast %210 : vector<40x128xf32> to vector<1x40x128xf32>
      tpu.vector_store %arg10[%c0_49, %c88_50, %c0_51], %213 {strides = array<i32>} : memref<1x368x128xf32, #tpu.memory_space<vmem>>, vector<1x40x128xf32>,
    } else {
    }
    %c3_i32 = arith.constant 3 : i32
    %126 = arith.cmpi sge, %119, %c3_i32 : i32
    %127 = arith.extui %126 : i1 to i32
    %c0_i32_31 = arith.constant 0 : i32
    %128 = arith.cmpi ne, %127, %c0_i32_31 : i32
    scf.if %128 {
      %c0_i32_37 = arith.constant 0 : i32
      %c32_i32_38 = arith.constant 32 : i32
      %144 = arith.muli %c0_i32_37, %c32_i32_38 : i32
      %145 = tpu.assume_multiple %144, 32 : i32
      %c0_39 = arith.constant 0 : index
      %146 = arith.index_cast %145 : i32 to index
      %c0_40 = arith.constant 0 : index
      %147 = vector.load %arg7[%c0_39, %146, %c0_40] : memref<1x32x128xi8, #tpu.memory_space<vmem>>, vector<1x32x128xi8>
      %148 = vector.shape_cast %147 : vector<1x32x128xi8> to vector<32x128xi8>
      %149 = arith.sitofp %148 : vector<32x128xi8> to vector<32x128xf32>
      %cst_41 = arith.constant 3.000000e+00 : f32
      %150 = vector.broadcast %cst_41 : f32 to vector<32x128xf32>
      %151 = arith.cmpf oeq, %149, %150 : vector<32x128xf32>
      %152 = arith.extui %151 : vector<32x128xi1> to vector<32x128xi32>
      %153 = arith.sitofp %152 : vector<32x128xi32> to vector<32x128xf32>
      %c0_42 = arith.constant 0 : index
      %154 = arith.index_cast %145 : i32 to index
      %c0_43 = arith.constant 0 : index
      %155 = vector.load %arg8[%c0_42, %154, %c0_43] : memref<1x32x128xi8, #tpu.memory_space<vmem>>, vector<1x32x128xi8>
      %156 = vector.shape_cast %155 : vector<1x32x128xi8> to vector<32x128xi8>
      %157 = arith.sitofp %156 : vector<32x128xi8> to vector<32x128xf32>
      %cst_44 = arith.constant 3.000000e+00 : f32
      %158 = vector.broadcast %cst_44 : f32 to vector<32x128xf32>
      %159 = arith.cmpf oeq, %157, %158 : vector<32x128xf32>
      %160 = arith.extui %159 : vector<32x128xi1> to vector<32x128xi32>
      %161 = arith.sitofp %160 : vector<32x128xi32> to vector<32x128xf32>
      %162 = arith.index_cast %145 : i32 to index
      %c0_45 = arith.constant 0 : index
      %163 = vector.load %arg11[%162, %c0_45] : memref<32x128xf32, #tpu.memory_space<vmem>>, vector<32x128xf32>
      %164 = arith.mulf %163, %153 : vector<32x128xf32>
      %165 = arith.addf %3, %161 : vector<32x128xf32>
      %166 = arith.addf %3, %153 : vector<32x128xf32>
      %167 = arith.addf %3, %164 : vector<32x128xf32>
      %168 = arith.mulf %163, %161 : vector<32x128xf32>
      %169 = arith.addf %3, %168 : vector<32x128xf32>
      %170 = arith.mulf %164, %161 : vector<32x128xf32>
      %171 = arith.addf %3, %170 : vector<32x128xf32>
      %c1_i32_46 = arith.constant 1 : i32
      %172 = vector.extract_strided_slice %165 {offsets = [0, 0], sizes = [8, 128], strides = [1, 1]} : vector<32x128xf32> to vector<8x128xf32>
      %173 = vector.extract_strided_slice %165 {offsets = [8, 0], sizes = [8, 128], strides = [1, 1]} : vector<32x128xf32> to vector<8x128xf32>
      %174 = arith.addf %172, %173 : vector<8x128xf32>
      %175 = vector.extract_strided_slice %165 {offsets = [16, 0], sizes = [8, 128], strides = [1, 1]} : vector<32x128xf32> to vector<8x128xf32>
      %176 = arith.addf %174, %175 : vector<8x128xf32>
      %177 = vector.extract_strided_slice %165 {offsets = [24, 0], sizes = [8, 128], strides = [1, 1]} : vector<32x128xf32> to vector<8x128xf32>
      %178 = arith.addf %176, %177 : vector<8x128xf32>
      %179 = vector.extract_strided_slice %166 {offsets = [0, 0], sizes = [8, 128], strides = [1, 1]} : vector<32x128xf32> to vector<8x128xf32>
      %180 = vector.extract_strided_slice %166 {offsets = [8, 0], sizes = [8, 128], strides = [1, 1]} : vector<32x128xf32> to vector<8x128xf32>
      %181 = arith.addf %179, %180 : vector<8x128xf32>
      %182 = vector.extract_strided_slice %166 {offsets = [16, 0], sizes = [8, 128], strides = [1, 1]} : vector<32x128xf32> to vector<8x128xf32>
      %183 = arith.addf %181, %182 : vector<8x128xf32>
      %184 = vector.extract_strided_slice %166 {offsets = [24, 0], sizes = [8, 128], strides = [1, 1]} : vector<32x128xf32> to vector<8x128xf32>
      %185 = arith.addf %183, %184 : vector<8x128xf32>
      %186 = vector.extract_strided_slice %167 {offsets = [0, 0], sizes = [8, 128], strides = [1, 1]} : vector<32x128xf32> to vector<8x128xf32>
      %187 = vector.extract_strided_slice %167 {offsets = [8, 0], sizes = [8, 128], strides = [1, 1]} : vector<32x128xf32> to vector<8x128xf32>
      %188 = arith.addf %186, %187 : vector<8x128xf32>
      %189 = vector.extract_strided_slice %167 {offsets = [16, 0], sizes = [8, 128], strides = [1, 1]} : vector<32x128xf32> to vector<8x128xf32>
      %190 = arith.addf %188, %189 : vector<8x128xf32>
      %191 = vector.extract_strided_slice %167 {offsets = [24, 0], sizes = [8, 128], strides = [1, 1]} : vector<32x128xf32> to vector<8x128xf32>
      %192 = arith.addf %190, %191 : vector<8x128xf32>
      %193 = vector.extract_strided_slice %169 {offsets = [0, 0], sizes = [8, 128], strides = [1, 1]} : vector<32x128xf32> to vector<8x128xf32>
      %194 = vector.extract_strided_slice %169 {offsets = [8, 0], sizes = [8, 128], strides = [1, 1]} : vector<32x128xf32> to vector<8x128xf32>
      %195 = arith.addf %193, %194 : vector<8x128xf32>
      %196 = vector.extract_strided_slice %169 {offsets = [16, 0], sizes = [8, 128], strides = [1, 1]} : vector<32x128xf32> to vector<8x128xf32>
      %197 = arith.addf %195, %196 : vector<8x128xf32>
      %198 = vector.extract_strided_slice %169 {offsets = [24, 0], sizes = [8, 128], strides = [1, 1]} : vector<32x128xf32> to vector<8x128xf32>
      %199 = arith.addf %197, %198 : vector<8x128xf32>
      %200 = vector.extract_strided_slice %171 {offsets = [0, 0], sizes = [8, 128], strides = [1, 1]} : vector<32x128xf32> to vector<8x128xf32>
      %201 = vector.extract_strided_slice %171 {offsets = [8, 0], sizes = [8, 128], strides = [1, 1]} : vector<32x128xf32> to vector<8x128xf32>
      %202 = arith.addf %200, %201 : vector<8x128xf32>
      %203 = vector.extract_strided_slice %171 {offsets = [16, 0], sizes = [8, 128], strides = [1, 1]} : vector<32x128xf32> to vector<8x128xf32>
      %204 = arith.addf %202, %203 : vector<8x128xf32>
      %205 = vector.extract_strided_slice %171 {offsets = [24, 0], sizes = [8, 128], strides = [1, 1]} : vector<32x128xf32> to vector<8x128xf32>
      %206 = arith.addf %204, %205 : vector<8x128xf32>
      %207 = tpu.concatenate %178, %185, %192, %199, %206 in 0 : vector<8x128xf32>, vector<8x128xf32>, vector<8x128xf32>, vector<8x128xf32>, vector<8x128xf32> -> vector<40x128xf32>
      %c0_47 = arith.constant 0 : index
      %c128 = arith.constant 128 : index
      %c0_48 = arith.constant 0 : index
      %208 = vector.load %arg10[%c0_47, %c128, %c0_48] : memref<1x368x128xf32, #tpu.memory_space<vmem>>, vector<1x40x128xf32>
      %209 = vector.shape_cast %208 : vector<1x40x128xf32> to vector<40x128xf32>
      %210 = arith.addf %209, %207 : vector<40x128xf32>
      %c0_49 = arith.constant 0 : index
      %c128_50 = arith.constant 128 : index
      %c0_51 = arith.constant 0 : index
      %211 = vector.load %arg10[%c0_49, %c128_50, %c0_51] : memref<1x368x128xf32, #tpu.memory_space<vmem>>, vector<1x40x128xf32>
      %212 = vector.shape_cast %211 : vector<1x40x128xf32> to vector<40x128xf32>
      %213 = vector.shape_cast %210 : vector<40x128xf32> to vector<1x40x128xf32>
      tpu.vector_store %arg10[%c0_49, %c128_50, %c0_51], %213 {strides = array<i32>} : memref<1x368x128xf32, #tpu.memory_space<vmem>>, vector<1x40x128xf32>,
    } else {
    }
    %c4_i32 = arith.constant 4 : i32
    %129 = arith.cmpi sge, %119, %c4_i32 : i32
    %130 = arith.extui %129 : i1 to i32
    %c0_i32_32 = arith.constant 0 : i32
    %131 = arith.cmpi ne, %130, %c0_i32_32 : i32
    scf.if %131 {
      %c0_i32_37 = arith.constant 0 : i32
      %c32_i32_38 = arith.constant 32 : i32
      %144 = arith.muli %c0_i32_37, %c32_i32_38 : i32
      %145 = tpu.assume_multiple %144, 32 : i32
      %c0_39 = arith.constant 0 : index
      %146 = arith.index_cast %145 : i32 to index
      %c0_40 = arith.constant 0 : index
      %147 = vector.load %arg7[%c0_39, %146, %c0_40] : memref<1x32x128xi8, #tpu.memory_space<vmem>>, vector<1x32x128xi8>
      %148 = vector.shape_cast %147 : vector<1x32x128xi8> to vector<32x128xi8>
      %149 = arith.sitofp %148 : vector<32x128xi8> to vector<32x128xf32>
      %cst_41 = arith.constant 4.000000e+00 : f32
      %150 = vector.broadcast %cst_41 : f32 to vector<32x128xf32>
      %151 = arith.cmpf oeq, %149, %150 : vector<32x128xf32>
      %152 = arith.extui %151 : vector<32x128xi1> to vector<32x128xi32>
      %153 = arith.sitofp %152 : vector<32x128xi32> to vector<32x128xf32>
      %c0_42 = arith.constant 0 : index
      %154 = arith.index_cast %145 : i32 to index
      %c0_43 = arith.constant 0 : index
      %155 = vector.load %arg8[%c0_42, %154, %c0_43] : memref<1x32x128xi8, #tpu.memory_space<vmem>>, vector<1x32x128xi8>
      %156 = vector.shape_cast %155 : vector<1x32x128xi8> to vector<32x128xi8>
      %157 = arith.sitofp %156 : vector<32x128xi8> to vector<32x128xf32>
      %cst_44 = arith.constant 4.000000e+00 : f32
      %158 = vector.broadcast %cst_44 : f32 to vector<32x128xf32>
      %159 = arith.cmpf oeq, %157, %158 : vector<32x128xf32>
      %160 = arith.extui %159 : vector<32x128xi1> to vector<32x128xi32>
      %161 = arith.sitofp %160 : vector<32x128xi32> to vector<32x128xf32>
      %162 = arith.index_cast %145 : i32 to index
      %c0_45 = arith.constant 0 : index
      %163 = vector.load %arg11[%162, %c0_45] : memref<32x128xf32, #tpu.memory_space<vmem>>, vector<32x128xf32>
      %164 = arith.mulf %163, %153 : vector<32x128xf32>
      %165 = arith.addf %3, %161 : vector<32x128xf32>
      %166 = arith.addf %3, %153 : vector<32x128xf32>
      %167 = arith.addf %3, %164 : vector<32x128xf32>
      %168 = arith.mulf %163, %161 : vector<32x128xf32>
      %169 = arith.addf %3, %168 : vector<32x128xf32>
      %170 = arith.mulf %164, %161 : vector<32x128xf32>
      %171 = arith.addf %3, %170 : vector<32x128xf32>
      %c1_i32_46 = arith.constant 1 : i32
      %172 = vector.extract_strided_slice %165 {offsets = [0, 0], sizes = [8, 128], strides = [1, 1]} : vector<32x128xf32> to vector<8x128xf32>
      %173 = vector.extract_strided_slice %165 {offsets = [8, 0], sizes = [8, 128], strides = [1, 1]} : vector<32x128xf32> to vector<8x128xf32>
      %174 = arith.addf %172, %173 : vector<8x128xf32>
      %175 = vector.extract_strided_slice %165 {offsets = [16, 0], sizes = [8, 128], strides = [1, 1]} : vector<32x128xf32> to vector<8x128xf32>
      %176 = arith.addf %174, %175 : vector<8x128xf32>
      %177 = vector.extract_strided_slice %165 {offsets = [24, 0], sizes = [8, 128], strides = [1, 1]} : vector<32x128xf32> to vector<8x128xf32>
      %178 = arith.addf %176, %177 : vector<8x128xf32>
      %179 = vector.extract_strided_slice %166 {offsets = [0, 0], sizes = [8, 128], strides = [1, 1]} : vector<32x128xf32> to vector<8x128xf32>
      %180 = vector.extract_strided_slice %166 {offsets = [8, 0], sizes = [8, 128], strides = [1, 1]} : vector<32x128xf32> to vector<8x128xf32>
      %181 = arith.addf %179, %180 : vector<8x128xf32>
      %182 = vector.extract_strided_slice %166 {offsets = [16, 0], sizes = [8, 128], strides = [1, 1]} : vector<32x128xf32> to vector<8x128xf32>
      %183 = arith.addf %181, %182 : vector<8x128xf32>
      %184 = vector.extract_strided_slice %166 {offsets = [24, 0], sizes = [8, 128], strides = [1, 1]} : vector<32x128xf32> to vector<8x128xf32>
      %185 = arith.addf %183, %184 : vector<8x128xf32>
      %186 = vector.extract_strided_slice %167 {offsets = [0, 0], sizes = [8, 128], strides = [1, 1]} : vector<32x128xf32> to vector<8x128xf32>
      %187 = vector.extract_strided_slice %167 {offsets = [8, 0], sizes = [8, 128], strides = [1, 1]} : vector<32x128xf32> to vector<8x128xf32>
      %188 = arith.addf %186, %187 : vector<8x128xf32>
      %189 = vector.extract_strided_slice %167 {offsets = [16, 0], sizes = [8, 128], strides = [1, 1]} : vector<32x128xf32> to vector<8x128xf32>
      %190 = arith.addf %188, %189 : vector<8x128xf32>
      %191 = vector.extract_strided_slice %167 {offsets = [24, 0], sizes = [8, 128], strides = [1, 1]} : vector<32x128xf32> to vector<8x128xf32>
      %192 = arith.addf %190, %191 : vector<8x128xf32>
      %193 = vector.extract_strided_slice %169 {offsets = [0, 0], sizes = [8, 128], strides = [1, 1]} : vector<32x128xf32> to vector<8x128xf32>
      %194 = vector.extract_strided_slice %169 {offsets = [8, 0], sizes = [8, 128], strides = [1, 1]} : vector<32x128xf32> to vector<8x128xf32>
      %195 = arith.addf %193, %194 : vector<8x128xf32>
      %196 = vector.extract_strided_slice %169 {offsets = [16, 0], sizes = [8, 128], strides = [1, 1]} : vector<32x128xf32> to vector<8x128xf32>
      %197 = arith.addf %195, %196 : vector<8x128xf32>
      %198 = vector.extract_strided_slice %169 {offsets = [24, 0], sizes = [8, 128], strides = [1, 1]} : vector<32x128xf32> to vector<8x128xf32>
      %199 = arith.addf %197, %198 : vector<8x128xf32>
      %200 = vector.extract_strided_slice %171 {offsets = [0, 0], sizes = [8, 128], strides = [1, 1]} : vector<32x128xf32> to vector<8x128xf32>
      %201 = vector.extract_strided_slice %171 {offsets = [8, 0], sizes = [8, 128], strides = [1, 1]} : vector<32x128xf32> to vector<8x128xf32>
      %202 = arith.addf %200, %201 : vector<8x128xf32>
      %203 = vector.extract_strided_slice %171 {offsets = [16, 0], sizes = [8, 128], strides = [1, 1]} : vector<32x128xf32> to vector<8x128xf32>
      %204 = arith.addf %202, %203 : vector<8x128xf32>
      %205 = vector.extract_strided_slice %171 {offsets = [24, 0], sizes = [8, 128], strides = [1, 1]} : vector<32x128xf32> to vector<8x128xf32>
      %206 = arith.addf %204, %205 : vector<8x128xf32>
      %207 = tpu.concatenate %178, %185, %192, %199, %206 in 0 : vector<8x128xf32>, vector<8x128xf32>, vector<8x128xf32>, vector<8x128xf32>, vector<8x128xf32> -> vector<40x128xf32>
      %c0_47 = arith.constant 0 : index
      %c168 = arith.constant 168 : index
      %c0_48 = arith.constant 0 : index
      %208 = vector.load %arg10[%c0_47, %c168, %c0_48] : memref<1x368x128xf32, #tpu.memory_space<vmem>>, vector<1x40x128xf32>
      %209 = vector.shape_cast %208 : vector<1x40x128xf32> to vector<40x128xf32>
      %210 = arith.addf %209, %207 : vector<40x128xf32>
      %c0_49 = arith.constant 0 : index
      %c168_50 = arith.constant 168 : index
      %c0_51 = arith.constant 0 : index
      %211 = vector.load %arg10[%c0_49, %c168_50, %c0_51] : memref<1x368x128xf32, #tpu.memory_space<vmem>>, vector<1x40x128xf32>
      %212 = vector.shape_cast %211 : vector<1x40x128xf32> to vector<40x128xf32>
      %213 = vector.shape_cast %210 : vector<40x128xf32> to vector<1x40x128xf32>
      tpu.vector_store %arg10[%c0_49, %c168_50, %c0_51], %213 {strides = array<i32>} : memref<1x368x128xf32, #tpu.memory_space<vmem>>, vector<1x40x128xf32>,
    } else {
    }
    %c5_i32 = arith.constant 5 : i32
    %132 = arith.cmpi sge, %119, %c5_i32 : i32
    %133 = arith.extui %132 : i1 to i32
    %c0_i32_33 = arith.constant 0 : i32
    %134 = arith.cmpi ne, %133, %c0_i32_33 : i32
    scf.if %134 {
      %c0_i32_37 = arith.constant 0 : i32
      %c32_i32_38 = arith.constant 32 : i32
      %144 = arith.muli %c0_i32_37, %c32_i32_38 : i32
      %145 = tpu.assume_multiple %144, 32 : i32
      %c0_39 = arith.constant 0 : index
      %146 = arith.index_cast %145 : i32 to index
      %c0_40 = arith.constant 0 : index
      %147 = vector.load %arg7[%c0_39, %146, %c0_40] : memref<1x32x128xi8, #tpu.memory_space<vmem>>, vector<1x32x128xi8>
      %148 = vector.shape_cast %147 : vector<1x32x128xi8> to vector<32x128xi8>
      %149 = arith.sitofp %148 : vector<32x128xi8> to vector<32x128xf32>
      %cst_41 = arith.constant 5.000000e+00 : f32
      %150 = vector.broadcast %cst_41 : f32 to vector<32x128xf32>
      %151 = arith.cmpf oeq, %149, %150 : vector<32x128xf32>
      %152 = arith.extui %151 : vector<32x128xi1> to vector<32x128xi32>
      %153 = arith.sitofp %152 : vector<32x128xi32> to vector<32x128xf32>
      %c0_42 = arith.constant 0 : index
      %154 = arith.index_cast %145 : i32 to index
      %c0_43 = arith.constant 0 : index
      %155 = vector.load %arg8[%c0_42, %154, %c0_43] : memref<1x32x128xi8, #tpu.memory_space<vmem>>, vector<1x32x128xi8>
      %156 = vector.shape_cast %155 : vector<1x32x128xi8> to vector<32x128xi8>
      %157 = arith.sitofp %156 : vector<32x128xi8> to vector<32x128xf32>
      %cst_44 = arith.constant 5.000000e+00 : f32
      %158 = vector.broadcast %cst_44 : f32 to vector<32x128xf32>
      %159 = arith.cmpf oeq, %157, %158 : vector<32x128xf32>
      %160 = arith.extui %159 : vector<32x128xi1> to vector<32x128xi32>
      %161 = arith.sitofp %160 : vector<32x128xi32> to vector<32x128xf32>
      %162 = arith.index_cast %145 : i32 to index
      %c0_45 = arith.constant 0 : index
      %163 = vector.load %arg11[%162, %c0_45] : memref<32x128xf32, #tpu.memory_space<vmem>>, vector<32x128xf32>
      %164 = arith.mulf %163, %153 : vector<32x128xf32>
      %165 = arith.addf %3, %161 : vector<32x128xf32>
      %166 = arith.addf %3, %153 : vector<32x128xf32>
      %167 = arith.addf %3, %164 : vector<32x128xf32>
      %168 = arith.mulf %163, %161 : vector<32x128xf32>
      %169 = arith.addf %3, %168 : vector<32x128xf32>
      %170 = arith.mulf %164, %161 : vector<32x128xf32>
      %171 = arith.addf %3, %170 : vector<32x128xf32>
      %c1_i32_46 = arith.constant 1 : i32
      %172 = vector.extract_strided_slice %165 {offsets = [0, 0], sizes = [8, 128], strides = [1, 1]} : vector<32x128xf32> to vector<8x128xf32>
      %173 = vector.extract_strided_slice %165 {offsets = [8, 0], sizes = [8, 128], strides = [1, 1]} : vector<32x128xf32> to vector<8x128xf32>
      %174 = arith.addf %172, %173 : vector<8x128xf32>
      %175 = vector.extract_strided_slice %165 {offsets = [16, 0], sizes = [8, 128], strides = [1, 1]} : vector<32x128xf32> to vector<8x128xf32>
      %176 = arith.addf %174, %175 : vector<8x128xf32>
      %177 = vector.extract_strided_slice %165 {offsets = [24, 0], sizes = [8, 128], strides = [1, 1]} : vector<32x128xf32> to vector<8x128xf32>
      %178 = arith.addf %176, %177 : vector<8x128xf32>
      %179 = vector.extract_strided_slice %166 {offsets = [0, 0], sizes = [8, 128], strides = [1, 1]} : vector<32x128xf32> to vector<8x128xf32>
      %180 = vector.extract_strided_slice %166 {offsets = [8, 0], sizes = [8, 128], strides = [1, 1]} : vector<32x128xf32> to vector<8x128xf32>
      %181 = arith.addf %179, %180 : vector<8x128xf32>
      %182 = vector.extract_strided_slice %166 {offsets = [16, 0], sizes = [8, 128], strides = [1, 1]} : vector<32x128xf32> to vector<8x128xf32>
      %183 = arith.addf %181, %182 : vector<8x128xf32>
      %184 = vector.extract_strided_slice %166 {offsets = [24, 0], sizes = [8, 128], strides = [1, 1]} : vector<32x128xf32> to vector<8x128xf32>
      %185 = arith.addf %183, %184 : vector<8x128xf32>
      %186 = vector.extract_strided_slice %167 {offsets = [0, 0], sizes = [8, 128], strides = [1, 1]} : vector<32x128xf32> to vector<8x128xf32>
      %187 = vector.extract_strided_slice %167 {offsets = [8, 0], sizes = [8, 128], strides = [1, 1]} : vector<32x128xf32> to vector<8x128xf32>
      %188 = arith.addf %186, %187 : vector<8x128xf32>
      %189 = vector.extract_strided_slice %167 {offsets = [16, 0], sizes = [8, 128], strides = [1, 1]} : vector<32x128xf32> to vector<8x128xf32>
      %190 = arith.addf %188, %189 : vector<8x128xf32>
      %191 = vector.extract_strided_slice %167 {offsets = [24, 0], sizes = [8, 128], strides = [1, 1]} : vector<32x128xf32> to vector<8x128xf32>
      %192 = arith.addf %190, %191 : vector<8x128xf32>
      %193 = vector.extract_strided_slice %169 {offsets = [0, 0], sizes = [8, 128], strides = [1, 1]} : vector<32x128xf32> to vector<8x128xf32>
      %194 = vector.extract_strided_slice %169 {offsets = [8, 0], sizes = [8, 128], strides = [1, 1]} : vector<32x128xf32> to vector<8x128xf32>
      %195 = arith.addf %193, %194 : vector<8x128xf32>
      %196 = vector.extract_strided_slice %169 {offsets = [16, 0], sizes = [8, 128], strides = [1, 1]} : vector<32x128xf32> to vector<8x128xf32>
      %197 = arith.addf %195, %196 : vector<8x128xf32>
      %198 = vector.extract_strided_slice %169 {offsets = [24, 0], sizes = [8, 128], strides = [1, 1]} : vector<32x128xf32> to vector<8x128xf32>
      %199 = arith.addf %197, %198 : vector<8x128xf32>
      %200 = vector.extract_strided_slice %171 {offsets = [0, 0], sizes = [8, 128], strides = [1, 1]} : vector<32x128xf32> to vector<8x128xf32>
      %201 = vector.extract_strided_slice %171 {offsets = [8, 0], sizes = [8, 128], strides = [1, 1]} : vector<32x128xf32> to vector<8x128xf32>
      %202 = arith.addf %200, %201 : vector<8x128xf32>
      %203 = vector.extract_strided_slice %171 {offsets = [16, 0], sizes = [8, 128], strides = [1, 1]} : vector<32x128xf32> to vector<8x128xf32>
      %204 = arith.addf %202, %203 : vector<8x128xf32>
      %205 = vector.extract_strided_slice %171 {offsets = [24, 0], sizes = [8, 128], strides = [1, 1]} : vector<32x128xf32> to vector<8x128xf32>
      %206 = arith.addf %204, %205 : vector<8x128xf32>
      %207 = tpu.concatenate %178, %185, %192, %199, %206 in 0 : vector<8x128xf32>, vector<8x128xf32>, vector<8x128xf32>, vector<8x128xf32>, vector<8x128xf32> -> vector<40x128xf32>
      %c0_47 = arith.constant 0 : index
      %c208 = arith.constant 208 : index
      %c0_48 = arith.constant 0 : index
      %208 = vector.load %arg10[%c0_47, %c208, %c0_48] : memref<1x368x128xf32, #tpu.memory_space<vmem>>, vector<1x40x128xf32>
      %209 = vector.shape_cast %208 : vector<1x40x128xf32> to vector<40x128xf32>
      %210 = arith.addf %209, %207 : vector<40x128xf32>
      %c0_49 = arith.constant 0 : index
      %c208_50 = arith.constant 208 : index
      %c0_51 = arith.constant 0 : index
      %211 = vector.load %arg10[%c0_49, %c208_50, %c0_51] : memref<1x368x128xf32, #tpu.memory_space<vmem>>, vector<1x40x128xf32>
      %212 = vector.shape_cast %211 : vector<1x40x128xf32> to vector<40x128xf32>
      %213 = vector.shape_cast %210 : vector<40x128xf32> to vector<1x40x128xf32>
      tpu.vector_store %arg10[%c0_49, %c208_50, %c0_51], %213 {strides = array<i32>} : memref<1x368x128xf32, #tpu.memory_space<vmem>>, vector<1x40x128xf32>,
    } else {
    }
    %c6_i32 = arith.constant 6 : i32
    %135 = arith.cmpi sge, %119, %c6_i32 : i32
    %136 = arith.extui %135 : i1 to i32
    %c0_i32_34 = arith.constant 0 : i32
    %137 = arith.cmpi ne, %136, %c0_i32_34 : i32
    scf.if %137 {
      %c0_i32_37 = arith.constant 0 : i32
      %c32_i32_38 = arith.constant 32 : i32
      %144 = arith.muli %c0_i32_37, %c32_i32_38 : i32
      %145 = tpu.assume_multiple %144, 32 : i32
      %c0_39 = arith.constant 0 : index
      %146 = arith.index_cast %145 : i32 to index
      %c0_40 = arith.constant 0 : index
      %147 = vector.load %arg7[%c0_39, %146, %c0_40] : memref<1x32x128xi8, #tpu.memory_space<vmem>>, vector<1x32x128xi8>
      %148 = vector.shape_cast %147 : vector<1x32x128xi8> to vector<32x128xi8>
      %149 = arith.sitofp %148 : vector<32x128xi8> to vector<32x128xf32>
      %cst_41 = arith.constant 6.000000e+00 : f32
      %150 = vector.broadcast %cst_41 : f32 to vector<32x128xf32>
      %151 = arith.cmpf oeq, %149, %150 : vector<32x128xf32>
      %152 = arith.extui %151 : vector<32x128xi1> to vector<32x128xi32>
      %153 = arith.sitofp %152 : vector<32x128xi32> to vector<32x128xf32>
      %c0_42 = arith.constant 0 : index
      %154 = arith.index_cast %145 : i32 to index
      %c0_43 = arith.constant 0 : index
      %155 = vector.load %arg8[%c0_42, %154, %c0_43] : memref<1x32x128xi8, #tpu.memory_space<vmem>>, vector<1x32x128xi8>
      %156 = vector.shape_cast %155 : vector<1x32x128xi8> to vector<32x128xi8>
      %157 = arith.sitofp %156 : vector<32x128xi8> to vector<32x128xf32>
      %cst_44 = arith.constant 6.000000e+00 : f32
      %158 = vector.broadcast %cst_44 : f32 to vector<32x128xf32>
      %159 = arith.cmpf oeq, %157, %158 : vector<32x128xf32>
      %160 = arith.extui %159 : vector<32x128xi1> to vector<32x128xi32>
      %161 = arith.sitofp %160 : vector<32x128xi32> to vector<32x128xf32>
      %162 = arith.index_cast %145 : i32 to index
      %c0_45 = arith.constant 0 : index
      %163 = vector.load %arg11[%162, %c0_45] : memref<32x128xf32, #tpu.memory_space<vmem>>, vector<32x128xf32>
      %164 = arith.mulf %163, %153 : vector<32x128xf32>
      %165 = arith.addf %3, %161 : vector<32x128xf32>
      %166 = arith.addf %3, %153 : vector<32x128xf32>
      %167 = arith.addf %3, %164 : vector<32x128xf32>
      %168 = arith.mulf %163, %161 : vector<32x128xf32>
      %169 = arith.addf %3, %168 : vector<32x128xf32>
      %170 = arith.mulf %164, %161 : vector<32x128xf32>
      %171 = arith.addf %3, %170 : vector<32x128xf32>
      %c1_i32_46 = arith.constant 1 : i32
      %172 = vector.extract_strided_slice %165 {offsets = [0, 0], sizes = [8, 128], strides = [1, 1]} : vector<32x128xf32> to vector<8x128xf32>
      %173 = vector.extract_strided_slice %165 {offsets = [8, 0], sizes = [8, 128], strides = [1, 1]} : vector<32x128xf32> to vector<8x128xf32>
      %174 = arith.addf %172, %173 : vector<8x128xf32>
      %175 = vector.extract_strided_slice %165 {offsets = [16, 0], sizes = [8, 128], strides = [1, 1]} : vector<32x128xf32> to vector<8x128xf32>
      %176 = arith.addf %174, %175 : vector<8x128xf32>
      %177 = vector.extract_strided_slice %165 {offsets = [24, 0], sizes = [8, 128], strides = [1, 1]} : vector<32x128xf32> to vector<8x128xf32>
      %178 = arith.addf %176, %177 : vector<8x128xf32>
      %179 = vector.extract_strided_slice %166 {offsets = [0, 0], sizes = [8, 128], strides = [1, 1]} : vector<32x128xf32> to vector<8x128xf32>
      %180 = vector.extract_strided_slice %166 {offsets = [8, 0], sizes = [8, 128], strides = [1, 1]} : vector<32x128xf32> to vector<8x128xf32>
      %181 = arith.addf %179, %180 : vector<8x128xf32>
      %182 = vector.extract_strided_slice %166 {offsets = [16, 0], sizes = [8, 128], strides = [1, 1]} : vector<32x128xf32> to vector<8x128xf32>
      %183 = arith.addf %181, %182 : vector<8x128xf32>
      %184 = vector.extract_strided_slice %166 {offsets = [24, 0], sizes = [8, 128], strides = [1, 1]} : vector<32x128xf32> to vector<8x128xf32>
      %185 = arith.addf %183, %184 : vector<8x128xf32>
      %186 = vector.extract_strided_slice %167 {offsets = [0, 0], sizes = [8, 128], strides = [1, 1]} : vector<32x128xf32> to vector<8x128xf32>
      %187 = vector.extract_strided_slice %167 {offsets = [8, 0], sizes = [8, 128], strides = [1, 1]} : vector<32x128xf32> to vector<8x128xf32>
      %188 = arith.addf %186, %187 : vector<8x128xf32>
      %189 = vector.extract_strided_slice %167 {offsets = [16, 0], sizes = [8, 128], strides = [1, 1]} : vector<32x128xf32> to vector<8x128xf32>
      %190 = arith.addf %188, %189 : vector<8x128xf32>
      %191 = vector.extract_strided_slice %167 {offsets = [24, 0], sizes = [8, 128], strides = [1, 1]} : vector<32x128xf32> to vector<8x128xf32>
      %192 = arith.addf %190, %191 : vector<8x128xf32>
      %193 = vector.extract_strided_slice %169 {offsets = [0, 0], sizes = [8, 128], strides = [1, 1]} : vector<32x128xf32> to vector<8x128xf32>
      %194 = vector.extract_strided_slice %169 {offsets = [8, 0], sizes = [8, 128], strides = [1, 1]} : vector<32x128xf32> to vector<8x128xf32>
      %195 = arith.addf %193, %194 : vector<8x128xf32>
      %196 = vector.extract_strided_slice %169 {offsets = [16, 0], sizes = [8, 128], strides = [1, 1]} : vector<32x128xf32> to vector<8x128xf32>
      %197 = arith.addf %195, %196 : vector<8x128xf32>
      %198 = vector.extract_strided_slice %169 {offsets = [24, 0], sizes = [8, 128], strides = [1, 1]} : vector<32x128xf32> to vector<8x128xf32>
      %199 = arith.addf %197, %198 : vector<8x128xf32>
      %200 = vector.extract_strided_slice %171 {offsets = [0, 0], sizes = [8, 128], strides = [1, 1]} : vector<32x128xf32> to vector<8x128xf32>
      %201 = vector.extract_strided_slice %171 {offsets = [8, 0], sizes = [8, 128], strides = [1, 1]} : vector<32x128xf32> to vector<8x128xf32>
      %202 = arith.addf %200, %201 : vector<8x128xf32>
      %203 = vector.extract_strided_slice %171 {offsets = [16, 0], sizes = [8, 128], strides = [1, 1]} : vector<32x128xf32> to vector<8x128xf32>
      %204 = arith.addf %202, %203 : vector<8x128xf32>
      %205 = vector.extract_strided_slice %171 {offsets = [24, 0], sizes = [8, 128], strides = [1, 1]} : vector<32x128xf32> to vector<8x128xf32>
      %206 = arith.addf %204, %205 : vector<8x128xf32>
      %207 = tpu.concatenate %178, %185, %192, %199, %206 in 0 : vector<8x128xf32>, vector<8x128xf32>, vector<8x128xf32>, vector<8x128xf32>, vector<8x128xf32> -> vector<40x128xf32>
      %c0_47 = arith.constant 0 : index
      %c248 = arith.constant 248 : index
      %c0_48 = arith.constant 0 : index
      %208 = vector.load %arg10[%c0_47, %c248, %c0_48] : memref<1x368x128xf32, #tpu.memory_space<vmem>>, vector<1x40x128xf32>
      %209 = vector.shape_cast %208 : vector<1x40x128xf32> to vector<40x128xf32>
      %210 = arith.addf %209, %207 : vector<40x128xf32>
      %c0_49 = arith.constant 0 : index
      %c248_50 = arith.constant 248 : index
      %c0_51 = arith.constant 0 : index
      %211 = vector.load %arg10[%c0_49, %c248_50, %c0_51] : memref<1x368x128xf32, #tpu.memory_space<vmem>>, vector<1x40x128xf32>
      %212 = vector.shape_cast %211 : vector<1x40x128xf32> to vector<40x128xf32>
      %213 = vector.shape_cast %210 : vector<40x128xf32> to vector<1x40x128xf32>
      tpu.vector_store %arg10[%c0_49, %c248_50, %c0_51], %213 {strides = array<i32>} : memref<1x368x128xf32, #tpu.memory_space<vmem>>, vector<1x40x128xf32>,
    } else {
    }
    %c7_i32 = arith.constant 7 : i32
    %138 = arith.cmpi sge, %119, %c7_i32 : i32
    %139 = arith.extui %138 : i1 to i32
    %c0_i32_35 = arith.constant 0 : i32
    %140 = arith.cmpi ne, %139, %c0_i32_35 : i32
    scf.if %140 {
      %c0_i32_37 = arith.constant 0 : i32
      %c32_i32_38 = arith.constant 32 : i32
      %144 = arith.muli %c0_i32_37, %c32_i32_38 : i32
      %145 = tpu.assume_multiple %144, 32 : i32
      %c0_39 = arith.constant 0 : index
      %146 = arith.index_cast %145 : i32 to index
      %c0_40 = arith.constant 0 : index
      %147 = vector.load %arg7[%c0_39, %146, %c0_40] : memref<1x32x128xi8, #tpu.memory_space<vmem>>, vector<1x32x128xi8>
      %148 = vector.shape_cast %147 : vector<1x32x128xi8> to vector<32x128xi8>
      %149 = arith.sitofp %148 : vector<32x128xi8> to vector<32x128xf32>
      %cst_41 = arith.constant 7.000000e+00 : f32
      %150 = vector.broadcast %cst_41 : f32 to vector<32x128xf32>
      %151 = arith.cmpf oeq, %149, %150 : vector<32x128xf32>
      %152 = arith.extui %151 : vector<32x128xi1> to vector<32x128xi32>
      %153 = arith.sitofp %152 : vector<32x128xi32> to vector<32x128xf32>
      %c0_42 = arith.constant 0 : index
      %154 = arith.index_cast %145 : i32 to index
      %c0_43 = arith.constant 0 : index
      %155 = vector.load %arg8[%c0_42, %154, %c0_43] : memref<1x32x128xi8, #tpu.memory_space<vmem>>, vector<1x32x128xi8>
      %156 = vector.shape_cast %155 : vector<1x32x128xi8> to vector<32x128xi8>
      %157 = arith.sitofp %156 : vector<32x128xi8> to vector<32x128xf32>
      %cst_44 = arith.constant 7.000000e+00 : f32
      %158 = vector.broadcast %cst_44 : f32 to vector<32x128xf32>
      %159 = arith.cmpf oeq, %157, %158 : vector<32x128xf32>
      %160 = arith.extui %159 : vector<32x128xi1> to vector<32x128xi32>
      %161 = arith.sitofp %160 : vector<32x128xi32> to vector<32x128xf32>
      %162 = arith.index_cast %145 : i32 to index
      %c0_45 = arith.constant 0 : index
      %163 = vector.load %arg11[%162, %c0_45] : memref<32x128xf32, #tpu.memory_space<vmem>>, vector<32x128xf32>
      %164 = arith.mulf %163, %153 : vector<32x128xf32>
      %165 = arith.addf %3, %161 : vector<32x128xf32>
      %166 = arith.addf %3, %153 : vector<32x128xf32>
      %167 = arith.addf %3, %164 : vector<32x128xf32>
      %168 = arith.mulf %163, %161 : vector<32x128xf32>
      %169 = arith.addf %3, %168 : vector<32x128xf32>
      %170 = arith.mulf %164, %161 : vector<32x128xf32>
      %171 = arith.addf %3, %170 : vector<32x128xf32>
      %c1_i32_46 = arith.constant 1 : i32
      %172 = vector.extract_strided_slice %165 {offsets = [0, 0], sizes = [8, 128], strides = [1, 1]} : vector<32x128xf32> to vector<8x128xf32>
      %173 = vector.extract_strided_slice %165 {offsets = [8, 0], sizes = [8, 128], strides = [1, 1]} : vector<32x128xf32> to vector<8x128xf32>
      %174 = arith.addf %172, %173 : vector<8x128xf32>
      %175 = vector.extract_strided_slice %165 {offsets = [16, 0], sizes = [8, 128], strides = [1, 1]} : vector<32x128xf32> to vector<8x128xf32>
      %176 = arith.addf %174, %175 : vector<8x128xf32>
      %177 = vector.extract_strided_slice %165 {offsets = [24, 0], sizes = [8, 128], strides = [1, 1]} : vector<32x128xf32> to vector<8x128xf32>
      %178 = arith.addf %176, %177 : vector<8x128xf32>
      %179 = vector.extract_strided_slice %166 {offsets = [0, 0], sizes = [8, 128], strides = [1, 1]} : vector<32x128xf32> to vector<8x128xf32>
      %180 = vector.extract_strided_slice %166 {offsets = [8, 0], sizes = [8, 128], strides = [1, 1]} : vector<32x128xf32> to vector<8x128xf32>
      %181 = arith.addf %179, %180 : vector<8x128xf32>
      %182 = vector.extract_strided_slice %166 {offsets = [16, 0], sizes = [8, 128], strides = [1, 1]} : vector<32x128xf32> to vector<8x128xf32>
      %183 = arith.addf %181, %182 : vector<8x128xf32>
      %184 = vector.extract_strided_slice %166 {offsets = [24, 0], sizes = [8, 128], strides = [1, 1]} : vector<32x128xf32> to vector<8x128xf32>
      %185 = arith.addf %183, %184 : vector<8x128xf32>
      %186 = vector.extract_strided_slice %167 {offsets = [0, 0], sizes = [8, 128], strides = [1, 1]} : vector<32x128xf32> to vector<8x128xf32>
      %187 = vector.extract_strided_slice %167 {offsets = [8, 0], sizes = [8, 128], strides = [1, 1]} : vector<32x128xf32> to vector<8x128xf32>
      %188 = arith.addf %186, %187 : vector<8x128xf32>
      %189 = vector.extract_strided_slice %167 {offsets = [16, 0], sizes = [8, 128], strides = [1, 1]} : vector<32x128xf32> to vector<8x128xf32>
      %190 = arith.addf %188, %189 : vector<8x128xf32>
      %191 = vector.extract_strided_slice %167 {offsets = [24, 0], sizes = [8, 128], strides = [1, 1]} : vector<32x128xf32> to vector<8x128xf32>
      %192 = arith.addf %190, %191 : vector<8x128xf32>
      %193 = vector.extract_strided_slice %169 {offsets = [0, 0], sizes = [8, 128], strides = [1, 1]} : vector<32x128xf32> to vector<8x128xf32>
      %194 = vector.extract_strided_slice %169 {offsets = [8, 0], sizes = [8, 128], strides = [1, 1]} : vector<32x128xf32> to vector<8x128xf32>
      %195 = arith.addf %193, %194 : vector<8x128xf32>
      %196 = vector.extract_strided_slice %169 {offsets = [16, 0], sizes = [8, 128], strides = [1, 1]} : vector<32x128xf32> to vector<8x128xf32>
      %197 = arith.addf %195, %196 : vector<8x128xf32>
      %198 = vector.extract_strided_slice %169 {offsets = [24, 0], sizes = [8, 128], strides = [1, 1]} : vector<32x128xf32> to vector<8x128xf32>
      %199 = arith.addf %197, %198 : vector<8x128xf32>
      %200 = vector.extract_strided_slice %171 {offsets = [0, 0], sizes = [8, 128], strides = [1, 1]} : vector<32x128xf32> to vector<8x128xf32>
      %201 = vector.extract_strided_slice %171 {offsets = [8, 0], sizes = [8, 128], strides = [1, 1]} : vector<32x128xf32> to vector<8x128xf32>
      %202 = arith.addf %200, %201 : vector<8x128xf32>
      %203 = vector.extract_strided_slice %171 {offsets = [16, 0], sizes = [8, 128], strides = [1, 1]} : vector<32x128xf32> to vector<8x128xf32>
      %204 = arith.addf %202, %203 : vector<8x128xf32>
      %205 = vector.extract_strided_slice %171 {offsets = [24, 0], sizes = [8, 128], strides = [1, 1]} : vector<32x128xf32> to vector<8x128xf32>
      %206 = arith.addf %204, %205 : vector<8x128xf32>
      %207 = tpu.concatenate %178, %185, %192, %199, %206 in 0 : vector<8x128xf32>, vector<8x128xf32>, vector<8x128xf32>, vector<8x128xf32>, vector<8x128xf32> -> vector<40x128xf32>
      %c0_47 = arith.constant 0 : index
      %c288 = arith.constant 288 : index
      %c0_48 = arith.constant 0 : index
      %208 = vector.load %arg10[%c0_47, %c288, %c0_48] : memref<1x368x128xf32, #tpu.memory_space<vmem>>, vector<1x40x128xf32>
      %209 = vector.shape_cast %208 : vector<1x40x128xf32> to vector<40x128xf32>
      %210 = arith.addf %209, %207 : vector<40x128xf32>
      %c0_49 = arith.constant 0 : index
      %c288_50 = arith.constant 288 : index
      %c0_51 = arith.constant 0 : index
      %211 = vector.load %arg10[%c0_49, %c288_50, %c0_51] : memref<1x368x128xf32, #tpu.memory_space<vmem>>, vector<1x40x128xf32>
      %212 = vector.shape_cast %211 : vector<1x40x128xf32> to vector<40x128xf32>
      %213 = vector.shape_cast %210 : vector<40x128xf32> to vector<1x40x128xf32>
      tpu.vector_store %arg10[%c0_49, %c288_50, %c0_51], %213 {strides = array<i32>} : memref<1x368x128xf32, #tpu.memory_space<vmem>>, vector<1x40x128xf32>,
    } else {
    }
    %c8_i32 = arith.constant 8 : i32
    %141 = arith.cmpi sge, %119, %c8_i32 : i32
    %142 = arith.extui %141 : i1 to i32
    %c0_i32_36 = arith.constant 0 : i32
    %143 = arith.cmpi ne, %142, %c0_i32_36 : i32
    scf.if %143 {
      %c0_i32_37 = arith.constant 0 : i32
      %c32_i32_38 = arith.constant 32 : i32
      %144 = arith.muli %c0_i32_37, %c32_i32_38 : i32
      %145 = tpu.assume_multiple %144, 32 : i32
      %c0_39 = arith.constant 0 : index
      %146 = arith.index_cast %145 : i32 to index
      %c0_40 = arith.constant 0 : index
      %147 = vector.load %arg7[%c0_39, %146, %c0_40] : memref<1x32x128xi8, #tpu.memory_space<vmem>>, vector<1x32x128xi8>
      %148 = vector.shape_cast %147 : vector<1x32x128xi8> to vector<32x128xi8>
      %149 = arith.sitofp %148 : vector<32x128xi8> to vector<32x128xf32>
      %cst_41 = arith.constant 8.000000e+00 : f32
      %150 = vector.broadcast %cst_41 : f32 to vector<32x128xf32>
      %151 = arith.cmpf oeq, %149, %150 : vector<32x128xf32>
      %152 = arith.extui %151 : vector<32x128xi1> to vector<32x128xi32>
      %153 = arith.sitofp %152 : vector<32x128xi32> to vector<32x128xf32>
      %c0_42 = arith.constant 0 : index
      %154 = arith.index_cast %145 : i32 to index
      %c0_43 = arith.constant 0 : index
      %155 = vector.load %arg8[%c0_42, %154, %c0_43] : memref<1x32x128xi8, #tpu.memory_space<vmem>>, vector<1x32x128xi8>
      %156 = vector.shape_cast %155 : vector<1x32x128xi8> to vector<32x128xi8>
      %157 = arith.sitofp %156 : vector<32x128xi8> to vector<32x128xf32>
      %cst_44 = arith.constant 8.000000e+00 : f32
      %158 = vector.broadcast %cst_44 : f32 to vector<32x128xf32>
      %159 = arith.cmpf oeq, %157, %158 : vector<32x128xf32>
      %160 = arith.extui %159 : vector<32x128xi1> to vector<32x128xi32>
      %161 = arith.sitofp %160 : vector<32x128xi32> to vector<32x128xf32>
      %162 = arith.index_cast %145 : i32 to index
      %c0_45 = arith.constant 0 : index
      %163 = vector.load %arg11[%162, %c0_45] : memref<32x128xf32, #tpu.memory_space<vmem>>, vector<32x128xf32>
      %164 = arith.mulf %163, %153 : vector<32x128xf32>
      %165 = arith.addf %3, %161 : vector<32x128xf32>
      %166 = arith.addf %3, %153 : vector<32x128xf32>
      %167 = arith.addf %3, %164 : vector<32x128xf32>
      %168 = arith.mulf %163, %161 : vector<32x128xf32>
      %169 = arith.addf %3, %168 : vector<32x128xf32>
      %170 = arith.mulf %164, %161 : vector<32x128xf32>
      %171 = arith.addf %3, %170 : vector<32x128xf32>
      %c1_i32_46 = arith.constant 1 : i32
      %172 = vector.extract_strided_slice %165 {offsets = [0, 0], sizes = [8, 128], strides = [1, 1]} : vector<32x128xf32> to vector<8x128xf32>
      %173 = vector.extract_strided_slice %165 {offsets = [8, 0], sizes = [8, 128], strides = [1, 1]} : vector<32x128xf32> to vector<8x128xf32>
      %174 = arith.addf %172, %173 : vector<8x128xf32>
      %175 = vector.extract_strided_slice %165 {offsets = [16, 0], sizes = [8, 128], strides = [1, 1]} : vector<32x128xf32> to vector<8x128xf32>
      %176 = arith.addf %174, %175 : vector<8x128xf32>
      %177 = vector.extract_strided_slice %165 {offsets = [24, 0], sizes = [8, 128], strides = [1, 1]} : vector<32x128xf32> to vector<8x128xf32>
      %178 = arith.addf %176, %177 : vector<8x128xf32>
      %179 = vector.extract_strided_slice %166 {offsets = [0, 0], sizes = [8, 128], strides = [1, 1]} : vector<32x128xf32> to vector<8x128xf32>
      %180 = vector.extract_strided_slice %166 {offsets = [8, 0], sizes = [8, 128], strides = [1, 1]} : vector<32x128xf32> to vector<8x128xf32>
      %181 = arith.addf %179, %180 : vector<8x128xf32>
      %182 = vector.extract_strided_slice %166 {offsets = [16, 0], sizes = [8, 128], strides = [1, 1]} : vector<32x128xf32> to vector<8x128xf32>
      %183 = arith.addf %181, %182 : vector<8x128xf32>
      %184 = vector.extract_strided_slice %166 {offsets = [24, 0], sizes = [8, 128], strides = [1, 1]} : vector<32x128xf32> to vector<8x128xf32>
      %185 = arith.addf %183, %184 : vector<8x128xf32>
      %186 = vector.extract_strided_slice %167 {offsets = [0, 0], sizes = [8, 128], strides = [1, 1]} : vector<32x128xf32> to vector<8x128xf32>
      %187 = vector.extract_strided_slice %167 {offsets = [8, 0], sizes = [8, 128], strides = [1, 1]} : vector<32x128xf32> to vector<8x128xf32>
      %188 = arith.addf %186, %187 : vector<8x128xf32>
      %189 = vector.extract_strided_slice %167 {offsets = [16, 0], sizes = [8, 128], strides = [1, 1]} : vector<32x128xf32> to vector<8x128xf32>
      %190 = arith.addf %188, %189 : vector<8x128xf32>
      %191 = vector.extract_strided_slice %167 {offsets = [24, 0], sizes = [8, 128], strides = [1, 1]} : vector<32x128xf32> to vector<8x128xf32>
      %192 = arith.addf %190, %191 : vector<8x128xf32>
      %193 = vector.extract_strided_slice %169 {offsets = [0, 0], sizes = [8, 128], strides = [1, 1]} : vector<32x128xf32> to vector<8x128xf32>
      %194 = vector.extract_strided_slice %169 {offsets = [8, 0], sizes = [8, 128], strides = [1, 1]} : vector<32x128xf32> to vector<8x128xf32>
      %195 = arith.addf %193, %194 : vector<8x128xf32>
      %196 = vector.extract_strided_slice %169 {offsets = [16, 0], sizes = [8, 128], strides = [1, 1]} : vector<32x128xf32> to vector<8x128xf32>
      %197 = arith.addf %195, %196 : vector<8x128xf32>
      %198 = vector.extract_strided_slice %169 {offsets = [24, 0], sizes = [8, 128], strides = [1, 1]} : vector<32x128xf32> to vector<8x128xf32>
      %199 = arith.addf %197, %198 : vector<8x128xf32>
      %200 = vector.extract_strided_slice %171 {offsets = [0, 0], sizes = [8, 128], strides = [1, 1]} : vector<32x128xf32> to vector<8x128xf32>
      %201 = vector.extract_strided_slice %171 {offsets = [8, 0], sizes = [8, 128], strides = [1, 1]} : vector<32x128xf32> to vector<8x128xf32>
      %202 = arith.addf %200, %201 : vector<8x128xf32>
      %203 = vector.extract_strided_slice %171 {offsets = [16, 0], sizes = [8, 128], strides = [1, 1]} : vector<32x128xf32> to vector<8x128xf32>
      %204 = arith.addf %202, %203 : vector<8x128xf32>
      %205 = vector.extract_strided_slice %171 {offsets = [24, 0], sizes = [8, 128], strides = [1, 1]} : vector<32x128xf32> to vector<8x128xf32>
      %206 = arith.addf %204, %205 : vector<8x128xf32>
      %207 = tpu.concatenate %178, %185, %192, %199, %206 in 0 : vector<8x128xf32>, vector<8x128xf32>, vector<8x128xf32>, vector<8x128xf32>, vector<8x128xf32> -> vector<40x128xf32>
      %c0_47 = arith.constant 0 : index
      %c328 = arith.constant 328 : index
      %c0_48 = arith.constant 0 : index
      %208 = vector.load %arg10[%c0_47, %c328, %c0_48] : memref<1x368x128xf32, #tpu.memory_space<vmem>>, vector<1x40x128xf32>
      %209 = vector.shape_cast %208 : vector<1x40x128xf32> to vector<40x128xf32>
      %210 = arith.addf %209, %207 : vector<40x128xf32>
      %c0_49 = arith.constant 0 : index
      %c328_50 = arith.constant 328 : index
      %c0_51 = arith.constant 0 : index
      %211 = vector.load %arg10[%c0_49, %c328_50, %c0_51] : memref<1x368x128xf32, #tpu.memory_space<vmem>>, vector<1x40x128xf32>
      %212 = vector.shape_cast %211 : vector<1x40x128xf32> to vector<40x128xf32>
      %213 = vector.shape_cast %210 : vector<40x128xf32> to vector<1x40x128xf32>
      tpu.vector_store %arg10[%c0_49, %c328_50, %c0_51], %213 {strides = array<i32>} : memref<1x368x128xf32, #tpu.memory_space<vmem>>, vector<1x40x128xf32>,
    } else {
    }
    return
  }
  func.func @transform_0(%arg0: i32, %arg1: i32, %arg2: memref<2xi32, #tpu.memory_space<smem>>) -> (i32, i32, i32) {
    %c0_i32 = arith.constant 0 : i32
    %c0_i32_0 = arith.constant 0 : i32
    return %arg0, %arg1, %c0_i32 : i32, i32, i32
  }
  func.func @transform_1(%arg0: i32, %arg1: i32, %arg2: memref<2xi32, #tpu.memory_space<smem>>) -> (i32, i32, i32) {
    %c0_i32 = arith.constant 0 : i32
    %c0_i32_0 = arith.constant 0 : i32
    return %arg0, %arg1, %c0_i32 : i32, i32, i32
  }
  func.func @transform_2(%arg0: i32, %arg1: i32, %arg2: memref<2xi32, #tpu.memory_space<smem>>) -> (i32, i32, i32) {
    %c0_i32 = arith.constant 0 : i32
    %c0_i32_0 = arith.constant 0 : i32
    return %arg0, %arg1, %c0_i32 : i32, i32, i32
  }
  func.func @transform_3(%arg0: i32, %arg1: i32, %arg2: memref<2xi32, #tpu.memory_space<smem>>) -> (i32, i32, i32) {
    %c0_i32 = arith.constant 0 : i32
    %c0_i32_0 = arith.constant 0 : i32
    return %arg0, %arg1, %c0_i32 : i32, i32, i32
  }
  func.func @transform_4(%arg0: i32, %arg1: i32, %arg2: memref<2xi32, #tpu.memory_space<smem>>) -> (i32, i32, i32) {
    %c0_i32 = arith.constant 0 : i32
    %c0_i32_0 = arith.constant 0 : i32
    return %arg0, %arg1, %c0_i32 : i32, i32, i32
  }
  func.func @transform_5(%arg0: i32, %arg1: i32, %arg2: memref<2xi32, #tpu.memory_space<smem>>) -> (i32, i32, i32) {
    %c0_i32 = arith.constant 0 : i32
    %c0_i32_0 = arith.constant 0 : i32
    return %arg0, %arg1, %c0_i32 : i32, i32, i32
  }
  func.func @transform_6(%arg0: i32, %arg1: i32, %arg2: memref<2xi32, #tpu.memory_space<smem>>) -> (i32, i32, i32, i32) {
    %c0_i32 = arith.constant 0 : i32
    %c0_i32_0 = arith.constant 0 : i32
    %c0_i32_1 = arith.constant 0 : i32
    return %arg0, %c0_i32, %arg1, %c0_i32_0 : i32, i32, i32, i32
  }
  func.func @transform_7(%arg0: i32, %arg1: i32, %arg2: memref<2xi32, #tpu.memory_space<smem>>) -> (i32, i32, i32) {
    %c0_i32 = arith.constant 0 : i32
    %c0_i32_0 = arith.constant 0 : i32
    %c0_i32_1 = arith.constant 0 : i32
    return %arg0, %c0_i32, %c0_i32_0 : i32, i32, i32
  }
}

</mosaic_0001>

<llo_original>
// kernel: pan_loss.1
$region0: #{pan_loss.1}
  #allocation0 [shape = 'u32[]', space=smem, size = 0x4, offset = 0x4, fixed_abs, tag = 'smem constant byte address 0x4 - core index']
  #allocation1 [shape = 'u32[72,128]{1,0:T(1,128)}', space=vmem, size = 0x9000, scoped, tag = 'internal scratch']
  #allocation2 [shape = 'f32[32,128]{1,0:T(8,128)}', space=vmem, size = 0x4000, scoped, tag = 'scratch operand']
  #allocation3 [shape = 's32[1]{0}', space=sflag, size = 0x4, scoped, tag = 'scoped memory for pan_loss.1']
  #allocation4 [shape = 'u8[512]{0}', space=smem, size = 0x200, scoped, tag = 'prefetched SMEM operand 0']
  %s0 = inlined_call_operand.vmem [shape: s32[2], index: 0, kind: input, shape index: {}]
  %s1 = inlined_call_operand.vmem [shape: bf16[2,32,128], index: 1, kind: input, shape index: {}]
  %s2 = inlined_call_operand.vmem [shape: s8[2,32,128], index: 2, kind: input, shape index: {}]
  %s3 = inlined_call_operand.vmem [shape: bf16[2,32,128], index: 3, kind: input, shape index: {}]
  %s4 = inlined_call_operand.vmem [shape: s8[2,32,128], index: 4, kind: input, shape index: {}]
  %s5 = inlined_call_operand.vmem [shape: s8[2,32,128], index: 5, kind: input, shape index: {}]
  %s6 = inlined_call_operand.vmem [shape: s8[2,32,128], index: 6, kind: input, shape index: {}]
  %s7 = inlined_call_operand.vmem [shape: bf16[2,4,32,128], index: 7, kind: input, shape index: {}]
  %s8 = inlined_call_operand.vmem [shape: f32[2,368,128], index: 8, kind: output, shape index: {}]
  %s9 = sld [smem:[#allocation0]]
  $region97: #{pan_loss.1} parent=0
    _
  %s11 = ssub.s32 1, %s9
  %s12 = scalar_select 0, %s11, %s9
  %s14 = sshll.u32 %s0, 4
  %s15 = int_to_ptr.vmem [resolvable:$true] %s14
  %17 = dma.vmem_to_smem %s15, 16, [#allocation4], [#allocation3]
  %19 = dma.done [#allocation3], 16
  %20 = sfence
  loop: start=0, step=1, limit=4
  $region2: #{pan_loss.1} parent=0 // loop_pre_header
    _
  $region3: #{pan_loss.1} parent=0 // loop_header
    %s22 = sphi 0, %s26
    %p23 = scmp.ge.s32.totalorder %s22, 4
    %s29 = sphi 0, %s41
    %s30 = sphi 0, %s37
    %s31 = sphi 0, %s29
    %s32 = sphi 0, %s30
    %s33 = sphi 0, %s31
    %s34 = sphi 0, %s32
    %s46 = sphi 0, %s48
    %s49 = sphi 0, %s46
    %s50 = sphi 0, %s49
    %s66 = sphi 0, %s50
    %s74 = sphi 0, %s76
    %s77 = sphi 0, %s74
    %s78 = sphi 0, %s77
    %s94 = sphi 0, %s78
    %s102 = sphi 0, %s104
    %s105 = sphi 0, %s102
    %s106 = sphi 0, %s105
    %s122 = sphi 0, %s106
    %s130 = sphi 0, %s132
    %s133 = sphi 0, %s130
    %s134 = sphi 0, %s133
    %s150 = sphi 0, %s134
    %s158 = sphi 0, %s160
    %s161 = sphi 0, %s158
    %s162 = sphi 0, %s161
    %s178 = sphi 0, %s162
    %s186 = sphi 0, %s188
    %s189 = sphi 0, %s186
    %s190 = sphi 0, %s189
    %s206 = sphi 0, %s190
    %s214 = sphi 0, %s216
    %s217 = sphi 0, %s214
    %s218 = sphi 0, %s217
    %s234 = sphi 0, %s218
    %s240 = sphi 0, %s242
    %s243 = sphi 0, %s240
    %s244 = sphi 0, %s243
    %s260 = sphi 0, %s244
  $region4: #{pan_loss.1} parent=0 // loop_header_branch
    %25 = sbr.rel (%p23) target = $region8
  $region5: #{pan_loss.1} parent=0 // loop_body
    %s27 = ssub.s32 %s22, 1
    %s28 = ssub.s32 %s22, 2
    %s35 = sadd.s32 1, %s30
    %p36 = scmp.ge.s32.totalorder %s35, 1
    %s37 = scalar_select %p36, 0, %s35
    %s38 = sadd.s32 1, %s29
    %s39 = scalar_select %p36, %s38, %s29
    %p40 = scmp.ge.s32.totalorder %s39, 2
    %s41 = scalar_select %p40, 0, %s39
    %s42 = ssub.s32 %s29, %s41
    %s43 = ssub.s32 %s30, %s37
    %s44 = sor.u32 %s42, %s43
    %p45 = scmp.eq.s32.totalorder %s44, 0
    %s47 = sadd.s32 %s46, 1
    %s48 = scalar_select %p45, %s46, %s47
    %p51 = pneg %p45
    %p52 = scmp.eq.s32.totalorder %s22, 1
    %p53 = por %p51, %p52
    %p54 = scmp.ne.s32.totalorder %s46, %s49
    %p55 = scmp.eq.s32.totalorder %s22, 0
    %p56 = por %p54, %p55
    %p57 = scmp.ne.s32.totalorder %s46, %s49
    %p58 = scmp.eq.s32.totalorder %s27, 1
    %p59 = por %p57, %p58
    %p60 = scmp.ne.s32.totalorder %s49, %s50
    %p61 = scmp.eq.s32.totalorder %s27, 0
    %p62 = por %p60, %p61
    %p63 = scmp.ne.s32.totalorder %s49, %s50
    %p64 = scmp.eq.s32.totalorder %s28, 1
    %p65 = por %p63, %p64
    %p67 = scmp.ne.s32.totalorder %s50, %s66
    %p68 = scmp.eq.s32.totalorder %s28, 0
    %p69 = por %p67, %p68
    %s70 = ssub.s32 %s29, %s41
    %s71 = ssub.s32 %s30, %s37
    %s72 = sor.u32 %s70, %s71
    %p73 = scmp.eq.s32.totalorder %s72, 0
    %s75 = sadd.s32 %s74, 1
    %s76 = scalar_select %p73, %s74, %s75
    %p79 = pneg %p73
    %p80 = scmp.eq.s32.totalorder %s22, 1
    %p81 = por %p79, %p80
    %p82 = scmp.ne.s32.totalorder %s74, %s77
    %p83 = scmp.eq.s32.totalorder %s22, 0
    %p84 = por %p82, %p83
    %p85 = scmp.ne.s32.totalorder %s74, %s77
    %p86 = scmp.eq.s32.totalorder %s27, 1
    %p87 = por %p85, %p86
    %p88 = scmp.ne.s32.totalorder %s77, %s78
    %p89 = scmp.eq.s32.totalorder %s27, 0
    %p90 = por %p88, %p89
    %p91 = scmp.ne.s32.totalorder %s77, %s78
    %p92 = scmp.eq.s32.totalorder %s28, 1
    %p93 = por %p91, %p92
    %p95 = scmp.ne.s32.totalorder %s78, %s94
    %p96 = scmp.eq.s32.totalorder %s28, 0
    %p97 = por %p95, %p96
    %s98 = ssub.s32 %s29, %s41
    %s99 = ssub.s32 %s30, %s37
    %s100 = sor.u32 %s98, %s99
    %p101 = scmp.eq.s32.totalorder %s100, 0
    %s103 = sadd.s32 %s102, 1
    %s104 = scalar_select %p101, %s102, %s103
    %p107 = pneg %p101
    %p108 = scmp.eq.s32.totalorder %s22, 1
    %p109 = por %p107, %p108
    %p110 = scmp.ne.s32.totalorder %s102, %s105
    %p111 = scmp.eq.s32.totalorder %s22, 0
    %p112 = por %p110, %p111
    %p113 = scmp.ne.s32.totalorder %s102, %s105
    %p114 = scmp.eq.s32.totalorder %s27, 1
    %p115 = por %p113, %p114
    %p116 = scmp.ne.s32.totalorder %s105, %s106
    %p117 = scmp.eq.s32.totalorder %s27, 0
    %p118 = por %p116, %p117
    %p119 = scmp.ne.s32.totalorder %s105, %s106
    %p120 = scmp.eq.s32.totalorder %s28, 1
    %p121 = por %p119, %p120
    %p123 = scmp.ne.s32.totalorder %s106, %s122
    %p124 = scmp.eq.s32.totalorder %s28, 0
    %p125 = por %p123, %p124
    %s126 = ssub.s32 %s29, %s41
    %s127 = ssub.s32 %s30, %s37
    %s128 = sor.u32 %s126, %s127
    %p129 = scmp.eq.s32.totalorder %s128, 0
    %s131 = sadd.s32 %s130, 1
    %s132 = scalar_select %p129, %s130, %s131
    %p135 = pneg %p129
    %p136 = scmp.eq.s32.totalorder %s22, 1
    %p137 = por %p135, %p136
    %p138 = scmp.ne.s32.totalorder %s130, %s133
    %p139 = scmp.eq.s32.totalorder %s22, 0
    %p140 = por %p138, %p139
    %p141 = scmp.ne.s32.totalorder %s130, %s133
    %p142 = scmp.eq.s32.totalorder %s27, 1
    %p143 = por %p141, %p142
    %p144 = scmp.ne.s32.totalorder %s133, %s134
    %p145 = scmp.eq.s32.totalorder %s27, 0
    %p146 = por %p144, %p145
    %p147 = scmp.ne.s32.totalorder %s133, %s134
    %p148 = scmp.eq.s32.totalorder %s28, 1
    %p149 = por %p147, %p148
    %p151 = scmp.ne.s32.totalorder %s134, %s150
    %p152 = scmp.eq.s32.totalorder %s28, 0
    %p153 = por %p151, %p152
    %s154 = ssub.s32 %s29, %s41
    %s155 = ssub.s32 %s30, %s37
    %s156 = sor.u32 %s154, %s155
    %p157 = scmp.eq.s32.totalorder %s156, 0
    %s159 = sadd.s32 %s158, 1
    %s160 = scalar_select %p157, %s158, %s159
    %p163 = pneg %p157
    %p164 = scmp.eq.s32.totalorder %s22, 1
    %p165 = por %p163, %p164
    %p166 = scmp.ne.s32.totalorder %s158, %s161
    %p167 = scmp.eq.s32.totalorder %s22, 0
    %p168 = por %p166, %p167
    %p169 = scmp.ne.s32.totalorder %s158, %s161
    %p170 = scmp.eq.s32.totalorder %s27, 1
    %p171 = por %p169, %p170
    %p172 = scmp.ne.s32.totalorder %s161, %s162
    %p173 = scmp.eq.s32.totalorder %s27, 0
    %p174 = por %p172, %p173
    %p175 = scmp.ne.s32.totalorder %s161, %s162
    %p176 = scmp.eq.s32.totalorder %s28, 1
    %p177 = por %p175, %p176
    %p179 = scmp.ne.s32.totalorder %s162, %s178
    %p180 = scmp.eq.s32.totalorder %s28, 0
    %p181 = por %p179, %p180
    %s182 = ssub.s32 %s29, %s41
    %s183 = ssub.s32 %s30, %s37
    %s184 = sor.u32 %s182, %s183
    %p185 = scmp.eq.s32.totalorder %s184, 0
    %s187 = sadd.s32 %s186, 1
    %s188 = scalar_select %p185, %s186, %s187
    %p191 = pneg %p185
    %p192 = scmp.eq.s32.totalorder %s22, 1
    %p193 = por %p191, %p192
    %p194 = scmp.ne.s32.totalorder %s186, %s189
    %p195 = scmp.eq.s32.totalorder %s22, 0
    %p196 = por %p194, %p195
    %p197 = scmp.ne.s32.totalorder %s186, %s189
    %p198 = scmp.eq.s32.totalorder %s27, 1
    %p199 = por %p197, %p198
    %p200 = scmp.ne.s32.totalorder %s189, %s190
    %p201 = scmp.eq.s32.totalorder %s27, 0
    %p202 = por %p200, %p201
    %p203 = scmp.ne.s32.totalorder %s189, %s190
    %p204 = scmp.eq.s32.totalorder %s28, 1
    %p205 = por %p203, %p204
    %p207 = scmp.ne.s32.totalorder %s190, %s206
    %p208 = scmp.eq.s32.totalorder %s28, 0
    %p209 = por %p207, %p208
    %s210 = ssub.s32 %s29, %s41
    %s211 = ssub.s32 %s30, %s37
    %s212 = sor.u32 %s210, %s211
    %p213 = scmp.eq.s32.totalorder %s212, 0
    %s215 = sadd.s32 %s214, 1
    %s216 = scalar_select %p213, %s214, %s215
    %p219 = pneg %p213
    %p220 = scmp.eq.s32.totalorder %s22, 1
    %p221 = por %p219, %p220
    %p222 = scmp.ne.s32.totalorder %s214, %s217
    %p223 = scmp.eq.s32.totalorder %s22, 0
    %p224 = por %p222, %p223
    %p225 = scmp.ne.s32.totalorder %s214, %s217
    %p226 = scmp.eq.s32.totalorder %s27, 1
    %p227 = por %p225, %p226
    %p228 = scmp.ne.s32.totalorder %s217, %s218
    %p229 = scmp.eq.s32.totalorder %s27, 0
    %p230 = por %p228, %p229
    %p231 = scmp.ne.s32.totalorder %s217, %s218
    %p232 = scmp.eq.s32.totalorder %s28, 1
    %p233 = por %p231, %p232
    %p235 = scmp.ne.s32.totalorder %s218, %s234
    %p236 = scmp.eq.s32.totalorder %s28, 0
    %p237 = por %p235, %p236
    %s238 = ssub.s32 %s29, %s41
    %p239 = scmp.eq.s32.totalorder %s238, 0
    %s241 = sadd.s32 %s240, 1
    %s242 = scalar_select %p239, %s240, %s241
    %p245 = pneg %p239
    %p246 = scmp.eq.s32.totalorder %s22, 1
    %p247 = por %p245, %p246
    %p248 = scmp.ne.s32.totalorder %s240, %s243
    %p249 = scmp.eq.s32.totalorder %s22, 0
    %p250 = por %p248, %p249
    %p251 = scmp.ne.s32.totalorder %s240, %s243
    %p252 = scmp.eq.s32.totalorder %s27, 1
    %p253 = por %p251, %p252
    %p254 = scmp.ne.s32.totalorder %s243, %s244
    %p255 = scmp.eq.s32.totalorder %s27, 0
    %p256 = por %p254, %p255
    %p257 = scmp.ne.s32.totalorder %s243, %s244
    %p258 = scmp.eq.s32.totalorder %s28, 1
    %p259 = por %p257, %p258
    %p261 = scmp.ne.s32.totalorder %s244, %s260
    %p262 = scmp.eq.s32.totalorder %s28, 0
    %p263 = por %p261, %p262
    %p264 = scmp.le.s32.totalorder 1, %s22
    %p265 = scmp.lt.s32.totalorder %s22, 3
    %p266 = pnand %p264, %p265
    %p267 = pneg %p266
    // Predicated region
    $region9: #{pan_loss.1} parent=5 // pred_check
      _
    $region10: #{pan_loss.1} parent=5 // pred_check_branch
      %269 = sbr.rel (%p266) target = $region12
    $region11: #{pan_loss.1} parent=5 // pred_region
      %s270 = ssub.s32 %s22, 1
    $region12: #{pan_loss.1} parent=5 // pred_fallthru
      _
    %p271 = scmp.lt.s32.totalorder %s22, 2
    // Predicated region
    $region13: #{pan_loss.1} parent=5 // pred_check
      %p272 = pneg %p271
    $region14: #{pan_loss.1} parent=5 // pred_check_branch
      %274 = sbr.rel (%p272) target = $region16
    $region15: #{pan_loss.1} parent=5 // pred_region
      // Predicated region
      $region17: #{pan_loss.1} parent=15 // pred_check
        %p275 = pneg %p56
      $region18: #{pan_loss.1} parent=15 // pred_check_branch
        %277 = sbr.rel (%p275) target = $region20
      $region19: #{pan_loss.1} parent=15 // pred_region
        %s278 = smul.u32 4, %s30
        %p279 = scmp.lt.s32.totalorder %s29, 1
        %s280 = scalar_select %p279, %s29, 1
        %p281 = scmp.lt.s32.totalorder %s278, 3
        %s282 = scalar_select %p281, %s278, 3
        %s283 = smul.addr %s280, 4
        %s284 = sadd.s32 %s282, %s283
        %s285 = smul.addr %s284, 4
        %s286 = scalar_lea.vmem %s1, %s285
        %s287 = smul.u32 4, %s30
      $region20: #{pan_loss.1} parent=15 // pred_fallthru
        _
      // Predicated region
      $region21: #{pan_loss.1} parent=15 // pred_check
        %p288 = pneg %p84
      $region22: #{pan_loss.1} parent=15 // pred_check_branch
        %290 = sbr.rel (%p288) target = $region24
      $region23: #{pan_loss.1} parent=15 // pred_region
        %p291 = scmp.lt.s32.totalorder %s29, 1
        %s292 = scalar_select %p291, %s29, 1
        %p293 = scmp.lt.s32.totalorder %s30, 0
        %s294 = scalar_select %p293, %s30, 0
        %s295 = sadd.s32 %s294, %s292
        %s296 = smul.addr %s295, 8
        %s297 = scalar_lea.vmem %s2, %s296
      $region24: #{pan_loss.1} parent=15 // pred_fallthru
        _
      // Predicated region
      $region25: #{pan_loss.1} parent=15 // pred_check
        %p298 = pneg %p112
      $region26: #{pan_loss.1} parent=15 // pred_check_branch
        %300 = sbr.rel (%p298) target = $region28
      $region27: #{pan_loss.1} parent=15 // pred_region
        %s301 = smul.u32 4, %s30
        %p302 = scmp.lt.s32.totalorder %s29, 1
        %s303 = scalar_select %p302, %s29, 1
        %p304 = scmp.lt.s32.totalorder %s301, 3
        %s305 = scalar_select %p304, %s301, 3
        %s306 = smul.addr %s303, 4
        %s307 = sadd.s32 %s305, %s306
        %s308 = smul.addr %s307, 4
        %s309 = scalar_lea.vmem %s3, %s308
        %s310 = smul.u32 4, %s30
      $region28: #{pan_loss.1} parent=15 // pred_fallthru
        _
      // Predicated region
      $region29: #{pan_loss.1} parent=15 // pred_check
        %p311 = pneg %p140
      $region30: #{pan_loss.1} parent=15 // pred_check_branch
        %313 = sbr.rel (%p311) target = $region32
      $region31: #{pan_loss.1} parent=15 // pred_region
        %p314 = scmp.lt.s32.totalorder %s29, 1
        %s315 = scalar_select %p314, %s29, 1
        %p316 = scmp.lt.s32.totalorder %s30, 0
        %s317 = scalar_select %p316, %s30, 0
        %s318 = sadd.s32 %s317, %s315
        %s319 = smul.addr %s318, 8
        %s320 = scalar_lea.vmem %s4, %s319
      $region32: #{pan_loss.1} parent=15 // pred_fallthru
        _
      // Predicated region
      $region33: #{pan_loss.1} parent=15 // pred_check
        %p321 = pneg %p168
      $region34: #{pan_loss.1} parent=15 // pred_check_branch
        %323 = sbr.rel (%p321) target = $region36
      $region35: #{pan_loss.1} parent=15 // pred_region
        %p324 = scmp.lt.s32.totalorder %s29, 1
        %s325 = scalar_select %p324, %s29, 1
        %p326 = scmp.lt.s32.totalorder %s30, 0
        %s327 = scalar_select %p326, %s30, 0
        %s328 = sadd.s32 %s327, %s325
        %s329 = smul.addr %s328, 8
        %s330 = scalar_lea.vmem %s5, %s329
      $region36: #{pan_loss.1} parent=15 // pred_fallthru
        _
      // Predicated region
      $region37: #{pan_loss.1} parent=15 // pred_check
        %p331 = pneg %p196
      $region38: #{pan_loss.1} parent=15 // pred_check_branch
        %333 = sbr.rel (%p331) target = $region40
      $region39: #{pan_loss.1} parent=15 // pred_region
        %p334 = scmp.lt.s32.totalorder %s29, 1
        %s335 = scalar_select %p334, %s29, 1
        %p336 = scmp.lt.s32.totalorder %s30, 0
        %s337 = scalar_select %p336, %s30, 0
        %s338 = sadd.s32 %s337, %s335
        %s339 = smul.addr %s338, 8
        %s340 = scalar_lea.vmem %s6, %s339
      $region40: #{pan_loss.1} parent=15 // pred_fallthru
        _
      // Predicated region
      $region41: #{pan_loss.1} parent=15 // pred_check
        %p341 = pneg %p224
      $region42: #{pan_loss.1} parent=15 // pred_check_branch
        %343 = sbr.rel (%p341) target = $region44
      $region43: #{pan_loss.1} parent=15 // pred_region
        %s344 = smul.u32 4, %s30
        %p345 = scmp.lt.s32.totalorder %s29, 1
        %s346 = scalar_select %p345, %s29, 1
        %p347 = scmp.lt.s32.totalorder %s344, 3
        %s348 = scalar_select %p347, %s344, 3
        %s349 = smul.addr %s346, 16
        %s350 = sadd.s32 %s348, %s349
        %s351 = smul.addr %s350, 4
        %s352 = scalar_lea.vmem %s7, %s351
        %s353 = smul.u32 4, %s30
      $region44: #{pan_loss.1} parent=15 // pred_fallthru
        _
    $region16: #{pan_loss.1} parent=5 // pred_fallthru
      _
    %p354 = scmp.le.s32.totalorder 1, %s22
    %p355 = scmp.lt.s32.totalorder %s22, 3
    %p356 = pnand %p354, %p355
    %p357 = pneg %p356
    // Predicated region
    $region45: #{pan_loss.1} parent=5 // pred_check
      _
    $region46: #{pan_loss.1} parent=5 // pred_check_branch
      %359 = sbr.rel (%p356) target = $region48
    $region47: #{pan_loss.1} parent=5 // pred_region
      %s360 = ssub.s32 %s22, 1
      %s361 = smul.u32 4, %s32
      %p362 = scmp.lt.s32.totalorder %s31, 1
      %s363 = scalar_select %p362, %s31, 1
      %p364 = scmp.lt.s32.totalorder %s361, 3
      %s365 = scalar_select %p364, %s361, 3
      %s366 = smul.addr %s363, 4
      %s367 = sadd.s32 %s365, %s366
      %s368 = smul.addr %s367, 4
      %s369 = scalar_lea.vmem %s1, %s368
      %p370 = pneg %p62
      %p371 = pneg %p59
      %p372 = scmp.lt.s32.totalorder %s31, 1
      %s373 = scalar_select %p372, %s31, 1
      %p374 = scmp.lt.s32.totalorder %s32, 0
      %s375 = scalar_select %p374, %s32, 0
      %s376 = sadd.s32 %s375, %s373
      %s377 = smul.addr %s376, 8
      %s378 = scalar_lea.vmem %s2, %s377
      %p379 = pneg %p90
      %p380 = pneg %p87
      %s381 = smul.u32 4, %s32
      %p382 = scmp.lt.s32.totalorder %s31, 1
      %s383 = scalar_select %p382, %s31, 1
      %p384 = scmp.lt.s32.totalorder %s381, 3
      %s385 = scalar_select %p384, %s381, 3
      %s386 = smul.addr %s383, 4
      %s387 = sadd.s32 %s385, %s386
      %s388 = smul.addr %s387, 4
      %s389 = scalar_lea.vmem %s3, %s388
      %p390 = pneg %p118
      %p391 = pneg %p115
      %p392 = scmp.lt.s32.totalorder %s31, 1
      %s393 = scalar_select %p392, %s31, 1
      %p394 = scmp.lt.s32.totalorder %s32, 0
      %s395 = scalar_select %p394, %s32, 0
      %s396 = sadd.s32 %s395, %s393
      %s397 = smul.addr %s396, 8
      %s398 = scalar_lea.vmem %s4, %s397
      %p399 = pneg %p146
      %p400 = pneg %p143
      %p401 = scmp.lt.s32.totalorder %s31, 1
      %s402 = scalar_select %p401, %s31, 1
      %p403 = scmp.lt.s32.totalorder %s32, 0
      %s404 = scalar_select %p403, %s32, 0
      %s405 = sadd.s32 %s404, %s402
      %s406 = smul.addr %s405, 8
      %s407 = scalar_lea.vmem %s5, %s406
      %p408 = pneg %p174
      %p409 = pneg %p171
      %p410 = scmp.lt.s32.totalorder %s31, 1
      %s411 = scalar_select %p410, %s31, 1
      %p412 = scmp.lt.s32.totalorder %s32, 0
      %s413 = scalar_select %p412, %s32, 0
      %s414 = sadd.s32 %s413, %s411
      %s415 = smul.addr %s414, 8
      %s416 = scalar_lea.vmem %s6, %s415
      %p417 = pneg %p202
      %p418 = pneg %p199
      %s419 = smul.u32 4, %s32
      %p420 = scmp.lt.s32.totalorder %s31, 1
      %s421 = scalar_select %p420, %s31, 1
      %p422 = scmp.lt.s32.totalorder %s419, 3
      %s423 = scalar_select %p422, %s419, 3
      %s424 = smul.addr %s421, 16
      %s425 = sadd.s32 %s423, %s424
      %s426 = smul.addr %s425, 4
      %s427 = scalar_lea.vmem %s7, %s426
      %p428 = pneg %p230
      %p429 = pneg %p227
      %p430 = pneg %p256
      %p431 = pneg %p253
      %p432 = scmp.lt.s32.totalorder %s31, 1
      %s433 = scalar_select %p432, %s31, 1
      %s434 = smul.addr %s433, 46
      %s435 = smul.addr %s434, 8
      %s436 = scalar_lea.vmem %s8, %s435
      %s437 = smul.u32 4, %s32
      %p438 = scmp.lt.s32.totalorder %s31, 1
      %s439 = scalar_select %p438, %s31, 1
      %p440 = scmp.lt.s32.totalorder %s437, 3
      %s441 = scalar_select %p440, %s437, 3
      %s442 = smul.addr %s439, 4
      %s443 = sadd.s32 %s441, %s442
      %s444 = smul.addr %s443, 4
      %s445 = scalar_lea.vmem %s1, %s444
      %s446 = smul.u32 4, %s32
      %p447 = scmp.lt.s32.totalorder %s31, 1
      %s448 = scalar_select %p447, %s31, 1
      %p449 = scmp.lt.s32.totalorder %s32, 0
      %s450 = scalar_select %p449, %s32, 0
      %s451 = sadd.s32 %s450, %s448
      %s452 = smul.addr %s451, 8
      %s453 = scalar_lea.vmem %s2, %s452
      %s454 = smul.u32 4, %s32
      %p455 = scmp.lt.s32.totalorder %s31, 1
      %s456 = scalar_select %p455, %s31, 1
      %p457 = scmp.lt.s32.totalorder %s454, 3
      %s458 = scalar_select %p457, %s454, 3
      %s459 = smul.addr %s456, 4
      %s460 = sadd.s32 %s458, %s459
      %s461 = smul.addr %s460, 4
      %s462 = scalar_lea.vmem %s3, %s461
      %s463 = smul.u32 4, %s32
      %p464 = scmp.lt.s32.totalorder %s31, 1
      %s465 = scalar_select %p464, %s31, 1
      %p466 = scmp.lt.s32.totalorder %s32, 0
      %s467 = scalar_select %p466, %s32, 0
      %s468 = sadd.s32 %s467, %s465
      %s469 = smul.addr %s468, 8
      %s470 = scalar_lea.vmem %s4, %s469
      %p471 = scmp.lt.s32.totalorder %s31, 1
      %s472 = scalar_select %p471, %s31, 1
      %p473 = scmp.lt.s32.totalorder %s32, 0
      %s474 = scalar_select %p473, %s32, 0
      %s475 = sadd.s32 %s474, %s472
      %s476 = smul.addr %s475, 8
      %s477 = scalar_lea.vmem %s5, %s476
      %p478 = scmp.lt.s32.totalorder %s31, 1
      %s479 = scalar_select %p478, %s31, 1
      %p480 = scmp.lt.s32.totalorder %s32, 0
      %s481 = scalar_select %p480, %s32, 0
      %s482 = sadd.s32 %s481, %s479
      %s483 = smul.addr %s482, 8
      %s484 = scalar_lea.vmem %s6, %s483
      %s485 = smul.u32 4, %s32
      %p486 = scmp.lt.s32.totalorder %s31, 1
      %s487 = scalar_select %p486, %s31, 1
      %p488 = scmp.lt.s32.totalorder %s485, 3
      %s489 = scalar_select %p488, %s485, 3
      %s490 = smul.addr %s487, 16
      %s491 = sadd.s32 %s489, %s490
      %s492 = smul.addr %s491, 4
      %s493 = scalar_lea.vmem %s7, %s492
      %s494 = smul.u32 4, %s32
      %p495 = scmp.lt.s32.totalorder %s31, 1
      %s496 = scalar_select %p495, %s31, 1
      %s497 = smul.addr %s496, 46
      %s498 = smul.addr %s497, 8
      %s499 = scalar_lea.vmem %s8, %s498
      %p500 = scmp.eq.s32.totalorder %s32, 0
      // Predicated region
      $region49: #{pan_loss.1} parent=47 // pred_check
        %p501 = pneg %p500
      $region50: #{pan_loss.1} parent=47 // pred_check_branch
        %503 = sbr.rel (%p501) target = $region52
      $region51: #{pan_loss.1} parent=47 // pred_region
        %504 = vst [vmem:[%s499] sm:$0xff] 0.0
        %505 = vst [vmem:[%s499 + $0x8] sm:$0xff] 0.0
        %506 = vst [vmem:[%s499 + $0x10] sm:$0xff] 0.0
        %507 = vst [vmem:[%s499 + $0x18] sm:$0xff] 0.0
        %508 = vst [vmem:[%s499 + $0x20] sm:$0xff] 0.0
        %509 = vst [vmem:[%s499 + $0x28] sm:$0xff] 0.0
        %510 = vst [vmem:[%s499 + $0x30] sm:$0xff] 0.0
        %511 = vst [vmem:[%s499 + $0x38] sm:$0xff] 0.0
        %512 = vst [vmem:[%s499 + $0x40] sm:$0xff] 0.0
        %513 = vst [vmem:[%s499 + $0x48] sm:$0xff] 0.0
        %514 = vst [vmem:[%s499 + $0x50] sm:$0xff] 0.0
        %515 = vst [vmem:[%s499 + $0x58] sm:$0xff] 0.0
        %516 = vst [vmem:[%s499 + $0x60] sm:$0xff] 0.0
        %517 = vst [vmem:[%s499 + $0x68] sm:$0xff] 0.0
        %518 = vst [vmem:[%s499 + $0x70] sm:$0xff] 0.0
        %519 = vst [vmem:[%s499 + $0x78] sm:$0xff] 0.0
        %520 = vst [vmem:[%s499 + $0x80] sm:$0xff] 0.0
        %521 = vst [vmem:[%s499 + $0x88] sm:$0xff] 0.0
        %522 = vst [vmem:[%s499 + $0x90] sm:$0xff] 0.0
        %523 = vst [vmem:[%s499 + $0x98] sm:$0xff] 0.0
        %524 = vst [vmem:[%s499 + $0xa0] sm:$0xff] 0.0
        %525 = vst [vmem:[%s499 + $0xa8] sm:$0xff] 0.0
        %526 = vst [vmem:[%s499 + $0xb0] sm:$0xff] 0.0
        %527 = vst [vmem:[%s499 + $0xb8] sm:$0xff] 0.0
        %528 = vst [vmem:[%s499 + $0xc0] sm:$0xff] 0.0
        %529 = vst [vmem:[%s499 + $0xc8] sm:$0xff] 0.0
        %530 = vst [vmem:[%s499 + $0xd0] sm:$0xff] 0.0
        %531 = vst [vmem:[%s499 + $0xd8] sm:$0xff] 0.0
        %532 = vst [vmem:[%s499 + $0xe0] sm:$0xff] 0.0
        %533 = vst [vmem:[%s499 + $0xe8] sm:$0xff] 0.0
        %534 = vst [vmem:[%s499 + $0xf0] sm:$0xff] 0.0
        %535 = vst [vmem:[%s499 + $0xf8] sm:$0xff] 0.0
        %536 = vst [vmem:[%s499 + $0x100] sm:$0xff] 0.0
        %537 = vst [vmem:[%s499 + $0x108] sm:$0xff] 0.0
        %538 = vst [vmem:[%s499 + $0x110] sm:$0xff] 0.0
        %539 = vst [vmem:[%s499 + $0x118] sm:$0xff] 0.0
        %540 = vst [vmem:[%s499 + $0x120] sm:$0xff] 0.0
        %541 = vst [vmem:[%s499 + $0x128] sm:$0xff] 0.0
        %542 = vst [vmem:[%s499 + $0x130] sm:$0xff] 0.0
        %543 = vst [vmem:[%s499 + $0x138] sm:$0xff] 0.0
        %544 = vst [vmem:[%s499 + $0x140] sm:$0xff] 0.0
        %545 = vst [vmem:[%s499 + $0x148] sm:$0xff] 0.0
        %546 = vst [vmem:[%s499 + $0x150] sm:$0xff] 0.0
        %547 = vst [vmem:[%s499 + $0x158] sm:$0xff] 0.0
        %548 = vst [vmem:[%s499 + $0x160] sm:$0xff] 0.0
        %549 = vst [vmem:[%s499 + $0x168] sm:$0xff] 0.0
      $region52: #{pan_loss.1} parent=47 // pred_fallthru
        _
      %v550 = vld [vmem:[%s445] sm:$0xf]
      %v551 = vld [vmem:[%s445 + $0x4] sm:$0xf]
      %v552 = vld [vmem:[%s445 + $0x8] sm:$0xf]
      %v553 = vld [vmem:[%s445 + $0xc] sm:$0xf]
      %v554 = vunpack.c.l.bf16 %v550
      %v555 = vunpack.c.l.bf16 %v551
      %v556 = vunpack.c.l.bf16 %v552
      %v557 = vunpack.c.l.bf16 %v553
      %v558 = vld [vmem:[%s453] sm:$0xff]
      %v559 = vunpack.c.0.s8 %v558
      %v560 = vunpack.c.1.s8 %v558
      %v561 = vunpack.c.2.s8 %v558
      %v562 = vunpack.c.3.s8 %v558
      %v563 = vcvt.s32.f32 %v559
      %v564 = vcvt.s32.f32 %v560
      %v565 = vcvt.s32.f32 %v561
      %v566 = vcvt.s32.f32 %v562
      %v567 = vxor.u32 %v554, 2147483648
      %v568 = vxor.u32 %v555, 2147483648
      %v569 = vxor.u32 %v556, 2147483648
      %v570 = vxor.u32 %v557, 2147483648
      %v571 = vmul.f32 %v567, 1.442695
      %v572 = vpow.pop %v571
      %v573 = vmul.f32 %v568, 1.442695
      %v574 = vpow.pop %v573
      %v575 = vmul.f32 %v569, 1.442695
      %v576 = vpow.pop %v575
      %v577 = vmul.f32 %v570, 1.442695
      %v578 = vpow.pop %v577
      %v579 = vadd.f32 %v572, 1.0
      %v580 = vadd.f32 %v574, 1.0
      %v581 = vadd.f32 %v576, 1.0
      %v582 = vadd.f32 %v578, 1.0
      %v583 = vrcp.pop %v579
      %v584 = vmul.f32 %v579, %v583
      %v585 = vsub.f32 1.0, %v584
      %v586 = vmul.f32 %v583, %v585
      %v587 = vadd.f32 %v583, %v586
      %vm588 = vweird.f32 %v579
      %vm589 = vweird.f32 %v583
      %vm590 = vmor %vm588, %vm589
      %v591 = vsel %vm590, %v583, %v587
      %v592 = vand.u32 2147483647, %v579
      %vm593 = vcmp.eq.f32.partialorder %v592, 8.507059e+37
      %v594 = vand.u32 %v579, 2147483648
      %v595 = vor.u32 1.1754944e-38, %v594
      %v596 = vsel %vm593, %v595, %v591
      %v597 = vmul.f32 1.0, %v596
      %v598 = vrcp.pop %v580
      %v599 = vmul.f32 %v580, %v598
      %v600 = vsub.f32 1.0, %v599
      %v601 = vmul.f32 %v598, %v600
      %v602 = vadd.f32 %v598, %v601
      %vm603 = vweird.f32 %v580
      %vm604 = vweird.f32 %v598
      %vm605 = vmor %vm603, %vm604
      %v606 = vsel %vm605, %v598, %v602
      %v607 = vand.u32 2147483647, %v580
      %vm608 = vcmp.eq.f32.partialorder %v607, 8.507059e+37
      %v609 = vand.u32 %v580, 2147483648
      %v610 = vor.u32 1.1754944e-38, %v609
      %v611 = vsel %vm608, %v610, %v606
      %v612 = vmul.f32 1.0, %v611
      %v613 = vrcp.pop %v581
      %v614 = vmul.f32 %v581, %v613
      %v615 = vsub.f32 1.0, %v614
      %v616 = vmul.f32 %v613, %v615
      %v617 = vadd.f32 %v613, %v616
      %vm618 = vweird.f32 %v581
      %vm619 = vweird.f32 %v613
      %vm620 = vmor %vm618, %vm619
      %v621 = vsel %vm620, %v613, %v617
      %v622 = vand.u32 2147483647, %v581
      %vm623 = vcmp.eq.f32.partialorder %v622, 8.507059e+37
      %v624 = vand.u32 %v581, 2147483648
      %v625 = vor.u32 1.1754944e-38, %v624
      %v626 = vsel %vm623, %v625, %v621
      %v627 = vmul.f32 1.0, %v626
      %v628 = vrcp.pop %v582
      %v629 = vmul.f32 %v582, %v628
      %v630 = vsub.f32 1.0, %v629
      %v631 = vmul.f32 %v628, %v630
      %v632 = vadd.f32 %v628, %v631
      %vm633 = vweird.f32 %v582
      %vm634 = vweird.f32 %v628
      %vm635 = vmor %vm633, %vm634
      %v636 = vsel %vm635, %v628, %v632
      %v637 = vand.u32 2147483647, %v582
      %vm638 = vcmp.eq.f32.partialorder %v637, 8.507059e+37
      %v639 = vand.u32 %v582, 2147483648
      %v640 = vor.u32 1.1754944e-38, %v639
      %v641 = vsel %vm638, %v640, %v636
      %v642 = vmul.f32 1.0, %v641
      %v643 = vmul.f32 %v597, %v563
      %v644 = vmul.f32 %v612, %v564
      %v645 = vmul.f32 %v627, %v565
      %v646 = vmul.f32 %v642, %v566
      %v647 = vadd.f32 %v643, 0.0
      %v648 = vadd.f32 %v644, 0.0
      %v649 = vadd.f32 %v645, 0.0
      %v650 = vadd.f32 %v646, 0.0
      %v651 = vmul.f32 %v597, %v597
      %v652 = vmul.f32 %v612, %v612
      %v653 = vmul.f32 %v627, %v627
      %v654 = vmul.f32 %v642, %v642
      %v655 = vadd.f32 %v651, 0.0
      %v656 = vadd.f32 %v652, 0.0
      %v657 = vadd.f32 %v653, 0.0
      %v658 = vadd.f32 %v654, 0.0
      %v659 = vadd.f32 %v563, 0.0
      %v660 = vadd.f32 %v564, 0.0
      %v661 = vadd.f32 %v565, 0.0
      %v662 = vadd.f32 %v566, 0.0
      %v663 = vld [vmem:[%s462] sm:$0xf]
      %v664 = vld [vmem:[%s462 + $0x4] sm:$0xf]
      %v665 = vld [vmem:[%s462 + $0x8] sm:$0xf]
      %v666 = vld [vmem:[%s462 + $0xc] sm:$0xf]
      %v667 = vunpack.c.l.bf16 %v663
      %v668 = vunpack.c.l.bf16 %v664
      %v669 = vunpack.c.l.bf16 %v665
      %v670 = vunpack.c.l.bf16 %v666
      %v671 = vld [vmem:[%s470] sm:$0xff]
      %v672 = vunpack.c.0.s8 %v671
      %v673 = vunpack.c.1.s8 %v671
      %v674 = vunpack.c.2.s8 %v671
      %v675 = vunpack.c.3.s8 %v671
      %v676 = vcvt.s32.f32 %v672
      %v677 = vcvt.s32.f32 %v673
      %v678 = vcvt.s32.f32 %v674
      %v679 = vcvt.s32.f32 %v675
      %v680 = vxor.u32 %v667, 2147483648
      %v681 = vxor.u32 %v668, 2147483648
      %v682 = vxor.u32 %v669, 2147483648
      %v683 = vxor.u32 %v670, 2147483648
      %v684 = vmul.f32 %v680, 1.442695
      %v685 = vpow.pop %v684
      %v686 = vmul.f32 %v681, 1.442695
      %v687 = vpow.pop %v686
      %v688 = vmul.f32 %v682, 1.442695
      %v689 = vpow.pop %v688
      %v690 = vmul.f32 %v683, 1.442695
      %v691 = vpow.pop %v690
      %v692 = vadd.f32 %v685, 1.0
      %v693 = vadd.f32 %v687, 1.0
      %v694 = vadd.f32 %v689, 1.0
      %v695 = vadd.f32 %v691, 1.0
      %v696 = vrcp.pop %v692
      %v697 = vmul.f32 %v692, %v696
      %v698 = vsub.f32 1.0, %v697
      %v699 = vmul.f32 %v696, %v698
      %v700 = vadd.f32 %v696, %v699
      %vm701 = vweird.f32 %v692
      %vm702 = vweird.f32 %v696
      %vm703 = vmor %vm701, %vm702
      %v704 = vsel %vm703, %v696, %v700
      %v705 = vand.u32 2147483647, %v692
      %vm706 = vcmp.eq.f32.partialorder %v705, 8.507059e+37
      %v707 = vand.u32 %v692, 2147483648
      %v708 = vor.u32 1.1754944e-38, %v707
      %v709 = vsel %vm706, %v708, %v704
      %v710 = vmul.f32 1.0, %v709
      %v711 = vrcp.pop %v693
      %v712 = vmul.f32 %v693, %v711
      %v713 = vsub.f32 1.0, %v712
      %v714 = vmul.f32 %v711, %v713
      %v715 = vadd.f32 %v711, %v714
      %vm716 = vweird.f32 %v693
      %vm717 = vweird.f32 %v711
      %vm718 = vmor %vm716, %vm717
      %v719 = vsel %vm718, %v711, %v715
      %v720 = vand.u32 2147483647, %v693
      %vm721 = vcmp.eq.f32.partialorder %v720, 8.507059e+37
      %v722 = vand.u32 %v693, 2147483648
      %v723 = vor.u32 1.1754944e-38, %v722
      %v724 = vsel %vm721, %v723, %v719
      %v725 = vmul.f32 1.0, %v724
      %v726 = vrcp.pop %v694
      %v727 = vmul.f32 %v694, %v726
      %v728 = vsub.f32 1.0, %v727
      %v729 = vmul.f32 %v726, %v728
      %v730 = vadd.f32 %v726, %v729
      %vm731 = vweird.f32 %v694
      %vm732 = vweird.f32 %v726
      %vm733 = vmor %vm731, %vm732
      %v734 = vsel %vm733, %v726, %v730
      %v735 = vand.u32 2147483647, %v694
      %vm736 = vcmp.eq.f32.partialorder %v735, 8.507059e+37
      %v737 = vand.u32 %v694, 2147483648
      %v738 = vor.u32 1.1754944e-38, %v737
      %v739 = vsel %vm736, %v738, %v734
      %v740 = vmul.f32 1.0, %v739
      %v741 = vrcp.pop %v695
      %v742 = vmul.f32 %v695, %v741
      %v743 = vsub.f32 1.0, %v742
      %v744 = vmul.f32 %v741, %v743
      %v745 = vadd.f32 %v741, %v744
      %vm746 = vweird.f32 %v695
      %vm747 = vweird.f32 %v741
      %vm748 = vmor %vm746, %vm747
      %v749 = vsel %vm748, %v741, %v745
      %v750 = vand.u32 2147483647, %v695
      %vm751 = vcmp.eq.f32.partialorder %v750, 8.507059e+37
      %v752 = vand.u32 %v695, 2147483648
      %v753 = vor.u32 1.1754944e-38, %v752
      %v754 = vsel %vm751, %v753, %v749
      %v755 = vmul.f32 1.0, %v754
      %v756 = vmul.f32 %v710, %v676
      %v757 = vmul.f32 %v725, %v677
      %v758 = vmul.f32 %v740, %v678
      %v759 = vmul.f32 %v755, %v679
      %v760 = vadd.f32 %v756, 0.0
      %v761 = vadd.f32 %v757, 0.0
      %v762 = vadd.f32 %v758, 0.0
      %v763 = vadd.f32 %v759, 0.0
      %v764 = vmul.f32 %v710, %v710
      %v765 = vmul.f32 %v725, %v725
      %v766 = vmul.f32 %v740, %v740
      %v767 = vmul.f32 %v755, %v755
      %v768 = vadd.f32 %v764, 0.0
      %v769 = vadd.f32 %v765, 0.0
      %v770 = vadd.f32 %v766, 0.0
      %v771 = vadd.f32 %v767, 0.0
      %v772 = vadd.f32 %v676, 0.0
      %v773 = vadd.f32 %v677, 0.0
      %v774 = vadd.f32 %v678, 0.0
      %v775 = vadd.f32 %v679, 0.0
      %v776 = vld [vmem:[%s493] sm:$0xf]
      %v777 = vld [vmem:[%s493 + $0x4] sm:$0xf]
      %v778 = vld [vmem:[%s493 + $0x8] sm:$0xf]
      %v779 = vld [vmem:[%s493 + $0xc] sm:$0xf]
      %v780 = vunpack.c.l.bf16 %v776
      %v781 = vunpack.c.l.bf16 %v777
      %v782 = vunpack.c.l.bf16 %v778
      %v783 = vunpack.c.l.bf16 %v779
      %v784 = vmul.f32 %v780, %v780
      %v785 = vmul.f32 %v781, %v781
      %v786 = vmul.f32 %v782, %v782
      %v787 = vmul.f32 %v783, %v783
      %v788 = vadd.f32 %v784, 0.0
      %v789 = vadd.f32 %v785, 0.0
      %v790 = vadd.f32 %v786, 0.0
      %v791 = vadd.f32 %v787, 0.0
      %s792 = sadd.s32 0, 4
      %s793 = smul.addr %s792, 4
      %s794 = scalar_lea.vmem %s493, %s793
      %v795 = vld [vmem:[%s794] sm:$0xf]
      %v796 = vld [vmem:[%s794 + $0x4] sm:$0xf]
      %v797 = vld [vmem:[%s794 + $0x8] sm:$0xf]
      %v798 = vld [vmem:[%s794 + $0xc] sm:$0xf]
      %v799 = vunpack.c.l.bf16 %v795
      %v800 = vunpack.c.l.bf16 %v796
      %v801 = vunpack.c.l.bf16 %v797
      %v802 = vunpack.c.l.bf16 %v798
      %v803 = vmul.f32 %v799, %v799
      %v804 = vmul.f32 %v800, %v800
      %v805 = vmul.f32 %v801, %v801
      %v806 = vmul.f32 %v802, %v802
      %v807 = vadd.f32 %v788, %v803
      %v808 = vadd.f32 %v789, %v804
      %v809 = vadd.f32 %v790, %v805
      %v810 = vadd.f32 %v791, %v806
      %s811 = sadd.s32 0, 8
      %s812 = smul.addr %s811, 4
      %s813 = scalar_lea.vmem %s493, %s812
      %v814 = vld [vmem:[%s813] sm:$0xf]
      %v815 = vld [vmem:[%s813 + $0x4] sm:$0xf]
      %v816 = vld [vmem:[%s813 + $0x8] sm:$0xf]
      %v817 = vld [vmem:[%s813 + $0xc] sm:$0xf]
      %v818 = vunpack.c.l.bf16 %v814
      %v819 = vunpack.c.l.bf16 %v815
      %v820 = vunpack.c.l.bf16 %v816
      %v821 = vunpack.c.l.bf16 %v817
      %v822 = vmul.f32 %v818, %v818
      %v823 = vmul.f32 %v819, %v819
      %v824 = vmul.f32 %v820, %v820
      %v825 = vmul.f32 %v821, %v821
      %v826 = vadd.f32 %v807, %v822
      %v827 = vadd.f32 %v808, %v823
      %v828 = vadd.f32 %v809, %v824
      %v829 = vadd.f32 %v810, %v825
      %s830 = sadd.s32 0, 12
      %s831 = smul.addr %s830, 4
      %s832 = scalar_lea.vmem %s493, %s831
      %v833 = vld [vmem:[%s832] sm:$0xf]
      %v834 = vld [vmem:[%s832 + $0x4] sm:$0xf]
      %v835 = vld [vmem:[%s832 + $0x8] sm:$0xf]
      %v836 = vld [vmem:[%s832 + $0xc] sm:$0xf]
      %v837 = vunpack.c.l.bf16 %v833
      %v838 = vunpack.c.l.bf16 %v834
      %v839 = vunpack.c.l.bf16 %v835
      %v840 = vunpack.c.l.bf16 %v836
      %v841 = vmul.f32 %v837, %v837
      %v842 = vmul.f32 %v838, %v838
      %v843 = vmul.f32 %v839, %v839
      %v844 = vmul.f32 %v840, %v840
      %v845 = vadd.f32 %v826, %v841
      %v846 = vadd.f32 %v827, %v842
      %v847 = vadd.f32 %v828, %v843
      %v848 = vadd.f32 %v829, %v844
      %849 = vst [vmem:[#allocation2] sm:$0xff] %v845
      %850 = vst [vmem:[#allocation2 + $0x8] sm:$0xff] %v846
      %851 = vst [vmem:[#allocation2 + $0x10] sm:$0xff] %v847
      %852 = vst [vmem:[#allocation2 + $0x18] sm:$0xff] %v848
      %v853 = vadd.f32 %v647, %v648
      %v854 = vadd.f32 %v853, %v649
      %v855 = vadd.f32 %v854, %v650
      %v856 = vadd.f32 %v655, %v656
      %v857 = vadd.f32 %v856, %v657
      %v858 = vadd.f32 %v857, %v658
      %v859 = vadd.f32 %v659, %v660
      %v860 = vadd.f32 %v859, %v661
      %v861 = vadd.f32 %v860, %v662
      %v862 = vadd.f32 %v760, %v761
      %v863 = vadd.f32 %v862, %v762
      %v864 = vadd.f32 %v863, %v763
      %v865 = vadd.f32 %v768, %v769
      %v866 = vadd.f32 %v865, %v770
      %v867 = vadd.f32 %v866, %v771
      %v868 = vadd.f32 %v772, %v773
      %v869 = vadd.f32 %v868, %v774
      %v870 = vadd.f32 %v869, %v775
      %v871 = vld [vmem:[%s499] sm:$0xff]
      %v872 = vld [vmem:[%s499 + $0x8] sm:$0xff]
      %v873 = vld [vmem:[%s499 + $0x10] sm:$0xff]
      %v874 = vld [vmem:[%s499 + $0x18] sm:$0xff]
      %v875 = vld [vmem:[%s499 + $0x20] sm:$0xff]
      %v876 = vld [vmem:[%s499 + $0x28] sm:$0xff]
      %v877 = vadd.f32 %v871, %v855
      %v878 = vadd.f32 %v872, %v858
      %v879 = vadd.f32 %v873, %v861
      %v880 = vadd.f32 %v874, %v864
      %v881 = vadd.f32 %v875, %v867
      %v882 = vadd.f32 %v876, %v870
      %883 = vst [vmem:[%s499] sm:$0xff] %v877
      %884 = vst [vmem:[%s499 + $0x8] sm:$0xff] %v878
      %885 = vst [vmem:[%s499 + $0x10] sm:$0xff] %v879
      %886 = vst [vmem:[%s499 + $0x18] sm:$0xff] %v880
      %887 = vst [vmem:[%s499 + $0x20] sm:$0xff] %v881
      %888 = vst [vmem:[%s499 + $0x28] sm:$0xff] %v882
      %s889 = sld [smem:[#allocation4 + %s31]]
      %p890 = scmp.ge.s32.totalorder %s889, 1
      // Predicated region
      $region53: #{pan_loss.1} parent=47 // pred_check
        %p891 = pneg %p890
      $region54: #{pan_loss.1} parent=47 // pred_check_branch
        %893 = sbr.rel (%p891) target = $region56
      $region55: #{pan_loss.1} parent=47 // pred_region
        %v894 = vld [vmem:[%s477] sm:$0xff]
        %v895 = vunpack.c.0.s8 %v894
        %v896 = vunpack.c.1.s8 %v894
        %v897 = vunpack.c.2.s8 %v894
        %v898 = vunpack.c.3.s8 %v894
        %v899 = vcvt.s32.f32 %v895
        %v900 = vcvt.s32.f32 %v896
        %v901 = vcvt.s32.f32 %v897
        %v902 = vcvt.s32.f32 %v898
        %vm903 = vcmp.eq.f32.partialorder %v899, 1.0
        %vm904 = vcmp.eq.f32.partialorder %v900, 1.0
        %vm905 = vcmp.eq.f32.partialorder %v901, 1.0
        %vm906 = vcmp.eq.f32.partialorder %v902, 1.0
        %v907 = vsel %vm903, 1, 0
        %v908 = vsel %vm904, 1, 0
        %v909 = vsel %vm905, 1, 0
        %v910 = vsel %vm906, 1, 0
        %v911 = vcvt.s32.f32 %v907
        %v912 = vcvt.s32.f32 %v908
        %v913 = vcvt.s32.f32 %v909
        %v914 = vcvt.s32.f32 %v910
        %v915 = vld [vmem:[%s484] sm:$0xff]
        %v916 = vunpack.c.0.s8 %v915
        %v917 = vunpack.c.1.s8 %v915
        %v918 = vunpack.c.2.s8 %v915
        %v919 = vunpack.c.3.s8 %v915
        %v920 = vcvt.s32.f32 %v916
        %v921 = vcvt.s32.f32 %v917
        %v922 = vcvt.s32.f32 %v918
        %v923 = vcvt.s32.f32 %v919
        %vm924 = vcmp.eq.f32.partialorder %v920, 1.0
        %vm925 = vcmp.eq.f32.partialorder %v921, 1.0
        %vm926 = vcmp.eq.f32.partialorder %v922, 1.0
        %vm927 = vcmp.eq.f32.partialorder %v923, 1.0
        %v928 = vsel %vm924, 1, 0
        %v929 = vsel %vm925, 1, 0
        %v930 = vsel %vm926, 1, 0
        %v931 = vsel %vm927, 1, 0
        %v932 = vcvt.s32.f32 %v928
        %v933 = vcvt.s32.f32 %v929
        %v934 = vcvt.s32.f32 %v930
        %v935 = vcvt.s32.f32 %v931
        %v936 = vld [vmem:[#allocation2] sm:$0xff]
        %v937 = vld [vmem:[#allocation2 + $0x8] sm:$0xff]
        %v938 = vld [vmem:[#allocation2 + $0x10] sm:$0xff]
        %v939 = vld [vmem:[#allocation2 + $0x18] sm:$0xff]
        %v940 = vmul.f32 %v936, %v911
        %v941 = vmul.f32 %v937, %v912
        %v942 = vmul.f32 %v938, %v913
        %v943 = vmul.f32 %v939, %v914
        %v944 = vadd.f32 %v932, 0.0
        %v945 = vadd.f32 %v933, 0.0
        %v946 = vadd.f32 %v934, 0.0
        %v947 = vadd.f32 %v935, 0.0
        %v948 = vadd.f32 %v911, 0.0
        %v949 = vadd.f32 %v912, 0.0
        %v950 = vadd.f32 %v913, 0.0
        %v951 = vadd.f32 %v914, 0.0
        %v952 = vadd.f32 %v940, 0.0
        %v953 = vadd.f32 %v941, 0.0
        %v954 = vadd.f32 %v942, 0.0
        %v955 = vadd.f32 %v943, 0.0
        %v956 = vmul.f32 %v936, %v932
        %v957 = vmul.f32 %v937, %v933
        %v958 = vmul.f32 %v938, %v934
        %v959 = vmul.f32 %v939, %v935
        %v960 = vadd.f32 %v956, 0.0
        %v961 = vadd.f32 %v957, 0.0
        %v962 = vadd.f32 %v958, 0.0
        %v963 = vadd.f32 %v959, 0.0
        %v964 = vmul.f32 %v940, %v932
        %v965 = vmul.f32 %v941, %v933
        %v966 = vmul.f32 %v942, %v934
        %v967 = vmul.f32 %v943, %v935
        %v968 = vadd.f32 %v964, 0.0
        %v969 = vadd.f32 %v965, 0.0
        %v970 = vadd.f32 %v966, 0.0
        %v971 = vadd.f32 %v967, 0.0
        %v972 = vadd.f32 %v944, %v945
        %v973 = vadd.f32 %v972, %v946
        %v974 = vadd.f32 %v973, %v947
        %v975 = vadd.f32 %v948, %v949
        %v976 = vadd.f32 %v975, %v950
        %v977 = vadd.f32 %v976, %v951
        %v978 = vadd.f32 %v952, %v953
        %v979 = vadd.f32 %v978, %v954
        %v980 = vadd.f32 %v979, %v955
        %v981 = vadd.f32 %v960, %v961
        %v982 = vadd.f32 %v981, %v962
        %v983 = vadd.f32 %v982, %v963
        %v984 = vadd.f32 %v968, %v969
        %v985 = vadd.f32 %v984, %v970
        %v986 = vadd.f32 %v985, %v971
        %v987 = vld [vmem:[%s499 + $0x30] sm:$0xff]
        %v988 = vld [vmem:[%s499 + $0x38] sm:$0xff]
        %v989 = vld [vmem:[%s499 + $0x40] sm:$0xff]
        %v990 = vld [vmem:[%s499 + $0x48] sm:$0xff]
        %v991 = vld [vmem:[%s499 + $0x50] sm:$0xff]
        %v992 = vadd.f32 %v987, %v974
        %v993 = vadd.f32 %v988, %v977
        %v994 = vadd.f32 %v989, %v980
        %v995 = vadd.f32 %v990, %v983
        %v996 = vadd.f32 %v991, %v986
        %997 = vst [vmem:[%s499 + $0x30] sm:$0xff] %v992
        %998 = vst [vmem:[%s499 + $0x38] sm:$0xff] %v993
        %999 = vst [vmem:[%s499 + $0x40] sm:$0xff] %v994
        %1000 = vst [vmem:[%s499 + $0x48] sm:$0xff] %v995
        %1001 = vst [vmem:[%s499 + $0x50] sm:$0xff] %v996
      $region56: #{pan_loss.1} parent=47 // pred_fallthru
        _
      %p1002 = scmp.ge.s32.totalorder %s889, 2
      // Predicated region
      $region57: #{pan_loss.1} parent=47 // pred_check
        %p1003 = pneg %p1002
      $region58: #{pan_loss.1} parent=47 // pred_check_branch
        %1005 = sbr.rel (%p1003) target = $region60
      $region59: #{pan_loss.1} parent=47 // pred_region
        %v1006 = vld [vmem:[%s477] sm:$0xff]
        %v1007 = vunpack.c.0.s8 %v1006
        %v1008 = vunpack.c.1.s8 %v1006
        %v1009 = vunpack.c.2.s8 %v1006
        %v1010 = vunpack.c.3.s8 %v1006
        %v1011 = vcvt.s32.f32 %v1007
        %v1012 = vcvt.s32.f32 %v1008
        %v1013 = vcvt.s32.f32 %v1009
        %v1014 = vcvt.s32.f32 %v1010
        %vm1015 = vcmp.eq.f32.partialorder %v1011, 2.0
        %vm1016 = vcmp.eq.f32.partialorder %v1012, 2.0
        %vm1017 = vcmp.eq.f32.partialorder %v1013, 2.0
        %vm1018 = vcmp.eq.f32.partialorder %v1014, 2.0
        %v1019 = vsel %vm1015, 1, 0
        %v1020 = vsel %vm1016, 1, 0
        %v1021 = vsel %vm1017, 1, 0
        %v1022 = vsel %vm1018, 1, 0
        %v1023 = vcvt.s32.f32 %v1019
        %v1024 = vcvt.s32.f32 %v1020
        %v1025 = vcvt.s32.f32 %v1021
        %v1026 = vcvt.s32.f32 %v1022
        %v1027 = vld [vmem:[%s484] sm:$0xff]
        %v1028 = vunpack.c.0.s8 %v1027
        %v1029 = vunpack.c.1.s8 %v1027
        %v1030 = vunpack.c.2.s8 %v1027
        %v1031 = vunpack.c.3.s8 %v1027
        %v1032 = vcvt.s32.f32 %v1028
        %v1033 = vcvt.s32.f32 %v1029
        %v1034 = vcvt.s32.f32 %v1030
        %v1035 = vcvt.s32.f32 %v1031
        %vm1036 = vcmp.eq.f32.partialorder %v1032, 2.0
        %vm1037 = vcmp.eq.f32.partialorder %v1033, 2.0
        %vm1038 = vcmp.eq.f32.partialorder %v1034, 2.0
        %vm1039 = vcmp.eq.f32.partialorder %v1035, 2.0
        %v1040 = vsel %vm1036, 1, 0
        %v1041 = vsel %vm1037, 1, 0
        %v1042 = vsel %vm1038, 1, 0
        %v1043 = vsel %vm1039, 1, 0
        %v1044 = vcvt.s32.f32 %v1040
        %v1045 = vcvt.s32.f32 %v1041
        %v1046 = vcvt.s32.f32 %v1042
        %v1047 = vcvt.s32.f32 %v1043
        %v1048 = vld [vmem:[#allocation2] sm:$0xff]
        %v1049 = vld [vmem:[#allocation2 + $0x8] sm:$0xff]
        %v1050 = vld [vmem:[#allocation2 + $0x10] sm:$0xff]
        %v1051 = vld [vmem:[#allocation2 + $0x18] sm:$0xff]
        %v1052 = vmul.f32 %v1048, %v1023
        %v1053 = vmul.f32 %v1049, %v1024
        %v1054 = vmul.f32 %v1050, %v1025
        %v1055 = vmul.f32 %v1051, %v1026
        %v1056 = vadd.f32 %v1044, 0.0
        %v1057 = vadd.f32 %v1045, 0.0
        %v1058 = vadd.f32 %v1046, 0.0
        %v1059 = vadd.f32 %v1047, 0.0
        %v1060 = vadd.f32 %v1023, 0.0
        %v1061 = vadd.f32 %v1024, 0.0
        %v1062 = vadd.f32 %v1025, 0.0
        %v1063 = vadd.f32 %v1026, 0.0
        %v1064 = vadd.f32 %v1052, 0.0
        %v1065 = vadd.f32 %v1053, 0.0
        %v1066 = vadd.f32 %v1054, 0.0
        %v1067 = vadd.f32 %v1055, 0.0
        %v1068 = vmul.f32 %v1048, %v1044
        %v1069 = vmul.f32 %v1049, %v1045
        %v1070 = vmul.f32 %v1050, %v1046
        %v1071 = vmul.f32 %v1051, %v1047
        %v1072 = vadd.f32 %v1068, 0.0
        %v1073 = vadd.f32 %v1069, 0.0
        %v1074 = vadd.f32 %v1070, 0.0
        %v1075 = vadd.f32 %v1071, 0.0
        %v1076 = vmul.f32 %v1052, %v1044
        %v1077 = vmul.f32 %v1053, %v1045
        %v1078 = vmul.f32 %v1054, %v1046
        %v1079 = vmul.f32 %v1055, %v1047
        %v1080 = vadd.f32 %v1076, 0.0
        %v1081 = vadd.f32 %v1077, 0.0
        %v1082 = vadd.f32 %v1078, 0.0
        %v1083 = vadd.f32 %v1079, 0.0
        %v1084 = vadd.f32 %v1056, %v1057
        %v1085 = vadd.f32 %v1084, %v1058
        %v1086 = vadd.f32 %v1085, %v1059
        %v1087 = vadd.f32 %v1060, %v1061
        %v1088 = vadd.f32 %v1087, %v1062
        %v1089 = vadd.f32 %v1088, %v1063
        %v1090 = vadd.f32 %v1064, %v1065
        %v1091 = vadd.f32 %v1090, %v1066
        %v1092 = vadd.f32 %v1091, %v1067
        %v1093 = vadd.f32 %v1072, %v1073
        %v1094 = vadd.f32 %v1093, %v1074
        %v1095 = vadd.f32 %v1094, %v1075
        %v1096 = vadd.f32 %v1080, %v1081
        %v1097 = vadd.f32 %v1096, %v1082
        %v1098 = vadd.f32 %v1097, %v1083
        %v1099 = vld [vmem:[%s499 + $0x58] sm:$0xff]
        %v1100 = vld [vmem:[%s499 + $0x60] sm:$0xff]
        %v1101 = vld [vmem:[%s499 + $0x68] sm:$0xff]
        %v1102 = vld [vmem:[%s499 + $0x70] sm:$0xff]
        %v1103 = vld [vmem:[%s499 + $0x78] sm:$0xff]
        %v1104 = vadd.f32 %v1099, %v1086
        %v1105 = vadd.f32 %v1100, %v1089
        %v1106 = vadd.f32 %v1101, %v1092
        %v1107 = vadd.f32 %v1102, %v1095
        %v1108 = vadd.f32 %v1103, %v1098
        %1109 = vst [vmem:[%s499 + $0x58] sm:$0xff] %v1104
        %1110 = vst [vmem:[%s499 + $0x60] sm:$0xff] %v1105
        %1111 = vst [vmem:[%s499 + $0x68] sm:$0xff] %v1106
        %1112 = vst [vmem:[%s499 + $0x70] sm:$0xff] %v1107
        %1113 = vst [vmem:[%s499 + $0x78] sm:$0xff] %v1108
      $region60: #{pan_loss.1} parent=47 // pred_fallthru
        _
      %p1114 = scmp.ge.s32.totalorder %s889, 3
      // Predicated region
      $region61: #{pan_loss.1} parent=47 // pred_check
        %p1115 = pneg %p1114
      $region62: #{pan_loss.1} parent=47 // pred_check_branch
        %1117 = sbr.rel (%p1115) target = $region64
      $region63: #{pan_loss.1} parent=47 // pred_region
        %v1118 = vld [vmem:[%s477] sm:$0xff]
        %v1119 = vunpack.c.0.s8 %v1118
        %v1120 = vunpack.c.1.s8 %v1118
        %v1121 = vunpack.c.2.s8 %v1118
        %v1122 = vunpack.c.3.s8 %v1118
        %v1123 = vcvt.s32.f32 %v1119
        %v1124 = vcvt.s32.f32 %v1120
        %v1125 = vcvt.s32.f32 %v1121
        %v1126 = vcvt.s32.f32 %v1122
        %vm1127 = vcmp.eq.f32.partialorder %v1123, 3.0
        %vm1128 = vcmp.eq.f32.partialorder %v1124, 3.0
        %vm1129 = vcmp.eq.f32.partialorder %v1125, 3.0
        %vm1130 = vcmp.eq.f32.partialorder %v1126, 3.0
        %v1131 = vsel %vm1127, 1, 0
        %v1132 = vsel %vm1128, 1, 0
        %v1133 = vsel %vm1129, 1, 0
        %v1134 = vsel %vm1130, 1, 0
        %v1135 = vcvt.s32.f32 %v1131
        %v1136 = vcvt.s32.f32 %v1132
        %v1137 = vcvt.s32.f32 %v1133
        %v1138 = vcvt.s32.f32 %v1134
        %v1139 = vld [vmem:[%s484] sm:$0xff]
        %v1140 = vunpack.c.0.s8 %v1139
        %v1141 = vunpack.c.1.s8 %v1139
        %v1142 = vunpack.c.2.s8 %v1139
        %v1143 = vunpack.c.3.s8 %v1139
        %v1144 = vcvt.s32.f32 %v1140
        %v1145 = vcvt.s32.f32 %v1141
        %v1146 = vcvt.s32.f32 %v1142
        %v1147 = vcvt.s32.f32 %v1143
        %vm1148 = vcmp.eq.f32.partialorder %v1144, 3.0
        %vm1149 = vcmp.eq.f32.partialorder %v1145, 3.0
        %vm1150 = vcmp.eq.f32.partialorder %v1146, 3.0
        %vm1151 = vcmp.eq.f32.partialorder %v1147, 3.0
        %v1152 = vsel %vm1148, 1, 0
        %v1153 = vsel %vm1149, 1, 0
        %v1154 = vsel %vm1150, 1, 0
        %v1155 = vsel %vm1151, 1, 0
        %v1156 = vcvt.s32.f32 %v1152
        %v1157 = vcvt.s32.f32 %v1153
        %v1158 = vcvt.s32.f32 %v1154
        %v1159 = vcvt.s32.f32 %v1155
        %v1160 = vld [vmem:[#allocation2] sm:$0xff]
        %v1161 = vld [vmem:[#allocation2 + $0x8] sm:$0xff]
        %v1162 = vld [vmem:[#allocation2 + $0x10] sm:$0xff]
        %v1163 = vld [vmem:[#allocation2 + $0x18] sm:$0xff]
        %v1164 = vmul.f32 %v1160, %v1135
        %v1165 = vmul.f32 %v1161, %v1136
        %v1166 = vmul.f32 %v1162, %v1137
        %v1167 = vmul.f32 %v1163, %v1138
        %v1168 = vadd.f32 %v1156, 0.0
        %v1169 = vadd.f32 %v1157, 0.0
        %v1170 = vadd.f32 %v1158, 0.0
        %v1171 = vadd.f32 %v1159, 0.0
        %v1172 = vadd.f32 %v1135, 0.0
        %v1173 = vadd.f32 %v1136, 0.0
        %v1174 = vadd.f32 %v1137, 0.0
        %v1175 = vadd.f32 %v1138, 0.0
        %v1176 = vadd.f32 %v1164, 0.0
        %v1177 = vadd.f32 %v1165, 0.0
        %v1178 = vadd.f32 %v1166, 0.0
        %v1179 = vadd.f32 %v1167, 0.0
        %v1180 = vmul.f32 %v1160, %v1156
        %v1181 = vmul.f32 %v1161, %v1157
        %v1182 = vmul.f32 %v1162, %v1158
        %v1183 = vmul.f32 %v1163, %v1159
        %v1184 = vadd.f32 %v1180, 0.0
        %v1185 = vadd.f32 %v1181, 0.0
        %v1186 = vadd.f32 %v1182, 0.0
        %v1187 = vadd.f32 %v1183, 0.0
        %v1188 = vmul.f32 %v1164, %v1156
        %v1189 = vmul.f32 %v1165, %v1157
        %v1190 = vmul.f32 %v1166, %v1158
        %v1191 = vmul.f32 %v1167, %v1159
        %v1192 = vadd.f32 %v1188, 0.0
        %v1193 = vadd.f32 %v1189, 0.0
        %v1194 = vadd.f32 %v1190, 0.0
        %v1195 = vadd.f32 %v1191, 0.0
        %v1196 = vadd.f32 %v1168, %v1169
        %v1197 = vadd.f32 %v1196, %v1170
        %v1198 = vadd.f32 %v1197, %v1171
        %v1199 = vadd.f32 %v1172, %v1173
        %v1200 = vadd.f32 %v1199, %v1174
        %v1201 = vadd.f32 %v1200, %v1175
        %v1202 = vadd.f32 %v1176, %v1177
        %v1203 = vadd.f32 %v1202, %v1178
        %v1204 = vadd.f32 %v1203, %v1179
        %v1205 = vadd.f32 %v1184, %v1185
        %v1206 = vadd.f32 %v1205, %v1186
        %v1207 = vadd.f32 %v1206, %v1187
        %v1208 = vadd.f32 %v1192, %v1193
        %v1209 = vadd.f32 %v1208, %v1194
        %v1210 = vadd.f32 %v1209, %v1195
        %v1211 = vld [vmem:[%s499 + $0x80] sm:$0xff]
        %v1212 = vld [vmem:[%s499 + $0x88] sm:$0xff]
        %v1213 = vld [vmem:[%s499 + $0x90] sm:$0xff]
        %v1214 = vld [vmem:[%s499 + $0x98] sm:$0xff]
        %v1215 = vld [vmem:[%s499 + $0xa0] sm:$0xff]
        %v1216 = vadd.f32 %v1211, %v1198
        %v1217 = vadd.f32 %v1212, %v1201
        %v1218 = vadd.f32 %v1213, %v1204
        %v1219 = vadd.f32 %v1214, %v1207
        %v1220 = vadd.f32 %v1215, %v1210
        %1221 = vst [vmem:[%s499 + $0x80] sm:$0xff] %v1216
        %1222 = vst [vmem:[%s499 + $0x88] sm:$0xff] %v1217
        %1223 = vst [vmem:[%s499 + $0x90] sm:$0xff] %v1218
        %1224 = vst [vmem:[%s499 + $0x98] sm:$0xff] %v1219
        %1225 = vst [vmem:[%s499 + $0xa0] sm:$0xff] %v1220
      $region64: #{pan_loss.1} parent=47 // pred_fallthru
        _
      %p1226 = scmp.ge.s32.totalorder %s889, 4
      // Predicated region
      $region65: #{pan_loss.1} parent=47 // pred_check
        %p1227 = pneg %p1226
      $region66: #{pan_loss.1} parent=47 // pred_check_branch
        %1229 = sbr.rel (%p1227) target = $region68
      $region67: #{pan_loss.1} parent=47 // pred_region
        %v1230 = vld [vmem:[%s477] sm:$0xff]
        %v1231 = vunpack.c.0.s8 %v1230
        %v1232 = vunpack.c.1.s8 %v1230
        %v1233 = vunpack.c.2.s8 %v1230
        %v1234 = vunpack.c.3.s8 %v1230
        %v1235 = vcvt.s32.f32 %v1231
        %v1236 = vcvt.s32.f32 %v1232
        %v1237 = vcvt.s32.f32 %v1233
        %v1238 = vcvt.s32.f32 %v1234
        %vm1239 = vcmp.eq.f32.partialorder %v1235, 4.0
        %vm1240 = vcmp.eq.f32.partialorder %v1236, 4.0
        %vm1241 = vcmp.eq.f32.partialorder %v1237, 4.0
        %vm1242 = vcmp.eq.f32.partialorder %v1238, 4.0
        %v1243 = vsel %vm1239, 1, 0
        %v1244 = vsel %vm1240, 1, 0
        %v1245 = vsel %vm1241, 1, 0
        %v1246 = vsel %vm1242, 1, 0
        %v1247 = vcvt.s32.f32 %v1243
        %v1248 = vcvt.s32.f32 %v1244
        %v1249 = vcvt.s32.f32 %v1245
        %v1250 = vcvt.s32.f32 %v1246
        %v1251 = vld [vmem:[%s484] sm:$0xff]
        %v1252 = vunpack.c.0.s8 %v1251
        %v1253 = vunpack.c.1.s8 %v1251
        %v1254 = vunpack.c.2.s8 %v1251
        %v1255 = vunpack.c.3.s8 %v1251
        %v1256 = vcvt.s32.f32 %v1252
        %v1257 = vcvt.s32.f32 %v1253
        %v1258 = vcvt.s32.f32 %v1254
        %v1259 = vcvt.s32.f32 %v1255
        %vm1260 = vcmp.eq.f32.partialorder %v1256, 4.0
        %vm1261 = vcmp.eq.f32.partialorder %v1257, 4.0
        %vm1262 = vcmp.eq.f32.partialorder %v1258, 4.0
        %vm1263 = vcmp.eq.f32.partialorder %v1259, 4.0
        %v1264 = vsel %vm1260, 1, 0
        %v1265 = vsel %vm1261, 1, 0
        %v1266 = vsel %vm1262, 1, 0
        %v1267 = vsel %vm1263, 1, 0
        %v1268 = vcvt.s32.f32 %v1264
        %v1269 = vcvt.s32.f32 %v1265
        %v1270 = vcvt.s32.f32 %v1266
        %v1271 = vcvt.s32.f32 %v1267
        %v1272 = vld [vmem:[#allocation2] sm:$0xff]
        %v1273 = vld [vmem:[#allocation2 + $0x8] sm:$0xff]
        %v1274 = vld [vmem:[#allocation2 + $0x10] sm:$0xff]
        %v1275 = vld [vmem:[#allocation2 + $0x18] sm:$0xff]
        %v1276 = vmul.f32 %v1272, %v1247
        %v1277 = vmul.f32 %v1273, %v1248
        %v1278 = vmul.f32 %v1274, %v1249
        %v1279 = vmul.f32 %v1275, %v1250
        %v1280 = vadd.f32 %v1268, 0.0
        %v1281 = vadd.f32 %v1269, 0.0
        %v1282 = vadd.f32 %v1270, 0.0
        %v1283 = vadd.f32 %v1271, 0.0
        %v1284 = vadd.f32 %v1247, 0.0
        %v1285 = vadd.f32 %v1248, 0.0
        %v1286 = vadd.f32 %v1249, 0.0
        %v1287 = vadd.f32 %v1250, 0.0
        %v1288 = vadd.f32 %v1276, 0.0
        %v1289 = vadd.f32 %v1277, 0.0
        %v1290 = vadd.f32 %v1278, 0.0
        %v1291 = vadd.f32 %v1279, 0.0
        %v1292 = vmul.f32 %v1272, %v1268
        %v1293 = vmul.f32 %v1273, %v1269
        %v1294 = vmul.f32 %v1274, %v1270
        %v1295 = vmul.f32 %v1275, %v1271
        %v1296 = vadd.f32 %v1292, 0.0
        %v1297 = vadd.f32 %v1293, 0.0
        %v1298 = vadd.f32 %v1294, 0.0
        %v1299 = vadd.f32 %v1295, 0.0
        %v1300 = vmul.f32 %v1276, %v1268
        %v1301 = vmul.f32 %v1277, %v1269
        %v1302 = vmul.f32 %v1278, %v1270
        %v1303 = vmul.f32 %v1279, %v1271
        %v1304 = vadd.f32 %v1300, 0.0
        %v1305 = vadd.f32 %v1301, 0.0
        %v1306 = vadd.f32 %v1302, 0.0
        %v1307 = vadd.f32 %v1303, 0.0
        %v1308 = vadd.f32 %v1280, %v1281
        %v1309 = vadd.f32 %v1308, %v1282
        %v1310 = vadd.f32 %v1309, %v1283
        %v1311 = vadd.f32 %v1284, %v1285
        %v1312 = vadd.f32 %v1311, %v1286
        %v1313 = vadd.f32 %v1312, %v1287
        %v1314 = vadd.f32 %v1288, %v1289
        %v1315 = vadd.f32 %v1314, %v1290
        %v1316 = vadd.f32 %v1315, %v1291
        %v1317 = vadd.f32 %v1296, %v1297
        %v1318 = vadd.f32 %v1317, %v1298
        %v1319 = vadd.f32 %v1318, %v1299
        %v1320 = vadd.f32 %v1304, %v1305
        %v1321 = vadd.f32 %v1320, %v1306
        %v1322 = vadd.f32 %v1321, %v1307
        %v1323 = vld [vmem:[%s499 + $0xa8] sm:$0xff]
        %v1324 = vld [vmem:[%s499 + $0xb0] sm:$0xff]
        %v1325 = vld [vmem:[%s499 + $0xb8] sm:$0xff]
        %v1326 = vld [vmem:[%s499 + $0xc0] sm:$0xff]
        %v1327 = vld [vmem:[%s499 + $0xc8] sm:$0xff]
        %v1328 = vadd.f32 %v1323, %v1310
        %v1329 = vadd.f32 %v1324, %v1313
        %v1330 = vadd.f32 %v1325, %v1316
        %v1331 = vadd.f32 %v1326, %v1319
        %v1332 = vadd.f32 %v1327, %v1322
        %1333 = vst [vmem:[%s499 + $0xa8] sm:$0xff] %v1328
        %1334 = vst [vmem:[%s499 + $0xb0] sm:$0xff] %v1329
        %1335 = vst [vmem:[%s499 + $0xb8] sm:$0xff] %v1330
        %1336 = vst [vmem:[%s499 + $0xc0] sm:$0xff] %v1331
        %1337 = vst [vmem:[%s499 + $0xc8] sm:$0xff] %v1332
      $region68: #{pan_loss.1} parent=47 // pred_fallthru
        _
      %p1338 = scmp.ge.s32.totalorder %s889, 5
      // Predicated region
      $region69: #{pan_loss.1} parent=47 // pred_check
        %p1339 = pneg %p1338
      $region70: #{pan_loss.1} parent=47 // pred_check_branch
        %1341 = sbr.rel (%p1339) target = $region72
      $region71: #{pan_loss.1} parent=47 // pred_region
        %v1342 = vld [vmem:[%s477] sm:$0xff]
        %v1343 = vunpack.c.0.s8 %v1342
        %v1344 = vunpack.c.1.s8 %v1342
        %v1345 = vunpack.c.2.s8 %v1342
        %v1346 = vunpack.c.3.s8 %v1342
        %v1347 = vcvt.s32.f32 %v1343
        %v1348 = vcvt.s32.f32 %v1344
        %v1349 = vcvt.s32.f32 %v1345
        %v1350 = vcvt.s32.f32 %v1346
        %vm1351 = vcmp.eq.f32.partialorder %v1347, 5.0
        %vm1352 = vcmp.eq.f32.partialorder %v1348, 5.0
        %vm1353 = vcmp.eq.f32.partialorder %v1349, 5.0
        %vm1354 = vcmp.eq.f32.partialorder %v1350, 5.0
        %v1355 = vsel %vm1351, 1, 0
        %v1356 = vsel %vm1352, 1, 0
        %v1357 = vsel %vm1353, 1, 0
        %v1358 = vsel %vm1354, 1, 0
        %v1359 = vcvt.s32.f32 %v1355
        %v1360 = vcvt.s32.f32 %v1356
        %v1361 = vcvt.s32.f32 %v1357
        %v1362 = vcvt.s32.f32 %v1358
        %v1363 = vld [vmem:[%s484] sm:$0xff]
        %v1364 = vunpack.c.0.s8 %v1363
        %v1365 = vunpack.c.1.s8 %v1363
        %v1366 = vunpack.c.2.s8 %v1363
        %v1367 = vunpack.c.3.s8 %v1363
        %v1368 = vcvt.s32.f32 %v1364
        %v1369 = vcvt.s32.f32 %v1365
        %v1370 = vcvt.s32.f32 %v1366
        %v1371 = vcvt.s32.f32 %v1367
        %vm1372 = vcmp.eq.f32.partialorder %v1368, 5.0
        %vm1373 = vcmp.eq.f32.partialorder %v1369, 5.0
        %vm1374 = vcmp.eq.f32.partialorder %v1370, 5.0
        %vm1375 = vcmp.eq.f32.partialorder %v1371, 5.0
        %v1376 = vsel %vm1372, 1, 0
        %v1377 = vsel %vm1373, 1, 0
        %v1378 = vsel %vm1374, 1, 0
        %v1379 = vsel %vm1375, 1, 0
        %v1380 = vcvt.s32.f32 %v1376
        %v1381 = vcvt.s32.f32 %v1377
        %v1382 = vcvt.s32.f32 %v1378
        %v1383 = vcvt.s32.f32 %v1379
        %v1384 = vld [vmem:[#allocation2] sm:$0xff]
        %v1385 = vld [vmem:[#allocation2 + $0x8] sm:$0xff]
        %v1386 = vld [vmem:[#allocation2 + $0x10] sm:$0xff]
        %v1387 = vld [vmem:[#allocation2 + $0x18] sm:$0xff]
        %v1388 = vmul.f32 %v1384, %v1359
        %v1389 = vmul.f32 %v1385, %v1360
        %v1390 = vmul.f32 %v1386, %v1361
        %v1391 = vmul.f32 %v1387, %v1362
        %v1392 = vadd.f32 %v1380, 0.0
        %v1393 = vadd.f32 %v1381, 0.0
        %v1394 = vadd.f32 %v1382, 0.0
        %v1395 = vadd.f32 %v1383, 0.0
        %v1396 = vadd.f32 %v1359, 0.0
        %v1397 = vadd.f32 %v1360, 0.0
        %v1398 = vadd.f32 %v1361, 0.0
        %v1399 = vadd.f32 %v1362, 0.0
        %v1400 = vadd.f32 %v1388, 0.0
        %v1401 = vadd.f32 %v1389, 0.0
        %v1402 = vadd.f32 %v1390, 0.0
        %v1403 = vadd.f32 %v1391, 0.0
        %v1404 = vmul.f32 %v1384, %v1380
        %v1405 = vmul.f32 %v1385, %v1381
        %v1406 = vmul.f32 %v1386, %v1382
        %v1407 = vmul.f32 %v1387, %v1383
        %v1408 = vadd.f32 %v1404, 0.0
        %v1409 = vadd.f32 %v1405, 0.0
        %v1410 = vadd.f32 %v1406, 0.0
        %v1411 = vadd.f32 %v1407, 0.0
        %v1412 = vmul.f32 %v1388, %v1380
        %v1413 = vmul.f32 %v1389, %v1381
        %v1414 = vmul.f32 %v1390, %v1382
        %v1415 = vmul.f32 %v1391, %v1383
        %v1416 = vadd.f32 %v1412, 0.0
        %v1417 = vadd.f32 %v1413, 0.0
        %v1418 = vadd.f32 %v1414, 0.0
        %v1419 = vadd.f32 %v1415, 0.0
        %v1420 = vadd.f32 %v1392, %v1393
        %v1421 = vadd.f32 %v1420, %v1394
        %v1422 = vadd.f32 %v1421, %v1395
        %v1423 = vadd.f32 %v1396, %v1397
        %v1424 = vadd.f32 %v1423, %v1398
        %v1425 = vadd.f32 %v1424, %v1399
        %v1426 = vadd.f32 %v1400, %v1401
        %v1427 = vadd.f32 %v1426, %v1402
        %v1428 = vadd.f32 %v1427, %v1403
        %v1429 = vadd.f32 %v1408, %v1409
        %v1430 = vadd.f32 %v1429, %v1410
        %v1431 = vadd.f32 %v1430, %v1411
        %v1432 = vadd.f32 %v1416, %v1417
        %v1433 = vadd.f32 %v1432, %v1418
        %v1434 = vadd.f32 %v1433, %v1419
        %v1435 = vld [vmem:[%s499 + $0xd0] sm:$0xff]
        %v1436 = vld [vmem:[%s499 + $0xd8] sm:$0xff]
        %v1437 = vld [vmem:[%s499 + $0xe0] sm:$0xff]
        %v1438 = vld [vmem:[%s499 + $0xe8] sm:$0xff]
        %v1439 = vld [vmem:[%s499 + $0xf0] sm:$0xff]
        %v1440 = vadd.f32 %v1435, %v1422
        %v1441 = vadd.f32 %v1436, %v1425
        %v1442 = vadd.f32 %v1437, %v1428
        %v1443 = vadd.f32 %v1438, %v1431
        %v1444 = vadd.f32 %v1439, %v1434
        %1445 = vst [vmem:[%s499 + $0xd0] sm:$0xff] %v1440
        %1446 = vst [vmem:[%s499 + $0xd8] sm:$0xff] %v1441
        %1447 = vst [vmem:[%s499 + $0xe0] sm:$0xff] %v1442
        %1448 = vst [vmem:[%s499 + $0xe8] sm:$0xff] %v1443
        %1449 = vst [vmem:[%s499 + $0xf0] sm:$0xff] %v1444
      $region72: #{pan_loss.1} parent=47 // pred_fallthru
        _
      %p1450 = scmp.ge.s32.totalorder %s889, 6
      // Predicated region
      $region73: #{pan_loss.1} parent=47 // pred_check
        %p1451 = pneg %p1450
      $region74: #{pan_loss.1} parent=47 // pred_check_branch
        %1453 = sbr.rel (%p1451) target = $region76
      $region75: #{pan_loss.1} parent=47 // pred_region
        %v1454 = vld [vmem:[%s477] sm:$0xff]
        %v1455 = vunpack.c.0.s8 %v1454
        %v1456 = vunpack.c.1.s8 %v1454
        %v1457 = vunpack.c.2.s8 %v1454
        %v1458 = vunpack.c.3.s8 %v1454
        %v1459 = vcvt.s32.f32 %v1455
        %v1460 = vcvt.s32.f32 %v1456
        %v1461 = vcvt.s32.f32 %v1457
        %v1462 = vcvt.s32.f32 %v1458
        %vm1463 = vcmp.eq.f32.partialorder %v1459, 6.0
        %vm1464 = vcmp.eq.f32.partialorder %v1460, 6.0
        %vm1465 = vcmp.eq.f32.partialorder %v1461, 6.0
        %vm1466 = vcmp.eq.f32.partialorder %v1462, 6.0
        %v1467 = vsel %vm1463, 1, 0
        %v1468 = vsel %vm1464, 1, 0
        %v1469 = vsel %vm1465, 1, 0
        %v1470 = vsel %vm1466, 1, 0
        %v1471 = vcvt.s32.f32 %v1467
        %v1472 = vcvt.s32.f32 %v1468
        %v1473 = vcvt.s32.f32 %v1469
        %v1474 = vcvt.s32.f32 %v1470
        %v1475 = vld [vmem:[%s484] sm:$0xff]
        %v1476 = vunpack.c.0.s8 %v1475
        %v1477 = vunpack.c.1.s8 %v1475
        %v1478 = vunpack.c.2.s8 %v1475
        %v1479 = vunpack.c.3.s8 %v1475
        %v1480 = vcvt.s32.f32 %v1476
        %v1481 = vcvt.s32.f32 %v1477
        %v1482 = vcvt.s32.f32 %v1478
        %v1483 = vcvt.s32.f32 %v1479
        %vm1484 = vcmp.eq.f32.partialorder %v1480, 6.0
        %vm1485 = vcmp.eq.f32.partialorder %v1481, 6.0
        %vm1486 = vcmp.eq.f32.partialorder %v1482, 6.0
        %vm1487 = vcmp.eq.f32.partialorder %v1483, 6.0
        %v1488 = vsel %vm1484, 1, 0
        %v1489 = vsel %vm1485, 1, 0
        %v1490 = vsel %vm1486, 1, 0
        %v1491 = vsel %vm1487, 1, 0
        %v1492 = vcvt.s32.f32 %v1488
        %v1493 = vcvt.s32.f32 %v1489
        %v1494 = vcvt.s32.f32 %v1490
        %v1495 = vcvt.s32.f32 %v1491
        %v1496 = vld [vmem:[#allocation2] sm:$0xff]
        %v1497 = vld [vmem:[#allocation2 + $0x8] sm:$0xff]
        %v1498 = vld [vmem:[#allocation2 + $0x10] sm:$0xff]
        %v1499 = vld [vmem:[#allocation2 + $0x18] sm:$0xff]
        %v1500 = vmul.f32 %v1496, %v1471
        %v1501 = vmul.f32 %v1497, %v1472
        %v1502 = vmul.f32 %v1498, %v1473
        %v1503 = vmul.f32 %v1499, %v1474
        %v1504 = vadd.f32 %v1492, 0.0
        %v1505 = vadd.f32 %v1493, 0.0
        %v1506 = vadd.f32 %v1494, 0.0
        %v1507 = vadd.f32 %v1495, 0.0
        %v1508 = vadd.f32 %v1471, 0.0
        %v1509 = vadd.f32 %v1472, 0.0
        %v1510 = vadd.f32 %v1473, 0.0
        %v1511 = vadd.f32 %v1474, 0.0
        %v1512 = vadd.f32 %v1500, 0.0
        %v1513 = vadd.f32 %v1501, 0.0
        %v1514 = vadd.f32 %v1502, 0.0
        %v1515 = vadd.f32 %v1503, 0.0
        %v1516 = vmul.f32 %v1496, %v1492
        %v1517 = vmul.f32 %v1497, %v1493
        %v1518 = vmul.f32 %v1498, %v1494
        %v1519 = vmul.f32 %v1499, %v1495
        %v1520 = vadd.f32 %v1516, 0.0
        %v1521 = vadd.f32 %v1517, 0.0
        %v1522 = vadd.f32 %v1518, 0.0
        %v1523 = vadd.f32 %v1519, 0.0
        %v1524 = vmul.f32 %v1500, %v1492
        %v1525 = vmul.f32 %v1501, %v1493
        %v1526 = vmul.f32 %v1502, %v1494
        %v1527 = vmul.f32 %v1503, %v1495
        %v1528 = vadd.f32 %v1524, 0.0
        %v1529 = vadd.f32 %v1525, 0.0
        %v1530 = vadd.f32 %v1526, 0.0
        %v1531 = vadd.f32 %v1527, 0.0
        %v1532 = vadd.f32 %v1504, %v1505
        %v1533 = vadd.f32 %v1532, %v1506
        %v1534 = vadd.f32 %v1533, %v1507
        %v1535 = vadd.f32 %v1508, %v1509
        %v1536 = vadd.f32 %v1535, %v1510
        %v1537 = vadd.f32 %v1536, %v1511
        %v1538 = vadd.f32 %v1512, %v1513
        %v1539 = vadd.f32 %v1538, %v1514
        %v1540 = vadd.f32 %v1539, %v1515
        %v1541 = vadd.f32 %v1520, %v1521
        %v1542 = vadd.f32 %v1541, %v1522
        %v1543 = vadd.f32 %v1542, %v1523
        %v1544 = vadd.f32 %v1528, %v1529
        %v1545 = vadd.f32 %v1544, %v1530
        %v1546 = vadd.f32 %v1545, %v1531
        %v1547 = vld [vmem:[%s499 + $0xf8] sm:$0xff]
        %v1548 = vld [vmem:[%s499 + $0x100] sm:$0xff]
        %v1549 = vld [vmem:[%s499 + $0x108] sm:$0xff]
        %v1550 = vld [vmem:[%s499 + $0x110] sm:$0xff]
        %v1551 = vld [vmem:[%s499 + $0x118] sm:$0xff]
        %v1552 = vadd.f32 %v1547, %v1534
        %v1553 = vadd.f32 %v1548, %v1537
        %v1554 = vadd.f32 %v1549, %v1540
        %v1555 = vadd.f32 %v1550, %v1543
        %v1556 = vadd.f32 %v1551, %v1546
        %1557 = vst [vmem:[%s499 + $0xf8] sm:$0xff] %v1552
        %1558 = vst [vmem:[%s499 + $0x100] sm:$0xff] %v1553
        %1559 = vst [vmem:[%s499 + $0x108] sm:$0xff] %v1554
        %1560 = vst [vmem:[%s499 + $0x110] sm:$0xff] %v1555
        %1561 = vst [vmem:[%s499 + $0x118] sm:$0xff] %v1556
      $region76: #{pan_loss.1} parent=47 // pred_fallthru
        _
      %p1562 = scmp.ge.s32.totalorder %s889, 7
      // Predicated region
      $region77: #{pan_loss.1} parent=47 // pred_check
        %p1563 = pneg %p1562
      $region78: #{pan_loss.1} parent=47 // pred_check_branch
        %1565 = sbr.rel (%p1563) target = $region80
      $region79: #{pan_loss.1} parent=47 // pred_region
        %v1566 = vld [vmem:[%s477] sm:$0xff]
        %v1567 = vunpack.c.0.s8 %v1566
        %v1568 = vunpack.c.1.s8 %v1566
        %v1569 = vunpack.c.2.s8 %v1566
        %v1570 = vunpack.c.3.s8 %v1566
        %v1571 = vcvt.s32.f32 %v1567
        %v1572 = vcvt.s32.f32 %v1568
        %v1573 = vcvt.s32.f32 %v1569
        %v1574 = vcvt.s32.f32 %v1570
        %vm1575 = vcmp.eq.f32.partialorder %v1571, 7.0
        %vm1576 = vcmp.eq.f32.partialorder %v1572, 7.0
        %vm1577 = vcmp.eq.f32.partialorder %v1573, 7.0
        %vm1578 = vcmp.eq.f32.partialorder %v1574, 7.0
        %v1579 = vsel %vm1575, 1, 0
        %v1580 = vsel %vm1576, 1, 0
        %v1581 = vsel %vm1577, 1, 0
        %v1582 = vsel %vm1578, 1, 0
        %v1583 = vcvt.s32.f32 %v1579
        %v1584 = vcvt.s32.f32 %v1580
        %v1585 = vcvt.s32.f32 %v1581
        %v1586 = vcvt.s32.f32 %v1582
        %v1587 = vld [vmem:[%s484] sm:$0xff]
        %v1588 = vunpack.c.0.s8 %v1587
        %v1589 = vunpack.c.1.s8 %v1587
        %v1590 = vunpack.c.2.s8 %v1587
        %v1591 = vunpack.c.3.s8 %v1587
        %v1592 = vcvt.s32.f32 %v1588
        %v1593 = vcvt.s32.f32 %v1589
        %v1594 = vcvt.s32.f32 %v1590
        %v1595 = vcvt.s32.f32 %v1591
        %vm1596 = vcmp.eq.f32.partialorder %v1592, 7.0
        %vm1597 = vcmp.eq.f32.partialorder %v1593, 7.0
        %vm1598 = vcmp.eq.f32.partialorder %v1594, 7.0
        %vm1599 = vcmp.eq.f32.partialorder %v1595, 7.0
        %v1600 = vsel %vm1596, 1, 0
        %v1601 = vsel %vm1597, 1, 0
        %v1602 = vsel %vm1598, 1, 0
        %v1603 = vsel %vm1599, 1, 0
        %v1604 = vcvt.s32.f32 %v1600
        %v1605 = vcvt.s32.f32 %v1601
        %v1606 = vcvt.s32.f32 %v1602
        %v1607 = vcvt.s32.f32 %v1603
        %v1608 = vld [vmem:[#allocation2] sm:$0xff]
        %v1609 = vld [vmem:[#allocation2 + $0x8] sm:$0xff]
        %v1610 = vld [vmem:[#allocation2 + $0x10] sm:$0xff]
        %v1611 = vld [vmem:[#allocation2 + $0x18] sm:$0xff]
        %v1612 = vmul.f32 %v1608, %v1583
        %v1613 = vmul.f32 %v1609, %v1584
        %v1614 = vmul.f32 %v1610, %v1585
        %v1615 = vmul.f32 %v1611, %v1586
        %v1616 = vadd.f32 %v1604, 0.0
        %v1617 = vadd.f32 %v1605, 0.0
        %v1618 = vadd.f32 %v1606, 0.0
        %v1619 = vadd.f32 %v1607, 0.0
        %v1620 = vadd.f32 %v1583, 0.0
        %v1621 = vadd.f32 %v1584, 0.0
        %v1622 = vadd.f32 %v1585, 0.0
        %v1623 = vadd.f32 %v1586, 0.0
        %v1624 = vadd.f32 %v1612, 0.0
        %v1625 = vadd.f32 %v1613, 0.0
        %v1626 = vadd.f32 %v1614, 0.0
        %v1627 = vadd.f32 %v1615, 0.0
        %v1628 = vmul.f32 %v1608, %v1604
        %v1629 = vmul.f32 %v1609, %v1605
        %v1630 = vmul.f32 %v1610, %v1606
        %v1631 = vmul.f32 %v1611, %v1607
        %v1632 = vadd.f32 %v1628, 0.0
        %v1633 = vadd.f32 %v1629, 0.0
        %v1634 = vadd.f32 %v1630, 0.0
        %v1635 = vadd.f32 %v1631, 0.0
        %v1636 = vmul.f32 %v1612, %v1604
        %v1637 = vmul.f32 %v1613, %v1605
        %v1638 = vmul.f32 %v1614, %v1606
        %v1639 = vmul.f32 %v1615, %v1607
        %v1640 = vadd.f32 %v1636, 0.0
        %v1641 = vadd.f32 %v1637, 0.0
        %v1642 = vadd.f32 %v1638, 0.0
        %v1643 = vadd.f32 %v1639, 0.0
        %v1644 = vadd.f32 %v1616, %v1617
        %v1645 = vadd.f32 %v1644, %v1618
        %v1646 = vadd.f32 %v1645, %v1619
        %v1647 = vadd.f32 %v1620, %v1621
        %v1648 = vadd.f32 %v1647, %v1622
        %v1649 = vadd.f32 %v1648, %v1623
        %v1650 = vadd.f32 %v1624, %v1625
        %v1651 = vadd.f32 %v1650, %v1626
        %v1652 = vadd.f32 %v1651, %v1627
        %v1653 = vadd.f32 %v1632, %v1633
        %v1654 = vadd.f32 %v1653, %v1634
        %v1655 = vadd.f32 %v1654, %v1635
        %v1656 = vadd.f32 %v1640, %v1641
        %v1657 = vadd.f32 %v1656, %v1642
        %v1658 = vadd.f32 %v1657, %v1643
        %v1659 = vld [vmem:[%s499 + $0x120] sm:$0xff]
        %v1660 = vld [vmem:[%s499 + $0x128] sm:$0xff]
        %v1661 = vld [vmem:[%s499 + $0x130] sm:$0xff]
        %v1662 = vld [vmem:[%s499 + $0x138] sm:$0xff]
        %v1663 = vld [vmem:[%s499 + $0x140] sm:$0xff]
        %v1664 = vadd.f32 %v1659, %v1646
        %v1665 = vadd.f32 %v1660, %v1649
        %v1666 = vadd.f32 %v1661, %v1652
        %v1667 = vadd.f32 %v1662, %v1655
        %v1668 = vadd.f32 %v1663, %v1658
        %1669 = vst [vmem:[%s499 + $0x120] sm:$0xff] %v1664
        %1670 = vst [vmem:[%s499 + $0x128] sm:$0xff] %v1665
        %1671 = vst [vmem:[%s499 + $0x130] sm:$0xff] %v1666
        %1672 = vst [vmem:[%s499 + $0x138] sm:$0xff] %v1667
        %1673 = vst [vmem:[%s499 + $0x140] sm:$0xff] %v1668
      $region80: #{pan_loss.1} parent=47 // pred_fallthru
        _
      %p1674 = scmp.ge.s32.totalorder %s889, 8
      // Predicated region
      $region81: #{pan_loss.1} parent=47 // pred_check
        %p1675 = pneg %p1674
      $region82: #{pan_loss.1} parent=47 // pred_check_branch
        %1677 = sbr.rel (%p1675) target = $region84
      $region83: #{pan_loss.1} parent=47 // pred_region
        %v1678 = vld [vmem:[%s477] sm:$0xff]
        %v1679 = vunpack.c.0.s8 %v1678
        %v1680 = vunpack.c.1.s8 %v1678
        %v1681 = vunpack.c.2.s8 %v1678
        %v1682 = vunpack.c.3.s8 %v1678
        %v1683 = vcvt.s32.f32 %v1679
        %v1684 = vcvt.s32.f32 %v1680
        %v1685 = vcvt.s32.f32 %v1681
        %v1686 = vcvt.s32.f32 %v1682
        %vm1687 = vcmp.eq.f32.partialorder %v1683, 8.0
        %vm1688 = vcmp.eq.f32.partialorder %v1684, 8.0
        %vm1689 = vcmp.eq.f32.partialorder %v1685, 8.0
        %vm1690 = vcmp.eq.f32.partialorder %v1686, 8.0
        %v1691 = vsel %vm1687, 1, 0
        %v1692 = vsel %vm1688, 1, 0
        %v1693 = vsel %vm1689, 1, 0
        %v1694 = vsel %vm1690, 1, 0
        %v1695 = vcvt.s32.f32 %v1691
        %v1696 = vcvt.s32.f32 %v1692
        %v1697 = vcvt.s32.f32 %v1693
        %v1698 = vcvt.s32.f32 %v1694
        %v1699 = vld [vmem:[%s484] sm:$0xff]
        %v1700 = vunpack.c.0.s8 %v1699
        %v1701 = vunpack.c.1.s8 %v1699
        %v1702 = vunpack.c.2.s8 %v1699
        %v1703 = vunpack.c.3.s8 %v1699
        %v1704 = vcvt.s32.f32 %v1700
        %v1705 = vcvt.s32.f32 %v1701
        %v1706 = vcvt.s32.f32 %v1702
        %v1707 = vcvt.s32.f32 %v1703
        %vm1708 = vcmp.eq.f32.partialorder %v1704, 8.0
        %vm1709 = vcmp.eq.f32.partialorder %v1705, 8.0
        %vm1710 = vcmp.eq.f32.partialorder %v1706, 8.0
        %vm1711 = vcmp.eq.f32.partialorder %v1707, 8.0
        %v1712 = vsel %vm1708, 1, 0
        %v1713 = vsel %vm1709, 1, 0
        %v1714 = vsel %vm1710, 1, 0
        %v1715 = vsel %vm1711, 1, 0
        %v1716 = vcvt.s32.f32 %v1712
        %v1717 = vcvt.s32.f32 %v1713
        %v1718 = vcvt.s32.f32 %v1714
        %v1719 = vcvt.s32.f32 %v1715
        %v1720 = vld [vmem:[#allocation2] sm:$0xff]
        %v1721 = vld [vmem:[#allocation2 + $0x8] sm:$0xff]
        %v1722 = vld [vmem:[#allocation2 + $0x10] sm:$0xff]
        %v1723 = vld [vmem:[#allocation2 + $0x18] sm:$0xff]
        %v1724 = vmul.f32 %v1720, %v1695
        %v1725 = vmul.f32 %v1721, %v1696
        %v1726 = vmul.f32 %v1722, %v1697
        %v1727 = vmul.f32 %v1723, %v1698
        %v1728 = vadd.f32 %v1716, 0.0
        %v1729 = vadd.f32 %v1717, 0.0
        %v1730 = vadd.f32 %v1718, 0.0
        %v1731 = vadd.f32 %v1719, 0.0
        %v1732 = vadd.f32 %v1695, 0.0
        %v1733 = vadd.f32 %v1696, 0.0
        %v1734 = vadd.f32 %v1697, 0.0
        %v1735 = vadd.f32 %v1698, 0.0
        %v1736 = vadd.f32 %v1724, 0.0
        %v1737 = vadd.f32 %v1725, 0.0
        %v1738 = vadd.f32 %v1726, 0.0
        %v1739 = vadd.f32 %v1727, 0.0
        %v1740 = vmul.f32 %v1720, %v1716
        %v1741 = vmul.f32 %v1721, %v1717
        %v1742 = vmul.f32 %v1722, %v1718
        %v1743 = vmul.f32 %v1723, %v1719
        %v1744 = vadd.f32 %v1740, 0.0
        %v1745 = vadd.f32 %v1741, 0.0
        %v1746 = vadd.f32 %v1742, 0.0
        %v1747 = vadd.f32 %v1743, 0.0
        %v1748 = vmul.f32 %v1724, %v1716
        %v1749 = vmul.f32 %v1725, %v1717
        %v1750 = vmul.f32 %v1726, %v1718
        %v1751 = vmul.f32 %v1727, %v1719
        %v1752 = vadd.f32 %v1748, 0.0
        %v1753 = vadd.f32 %v1749, 0.0
        %v1754 = vadd.f32 %v1750, 0.0
        %v1755 = vadd.f32 %v1751, 0.0
        %v1756 = vadd.f32 %v1728, %v1729
        %v1757 = vadd.f32 %v1756, %v1730
        %v1758 = vadd.f32 %v1757, %v1731
        %v1759 = vadd.f32 %v1732, %v1733
        %v1760 = vadd.f32 %v1759, %v1734
        %v1761 = vadd.f32 %v1760, %v1735
        %v1762 = vadd.f32 %v1736, %v1737
        %v1763 = vadd.f32 %v1762, %v1738
        %v1764 = vadd.f32 %v1763, %v1739
        %v1765 = vadd.f32 %v1744, %v1745
        %v1766 = vadd.f32 %v1765, %v1746
        %v1767 = vadd.f32 %v1766, %v1747
        %v1768 = vadd.f32 %v1752, %v1753
        %v1769 = vadd.f32 %v1768, %v1754
        %v1770 = vadd.f32 %v1769, %v1755
        %v1771 = vld [vmem:[%s499 + $0x148] sm:$0xff]
        %v1772 = vld [vmem:[%s499 + $0x150] sm:$0xff]
        %v1773 = vld [vmem:[%s499 + $0x158] sm:$0xff]
        %v1774 = vld [vmem:[%s499 + $0x160] sm:$0xff]
        %v1775 = vld [vmem:[%s499 + $0x168] sm:$0xff]
        %v1776 = vadd.f32 %v1771, %v1758
        %v1777 = vadd.f32 %v1772, %v1761
        %v1778 = vadd.f32 %v1773, %v1764
        %v1779 = vadd.f32 %v1774, %v1767
        %v1780 = vadd.f32 %v1775, %v1770
        %1781 = vst [vmem:[%s499 + $0x148] sm:$0xff] %v1776
        %1782 = vst [vmem:[%s499 + $0x150] sm:$0xff] %v1777
        %1783 = vst [vmem:[%s499 + $0x158] sm:$0xff] %v1778
        %1784 = vst [vmem:[%s499 + $0x160] sm:$0xff] %v1779
        %1785 = vst [vmem:[%s499 + $0x168] sm:$0xff] %v1780
      $region84: #{pan_loss.1} parent=47 // pred_fallthru
        _
      %p1786 = scmp.lt.s32.totalorder %s31, 1
      %s1787 = scalar_select %p1786, %s31, 1
      %s1788 = smul.addr %s1787, 46
      %s1789 = smul.addr %s1788, 8
      %s1790 = scalar_lea.vmem %s8, %s1789
      // Predicated region
      $region85: #{pan_loss.1} parent=47 // pred_check
        %p1791 = pneg %p253
      $region86: #{pan_loss.1} parent=47 // pred_check_branch
        %1793 = sbr.rel (%p1791) target = $region88
      $region87: #{pan_loss.1} parent=47 // pred_region
        _
      $region88: #{pan_loss.1} parent=47 // pred_fallthru
        _
    $region48: #{pan_loss.1} parent=5 // pred_fallthru
      _
    %p1794 = scmp.le.s32.totalorder 2, %s22
    // Predicated region
    $region89: #{pan_loss.1} parent=5 // pred_check
      %p1795 = pneg %p1794
    $region90: #{pan_loss.1} parent=5 // pred_check_branch
      %1797 = sbr.rel (%p1795) target = $region92
    $region91: #{pan_loss.1} parent=5 // pred_region
      %s1798 = ssub.s32 %s22, 2
      // Predicated region
      $region93: #{pan_loss.1} parent=91 // pred_check
        %p1799 = pneg %p259
      $region94: #{pan_loss.1} parent=91 // pred_check_branch
        %1801 = sbr.rel (%p1799) target = $region96
      $region95: #{pan_loss.1} parent=91 // pred_region
        %p1802 = scmp.lt.s32.totalorder %s33, 1
        %s1803 = scalar_select %p1802, %s33, 1
        %s1804 = smul.addr %s1803, 46
        %s1805 = smul.addr %s1804, 8
        %s1806 = scalar_lea.vmem %s8, %s1805
      $region96: #{pan_loss.1} parent=91 // pred_fallthru
        _
    $region92: #{pan_loss.1} parent=5 // pred_fallthru
      _
  $region6: #{pan_loss.1} parent=0 // loop_footer
    %s26 = sadd.s32 1, %s22
  $region7: #{pan_loss.1} parent=0 // loop_footer_branch
    %21 = sbr.rel target = $region3
  $region8: #{pan_loss.1} parent=0 // loop_exit
    _

</llo_original>
